<compile_context>
chip_gen: v7x
topology: tpu7x:2x2x1
jax: 0.10.0
libtpu: 0.0.40
codegen_flags: <defaults>
</compile_context>

<pallas_src>
import functools

import jax
import jax.numpy as jnp
from jax.experimental import pallas as pl
from jax.experimental.pallas import tpu as pltpu

EPS = 1e-5                          # nn.BatchNorm2d default eps
VMEM_LIMIT = 32 * 1024 * 1024       # explicit scoped-VMEM budget (safe on v5e/v6e/v7x)


# ------------------------- pass A: conv1 + downsample conv ---------------------
# One MXU matmul per grid step:  (TR, 9*Cin) @ (9*Cin, 96) -> fused (TR, 96).
# Per-step BN partial sums go to their own output row, so the grid is parallel.

def convA_kernel(p_ref, w_ref, y_ref, ssum_ref, ssq_ref):
    acc = jnp.dot(p_ref[...], w_ref[...], preferred_element_type=jnp.float32)
    y_ref[...] = acc
    ssum_ref[0] = jnp.sum(acc, axis=0, keepdims=True)
    ssq_ref[0] = jnp.sum(acc * acc, axis=0, keepdims=True)


# --------------------- pass C: BN1 + ReLU fused into conv2 ---------------------
# Applies the BN1 affine + ReLU on the fly, scatters into a zero-haloed slab,
# builds a (rows, 9*64) patch slab, and issues ONE K=576 matmul per grid step.

def convC_kernel(y_ref, a1_ref, b1_ref, w2_ref, y2_ref, ssum_ref, ssq_ref,
                 hpad_ref, patch_ref, *, B, H, W, C1, C2):
    HW = H * W
    a1 = a1_ref[...]
    b1 = b1_ref[...]

    # zero the halo every step (cheap, and safe under parallel/megacore execution)
    hpad_ref[...] = jnp.zeros_like(hpad_ref)
    for b in range(B):
        h1 = jnp.maximum(y_ref[b][:, :C1] * a1 + b1, 0.0)           # (HW, C1)
        hpad_ref[b, 1:H + 1, 1:W + 1, :] = h1.reshape(H, W, C1)

    # fold the 9 taps into the contraction dimension (K = 9*C1 = 576)
    for b in range(B):
        for dh in range(3):
            for dw in range(3):
                t = 3 * dh + dw
                patch_ref[b * HW:(b + 1) * HW, t * C1:(t + 1) * C1] = (
                    hpad_ref[b, dh:dh + H, dw:dw + W, :].reshape(HW, C1))

    acc = jnp.dot(patch_ref[...], w2_ref[...], preferred_element_type=jnp.float32)
    y2_ref[...] = acc.reshape(B, HW, C2)
    ssum_ref[0] = jnp.sum(acc, axis=0, keepdims=True)
    ssq_ref[0] = jnp.sum(acc * acc, axis=0, keepdims=True)


# ---------------- pass D: BN apply + residual add + ReLU (lane-dense) ----------

def fuse_kernel(y2_ref, yd_ref, a2_ref, b2_ref, ad_ref, bd_ref, o_ref):
    o_ref[...] = jnp.maximum(
        y2_ref[...] * a2_ref[...] + b2_ref[...]
        + yd_ref[...] * ad_ref[...] + bd_ref[...], 0.0)


# ------------------------------------ glue -------------------------------------

def _bn_scale_shift(ssum, ssq, count, gamma, beta):
    """Training-mode BN folded into an affine: y*a + b."""
    mean = ssum / count
    var = jnp.maximum(ssq / count - mean * mean, 0.0)
    a = gamma * jax.lax.rsqrt(var + EPS)
    return a, beta - mean * a


def _pick_tile(total, cap, min_steps=1):
    """Largest sublane-friendly divisor of `total` <= cap, preferring >= min_steps
    grid steps (for pipelining / v7x megacore)."""
    best = None
    for t in range(1, min(cap, total) + 1):
        if total % t:
            continue
        if (t % 8 == 0 or t == total) and total // t >= min_steps:
            best = t
    if best is None:
        for t in range(min(cap, total), 0, -1):
            if total % t == 0 and (t % 8 == 0 or t == total):
                return t
        return total      # pathological row counts: single block (may exceed cap)
    return best


def _pick_batch(n, hw, row_cap=2048):
    """Images per pass-C grid step: keep matmul rows <= row_cap, >= 2 grid steps."""
    best = 1
    for b in range(1, n + 1):
        if n % b == 0 and b * hw <= row_cap and n // b >= min(2, n):
            best = b
    return best


@jax.jit
def adapter_forward(x_nchw, params):
    """Pallas implementation of Adapter.forward (training-mode BN). NCHW f32 in/out."""
    N, Cin, H, W = x_nchw.shape
    HW = H * W
    M = N * HW
    C1, C2, Cd = 64, 32, 32
    CF = C1 + Cd                                        # fused conv1+downsample width

    x_nhwc = jnp.transpose(x_nchw, (0, 2, 3, 1)).astype(jnp.float32)

    # conv1/downsample im2col built by XLA in HBM (Cin is tiny, so this is cheap)
    xp = jnp.pad(x_nhwc, ((0, 0), (1, 1), (1, 1), (0, 0)))
    taps = [xp[:, dh:dh + H, dw:dw + W, :] for dh in range(3) for dw in range(3)]
    patches = jnp.concatenate(taps, axis=-1).reshape(M, 9 * Cin)       # (M, 9*Cin)

    # weights: HWIO -> (9*Cin, Cout); conv1 & downsample fused along out-channels
    w1d = jnp.concatenate([params["w1"].reshape(9 * Cin, C1),
                           params["wd"].reshape(9 * Cin, Cd)], axis=-1)  # (9Cin, 96)
    w2 = params["w2"].reshape(9 * C1, C2)                                # (576, 32)

    # ---- pass A: fused conv1 + downsample, one matmul per row block ------------
    tra = _pick_tile(M, cap=2048, min_steps=2)
    ga = M // tra
    yA, ssum_a, ssq_a = pl.pallas_call(
        convA_kernel,
        out_shape=(
            jax.ShapeDtypeStruct((M, CF), jnp.float32),
            jax.ShapeDtypeStruct((ga, 1, CF), jnp.float32),
            jax.ShapeDtypeStruct((ga, 1, CF), jnp.float32),
        ),
        grid=(ga,),
        in_specs=[
            pl.BlockSpec((tra, 9 * Cin), lambda i: (i, 0)),
            pl.BlockSpec((9 * Cin, CF), lambda i: (0, 0)),          # resident weights
        ],
        out_specs=(
            pl.BlockSpec((tra, CF), lambda i: (i, 0)),
            pl.BlockSpec((1, 1, CF), lambda i: (i, 0, 0)),          # per-step partials
            pl.BlockSpec((1, 1, CF), lambda i: (i, 0, 0)),
        ),
        compiler_params=pltpu.CompilerParams(
            dimension_semantics=("parallel",), vmem_limit_bytes=VMEM_LIMIT),
    )(patches, w1d)

    ssum_a = jnp.sum(ssum_a, axis=0)                                # (1, 96)
    ssq_a = jnp.sum(ssq_a, axis=0)
    a1, b1 = _bn_scale_shift(ssum_a[:, :C1], ssq_a[:, :C1], M,
                             params["g1"], params["be1"])
    ad, bd = _bn_scale_shift(ssum_a[:, C1:], ssq_a[:, C1:], M,
                             params["gd"], params["bed"])

    # ---- pass C: BN1+ReLU applied in-kernel, conv2 as a single K=576 matmul ----
    b_blk = _pick_batch(N, HW, row_cap=2048)
    gc = N // b_blk
    yA3 = yA.reshape(N, HW, CF)
    kernel_c = functools.partial(convC_kernel, B=b_blk, H=H, W=W, C1=C1, C2=C2)
    y2, ssum_c, ssq_c = pl.pallas_call(
        kernel_c,
        out_shape=(
            jax.ShapeDtypeStruct((N, HW, C2), jnp.float32),
            jax.ShapeDtypeStruct((gc, 1, C2), jnp.float32),
            jax.ShapeDtypeStruct((gc, 1, C2), jnp.float32),
        ),
        grid=(gc,),
        in_specs=[
            pl.BlockSpec((b_blk, HW, CF), lambda i: (i, 0, 0)),
            pl.BlockSpec((1, C1), lambda i: (0, 0)),
            pl.BlockSpec((1, C1), lambda i: (0, 0)),
            pl.BlockSpec((9 * C1, C2), lambda i: (0, 0)),           # resident weights
        ],
        out_specs=(
            pl.BlockSpec((b_blk, HW, C2), lambda i: (i, 0, 0)),
            pl.BlockSpec((1, 1, C2), lambda i: (i, 0, 0)),
            pl.BlockSpec((1, 1, C2), lambda i: (i, 0, 0)),
        ),
        scratch_shapes=[
            pltpu.VMEM((b_blk, H + 2, W + 2, C1), jnp.float32),     # zero-haloed h1
            pltpu.VMEM((b_blk * HW, 9 * C1), jnp.float32),          # K=576 patch slab
        ],
        compiler_params=pltpu.CompilerParams(
            dimension_semantics=("parallel",), vmem_limit_bytes=VMEM_LIMIT),
    )(yA3, a1, b1, w2)

    ssum_c = jnp.sum(ssum_c, axis=0)
    ssq_c = jnp.sum(ssq_c, axis=0)
    a2, b2 = _bn_scale_shift(ssum_c, ssq_c, M, params["g2"], params["be2"])

    # ---- pass D: BN2/BNd affine + residual add + ReLU, lane-dense layout -------
    yd = yA3[:, :, C1:]                                             # (N, HW, 32)
    lanes = 128 if (M * C2) % 128 == 0 else C2
    rep = lanes // C2
    rows = (M * C2) // lanes
    tr = _pick_tile(rows, cap=2048, min_steps=2)

    y2f = y2.reshape(rows, lanes)
    ydf = yd.reshape(rows, lanes)
    a2t = jnp.tile(a2, (1, rep)); b2t = jnp.tile(b2, (1, rep))
    adt = jnp.tile(ad, (1, rep)); bdt = jnp.tile(bd, (1, rep))

    out = pl.pallas_call(
        fuse_kernel,
        out_shape=jax.ShapeDtypeStruct((rows, lanes), jnp.float32),
        grid=(rows // tr,),
        in_specs=[
            pl.BlockSpec((tr, lanes), lambda i: (i, 0)),
            pl.BlockSpec((tr, lanes), lambda i: (i, 0)),
            pl.BlockSpec((1, lanes), lambda i: (0, 0)),
            pl.BlockSpec((1, lanes), lambda i: (0, 0)),
            pl.BlockSpec((1, lanes), lambda i: (0, 0)),
            pl.BlockSpec((1, lanes), lambda i: (0, 0)),
        ],
        out_specs=pl.BlockSpec((tr, lanes), lambda i: (i, 0)),
        compiler_params=pltpu.CompilerParams(dimension_semantics=("parallel",)),
    )(y2f, ydf, a2t, b2t, adt, bdt)

    return jnp.transpose(out.reshape(N, H, W, C2), (0, 3, 1, 2))    # back to NCHW


# ----------------------------- reference (pure JAX) ----------------------------

def ref_forward(x_nchw, params):
    def conv(x, w_hwio, b):
        w_oihw = jnp.transpose(w_hwio, (3, 2, 0, 1))
        y = jax.lax.conv_general_dilated(
            x, w_oihw, window_strides=(1, 1), padding=((1, 1), (1, 1)),
            dimension_numbers=("NCHW", "OIHW", "NCHW"))
        return y + b.reshape(1, -1, 1, 1)

    def bn(y, g, be):
        mean = jnp.mean(y, axis=(0, 2, 3), keepdims=True)
        var = jnp.mean((y - mean) ** 2, axis=(0, 2, 3), keepdims=True)
        return (y - mean) * jax.lax.rsqrt(var + EPS) * g.reshape(1, -1, 1, 1) \
               + be.reshape(1, -1, 1, 1)

    h = jax.nn.relu(bn(conv(x_nchw, params["w1"], params["b1"].ravel()),
                       params["g1"].ravel(), params["be1"].ravel()))
    main = bn(conv(h, params["w2"], params["b2"].ravel()),
              params["g2"].ravel(), params["be2"].ravel())
    down = bn(conv(x_nchw, params["wd"], params["bd"].ravel()),
              params["gd"].ravel(), params["bed"].ravel())
    return jax.nn.relu(main + down)


# ----------------------------- params & main -----------------------------------

def init_params(key, in_channels):
    ks = jax.random.split(key, 6)

    def w(k, kh, kw, ci, co):  # HWIO
        return (jax.random.normal(k, (kh, kw, ci, co), jnp.float32)
                * (1.0 / jnp.sqrt(kh * kw * ci)))

    return {
        # conv1: in -> 64
        "w1": w(ks[0], 3, 3, in_channels, 64),
        "b1": 0.01 * jax.random.normal(ks[1], (1, 64), jnp.float32),
        "g1": jnp.ones((1, 64), jnp.float32), "be1": jnp.zeros((1, 64), jnp.float32),
        # conv2: 64 -> 32
        "w2": w(ks[2], 3, 3, 64, 32),
        "b2": 0.01 * jax.random.normal(ks[3], (1, 32), jnp.float32),
        "g2": jnp.ones((1, 32), jnp.float32), "be2": jnp.zeros((1, 32), jnp.float32),
        # downsample: in -> 32
        "wd": w(ks[4], 3, 3, in_channels, 32),
        "bd": 0.01 * jax.random.normal(ks[5], (1, 32), jnp.float32),
        "gd": jnp.ones((1, 32), jnp.float32), "bed": jnp.zeros((1, 32), jnp.float32),
    }


if __name__ == "__main__":
    key = jax.random.PRNGKey(0)
    kx, kp = jax.random.split(key)

    N, C, H, W = 2, 4, 16, 16
    x = jax.random.normal(kx, (N, C, H, W), jnp.float32)
    params = init_params(kp, C)

    out = jax.block_until_ready(adapter_forward(x, params))
    assert out.shape == (N, 32, H, W), out.shape

    ref = jax.block_until_ready(ref_forward(x, params))
    err = float(jnp.max(jnp.abs(out - ref)))
    assert err < 5e-4, f"max abs err {err}"

    print("KERNEL_OK")
</pallas_src>

<mosaic_0001>
module attributes {stable_mosaic.version = 11 : i64} {
  func.func @convA_kernel(%arg0: i32, %arg1: memref<256x36xf32, #tpu.memory_space<vmem>>, %arg2: memref<36x96xf32, #tpu.memory_space<vmem>>, %arg3: memref<256x96xf32, #tpu.memory_space<vmem>>, %arg4: memref<1x1x96xf32, #tpu.memory_space<vmem>>, %arg5: memref<1x1x96xf32, #tpu.memory_space<vmem>>) attributes {dimension_semantics = [#tpu.dimension_semantics<parallel>], iteration_bounds = array<i64: 2>, scalar_prefetch = 0 : i64, scratch_operands = 0 : i64, tpu.core_type = #tpu.core_type<tc>, window_params = [{transform_indices = @transform_0, window_bounds = array<i64: 256, 36>}, {pipeline_mode = #tpu.pipeline_mode<synchronous>, transform_indices = @transform_1, window_bounds = array<i64: 36, 96>}, {transform_indices = @transform_2, window_bounds = array<i64: 256, 96>}, {transform_indices = @transform_3, window_bounds = array<i64: 1, 1, 96>}, {transform_indices = @transform_4, window_bounds = array<i64: 1, 1, 96>}]} {
    %c0 = arith.constant 0 : index
    %c0_0 = arith.constant 0 : index
    %0 = vector.load %arg1[%c0, %c0_0] : memref<256x36xf32, #tpu.memory_space<vmem>>, vector<256x36xf32>
    %c0_1 = arith.constant 0 : index
    %c0_2 = arith.constant 0 : index
    %1 = vector.load %arg2[%c0_1, %c0_2] : memref<36x96xf32, #tpu.memory_space<vmem>>, vector<36x96xf32>
    %cst = arith.constant dense<0.000000e+00> : vector<256x96xf32>
    %2 = tpu.matmul %0, %1, %cst {dimension_numbers = #tpu.dot_dimension_numbers<[1], [0], [0], [1], [0, 0, 1, 1], [], []>} : vector<256x36xf32>, vector<36x96xf32>, vector<256x96xf32> -> vector<256x96xf32>
    %c0_3 = arith.constant 0 : index
    %c0_4 = arith.constant 0 : index
    %3 = vector.load %arg3[%c0_3, %c0_4] : memref<256x96xf32, #tpu.memory_space<vmem>>, vector<256x96xf32>
    tpu.vector_store %arg3[%c0_3, %c0_4], %2 {strides = array<i32>} : memref<256x96xf32, #tpu.memory_space<vmem>>, vector<256x96xf32>,
    %cst_5 = arith.constant dense<0.000000e+00> : vector<96xf32>
    %4 = vector.multi_reduction <add>, %2, %cst_5 [0] : vector<256x96xf32> to vector<96xf32>
    %5 = vector.shape_cast %4 : vector<96xf32> to vector<1x96xf32>
    %c0_6 = arith.constant 0 : index
    %c0_7 = arith.constant 0 : index
    %c0_8 = arith.constant 0 : index
    %6 = vector.load %arg4[%c0_6, %c0_7, %c0_8] : memref<1x1x96xf32, #tpu.memory_space<vmem>>, vector<1x1x96xf32>
    %7 = vector.shape_cast %6 : vector<1x1x96xf32> to vector<1x96xf32>
    %8 = vector.shape_cast %5 : vector<1x96xf32> to vector<1x1x96xf32>
    tpu.vector_store %arg4[%c0_6, %c0_7, %c0_8], %8 {strides = array<i32>} : memref<1x1x96xf32, #tpu.memory_space<vmem>>, vector<1x1x96xf32>,
    %9 = arith.mulf %2, %2 : vector<256x96xf32>
    %cst_9 = arith.constant dense<0.000000e+00> : vector<96xf32>
    %10 = vector.multi_reduction <add>, %9, %cst_9 [0] : vector<256x96xf32> to vector<96xf32>
    %11 = vector.shape_cast %10 : vector<96xf32> to vector<1x96xf32>
    %c0_10 = arith.constant 0 : index
    %c0_11 = arith.constant 0 : index
    %c0_12 = arith.constant 0 : index
    %12 = vector.load %arg5[%c0_10, %c0_11, %c0_12] : memref<1x1x96xf32, #tpu.memory_space<vmem>>, vector<1x1x96xf32>
    %13 = vector.shape_cast %12 : vector<1x1x96xf32> to vector<1x96xf32>
    %14 = vector.shape_cast %11 : vector<1x96xf32> to vector<1x1x96xf32>
    tpu.vector_store %arg5[%c0_10, %c0_11, %c0_12], %14 {strides = array<i32>} : memref<1x1x96xf32, #tpu.memory_space<vmem>>, vector<1x1x96xf32>,
    return
  }
  func.func @transform_0(%arg0: i32) -> (i32, i32) {
    %c0_i32 = arith.constant 0 : i32
    %c0_i32_0 = arith.constant 0 : i32
    return %arg0, %c0_i32 : i32, i32
  }
  func.func @transform_1(%arg0: i32) -> (i32, i32) {
    %c0_i32 = arith.constant 0 : i32
    %c0_i32_0 = arith.constant 0 : i32
    %c0_i32_1 = arith.constant 0 : i32
    return %c0_i32, %c0_i32_0 : i32, i32
  }
  func.func @transform_2(%arg0: i32) -> (i32, i32) {
    %c0_i32 = arith.constant 0 : i32
    %c0_i32_0 = arith.constant 0 : i32
    return %arg0, %c0_i32 : i32, i32
  }
  func.func @transform_3(%arg0: i32) -> (i32, i32, i32) {
    %c0_i32 = arith.constant 0 : i32
    %c0_i32_0 = arith.constant 0 : i32
    %c0_i32_1 = arith.constant 0 : i32
    return %arg0, %c0_i32, %c0_i32_0 : i32, i32, i32
  }
  func.func @transform_4(%arg0: i32) -> (i32, i32, i32) {
    %c0_i32 = arith.constant 0 : i32
    %c0_i32_0 = arith.constant 0 : i32
    %c0_i32_1 = arith.constant 0 : i32
    return %arg0, %c0_i32, %c0_i32_0 : i32, i32, i32
  }
}

module attributes {stable_mosaic.version = 11 : i64} {
  func.func @convC_kernel(%arg0: i32, %arg1: memref<1x256x96xf32, #tpu.memory_space<vmem>>, %arg2: memref<1x64xf32, #tpu.memory_space<vmem>>, %arg3: memref<1x64xf32, #tpu.memory_space<vmem>>, %arg4: memref<576x32xf32, #tpu.memory_space<vmem>>, %arg5: memref<1x256x32xf32, #tpu.memory_space<vmem>>, %arg6: memref<1x1x32xf32, #tpu.memory_space<vmem>>, %arg7: memref<1x1x32xf32, #tpu.memory_space<vmem>>, %arg8: memref<1x18x18x64xf32, #tpu.memory_space<vmem>>, %arg9: memref<256x576xf32, #tpu.memory_space<vmem>>) attributes {dimension_semantics = [#tpu.dimension_semantics<parallel>], iteration_bounds = array<i64: 2>, scalar_prefetch = 0 : i64, scratch_operands = 2 : i64, tpu.core_type = #tpu.core_type<tc>, window_params = [{transform_indices = @transform_0, window_bounds = array<i64: 1, 256, 96>}, {pipeline_mode = #tpu.pipeline_mode<synchronous>, transform_indices = @transform_1, window_bounds = array<i64: 1, 64>}, {pipeline_mode = #tpu.pipeline_mode<synchronous>, transform_indices = @transform_2, window_bounds = array<i64: 1, 64>}, {pipeline_mode = #tpu.pipeline_mode<synchronous>, transform_indices = @transform_3, window_bounds = array<i64: 576, 32>}, {transform_indices = @transform_4, window_bounds = array<i64: 1, 256, 32>}, {transform_indices = @transform_5, window_bounds = array<i64: 1, 1, 32>}, {transform_indices = @transform_6, window_bounds = array<i64: 1, 1, 32>}]} {
    %c0 = arith.constant 0 : index
    %c0_0 = arith.constant 0 : index
    %0 = vector.load %arg2[%c0, %c0_0] : memref<1x64xf32, #tpu.memory_space<vmem>>, vector<1x64xf32>
    %c0_1 = arith.constant 0 : index
    %c0_2 = arith.constant 0 : index
    %1 = vector.load %arg3[%c0_1, %c0_2] : memref<1x64xf32, #tpu.memory_space<vmem>>, vector<1x64xf32>
    %cst = arith.constant 0.000000e+00 : f32
    %2 = vector.broadcast %cst : f32 to vector<1x18x18x64xf32>
    %c0_3 = arith.constant 0 : index
    %c0_4 = arith.constant 0 : index
    %c0_5 = arith.constant 0 : index
    %c0_6 = arith.constant 0 : index
    %3 = vector.load %arg8[%c0_3, %c0_4, %c0_5, %c0_6] : memref<1x18x18x64xf32, #tpu.memory_space<vmem>>, vector<1x18x18x64xf32>
    tpu.vector_store %arg8[%c0_3, %c0_4, %c0_5, %c0_6], %2 {strides = array<i32>} : memref<1x18x18x64xf32, #tpu.memory_space<vmem>>, vector<1x18x18x64xf32>,
    %c0_7 = arith.constant 0 : index
    %c0_8 = arith.constant 0 : index
    %c0_9 = arith.constant 0 : index
    %4 = vector.load %arg1[%c0_7, %c0_8, %c0_9] : memref<1x256x96xf32, #tpu.memory_space<vmem>>, vector<1x256x96xf32>
    %5 = vector.shape_cast %4 : vector<1x256x96xf32> to vector<256x96xf32>
    %6 = vector.extract_strided_slice %5 {offsets = [0, 0], sizes = [256, 64], strides = [1, 1]} : vector<256x96xf32> to vector<256x64xf32>
    %7 = vector.broadcast %0 : vector<1x64xf32> to vector<256x64xf32>
    %8 = arith.mulf %6, %7 : vector<256x64xf32>
    %9 = vector.broadcast %1 : vector<1x64xf32> to vector<256x64xf32>
    %10 = arith.addf %8, %9 : vector<256x64xf32>
    %cst_10 = arith.constant 0.000000e+00 : f32
    %11 = vector.broadcast %cst_10 : f32 to vector<256x64xf32>
    %12 = arith.maximumf %10, %11 : vector<256x64xf32>
    %13 = vector.shape_cast %12 : vector<256x64xf32> to vector<16x16x64xf32>
    %c0_11 = arith.constant 0 : index
    %c1 = arith.constant 1 : index
    %c1_12 = arith.constant 1 : index
    %c0_13 = arith.constant 0 : index
    %14 = vector.load %arg8[%c0_11, %c1, %c1_12, %c0_13] : memref<1x18x18x64xf32, #tpu.memory_space<vmem>>, vector<1x16x16x64xf32>
    %15 = vector.shape_cast %14 : vector<1x16x16x64xf32> to vector<16x16x64xf32>
    %16 = vector.shape_cast %13 : vector<16x16x64xf32> to vector<1x16x16x64xf32>
    tpu.vector_store %arg8[%c0_11, %c1, %c1_12, %c0_13], %16 {strides = array<i32>} : memref<1x18x18x64xf32, #tpu.memory_space<vmem>>, vector<1x16x16x64xf32>,
    %c0_14 = arith.constant 0 : index
    %c0_15 = arith.constant 0 : index
    %c0_16 = arith.constant 0 : index
    %c0_17 = arith.constant 0 : index
    %17 = vector.load %arg8[%c0_14, %c0_15, %c0_16, %c0_17] : memref<1x18x18x64xf32, #tpu.memory_space<vmem>>, vector<1x16x16x64xf32>
    %18 = vector.shape_cast %17 : vector<1x16x16x64xf32> to vector<16x16x64xf32>
    %19 = vector.shape_cast %18 : vector<16x16x64xf32> to vector<256x64xf32>
    %c0_18 = arith.constant 0 : index
    %c0_19 = arith.constant 0 : index
    %20 = vector.load %arg9[%c0_18, %c0_19] : memref<256x576xf32, #tpu.memory_space<vmem>>, vector<256x64xf32>
    tpu.vector_store %arg9[%c0_18, %c0_19], %19 {strides = array<i32>} : memref<256x576xf32, #tpu.memory_space<vmem>>, vector<256x64xf32>,
    %c0_20 = arith.constant 0 : index
    %c0_21 = arith.constant 0 : index
    %c1_22 = arith.constant 1 : index
    %c0_23 = arith.constant 0 : index
    %21 = vector.load %arg8[%c0_20, %c0_21, %c1_22, %c0_23] : memref<1x18x18x64xf32, #tpu.memory_space<vmem>>, vector<1x16x16x64xf32>
    %22 = vector.shape_cast %21 : vector<1x16x16x64xf32> to vector<16x16x64xf32>
    %23 = vector.shape_cast %22 : vector<16x16x64xf32> to vector<256x64xf32>
    %c0_24 = arith.constant 0 : index
    %c64 = arith.constant 64 : index
    %24 = vector.load %arg9[%c0_24, %c64] : memref<256x576xf32, #tpu.memory_space<vmem>>, vector<256x64xf32>
    tpu.vector_store %arg9[%c0_24, %c64], %23 {strides = array<i32>} : memref<256x576xf32, #tpu.memory_space<vmem>>, vector<256x64xf32>,
    %c0_25 = arith.constant 0 : index
    %c0_26 = arith.constant 0 : index
    %c2 = arith.constant 2 : index
    %c0_27 = arith.constant 0 : index
    %25 = vector.load %arg8[%c0_25, %c0_26, %c2, %c0_27] : memref<1x18x18x64xf32, #tpu.memory_space<vmem>>, vector<1x16x16x64xf32>
    %26 = vector.shape_cast %25 : vector<1x16x16x64xf32> to vector<16x16x64xf32>
    %27 = vector.shape_cast %26 : vector<16x16x64xf32> to vector<256x64xf32>
    %c0_28 = arith.constant 0 : index
    %c128 = arith.constant 128 : index
    %28 = vector.load %arg9[%c0_28, %c128] : memref<256x576xf32, #tpu.memory_space<vmem>>, vector<256x64xf32>
    tpu.vector_store %arg9[%c0_28, %c128], %27 {strides = array<i32>} : memref<256x576xf32, #tpu.memory_space<vmem>>, vector<256x64xf32>,
    %c0_29 = arith.constant 0 : index
    %c1_30 = arith.constant 1 : index
    %c0_31 = arith.constant 0 : index
    %c0_32 = arith.constant 0 : index
    %29 = vector.load %arg8[%c0_29, %c1_30, %c0_31, %c0_32] : memref<1x18x18x64xf32, #tpu.memory_space<vmem>>, vector<1x16x16x64xf32>
    %30 = vector.shape_cast %29 : vector<1x16x16x64xf32> to vector<16x16x64xf32>
    %31 = vector.shape_cast %30 : vector<16x16x64xf32> to vector<256x64xf32>
    %c0_33 = arith.constant 0 : index
    %c192 = arith.constant 192 : index
    %32 = vector.load %arg9[%c0_33, %c192] : memref<256x576xf32, #tpu.memory_space<vmem>>, vector<256x64xf32>
    tpu.vector_store %arg9[%c0_33, %c192], %31 {strides = array<i32>} : memref<256x576xf32, #tpu.memory_space<vmem>>, vector<256x64xf32>,
    %c0_34 = arith.constant 0 : index
    %c1_35 = arith.constant 1 : index
    %c1_36 = arith.constant 1 : index
    %c0_37 = arith.constant 0 : index
    %33 = vector.load %arg8[%c0_34, %c1_35, %c1_36, %c0_37] : memref<1x18x18x64xf32, #tpu.memory_space<vmem>>, vector<1x16x16x64xf32>
    %34 = vector.shape_cast %33 : vector<1x16x16x64xf32> to vector<16x16x64xf32>
    %35 = vector.shape_cast %34 : vector<16x16x64xf32> to vector<256x64xf32>
    %c0_38 = arith.constant 0 : index
    %c256 = arith.constant 256 : index
    %36 = vector.load %arg9[%c0_38, %c256] : memref<256x576xf32, #tpu.memory_space<vmem>>, vector<256x64xf32>
    tpu.vector_store %arg9[%c0_38, %c256], %35 {strides = array<i32>} : memref<256x576xf32, #tpu.memory_space<vmem>>, vector<256x64xf32>,
    %c0_39 = arith.constant 0 : index
    %c1_40 = arith.constant 1 : index
    %c2_41 = arith.constant 2 : index
    %c0_42 = arith.constant 0 : index
    %37 = vector.load %arg8[%c0_39, %c1_40, %c2_41, %c0_42] : memref<1x18x18x64xf32, #tpu.memory_space<vmem>>, vector<1x16x16x64xf32>
    %38 = vector.shape_cast %37 : vector<1x16x16x64xf32> to vector<16x16x64xf32>
    %39 = vector.shape_cast %38 : vector<16x16x64xf32> to vector<256x64xf32>
    %c0_43 = arith.constant 0 : index
    %c320 = arith.constant 320 : index
    %40 = vector.load %arg9[%c0_43, %c320] : memref<256x576xf32, #tpu.memory_space<vmem>>, vector<256x64xf32>
    tpu.vector_store %arg9[%c0_43, %c320], %39 {strides = array<i32>} : memref<256x576xf32, #tpu.memory_space<vmem>>, vector<256x64xf32>,
    %c0_44 = arith.constant 0 : index
    %c2_45 = arith.constant 2 : index
    %c0_46 = arith.constant 0 : index
    %c0_47 = arith.constant 0 : index
    %41 = vector.load %arg8[%c0_44, %c2_45, %c0_46, %c0_47] : memref<1x18x18x64xf32, #tpu.memory_space<vmem>>, vector<1x16x16x64xf32>
    %42 = vector.shape_cast %41 : vector<1x16x16x64xf32> to vector<16x16x64xf32>
    %43 = vector.shape_cast %42 : vector<16x16x64xf32> to vector<256x64xf32>
    %c0_48 = arith.constant 0 : index
    %c384 = arith.constant 384 : index
    %44 = vector.load %arg9[%c0_48, %c384] : memref<256x576xf32, #tpu.memory_space<vmem>>, vector<256x64xf32>
    tpu.vector_store %arg9[%c0_48, %c384], %43 {strides = array<i32>} : memref<256x576xf32, #tpu.memory_space<vmem>>, vector<256x64xf32>,
    %c0_49 = arith.constant 0 : index
    %c2_50 = arith.constant 2 : index
    %c1_51 = arith.constant 1 : index
    %c0_52 = arith.constant 0 : index
    %45 = vector.load %arg8[%c0_49, %c2_50, %c1_51, %c0_52] : memref<1x18x18x64xf32, #tpu.memory_space<vmem>>, vector<1x16x16x64xf32>
    %46 = vector.shape_cast %45 : vector<1x16x16x64xf32> to vector<16x16x64xf32>
    %47 = vector.shape_cast %46 : vector<16x16x64xf32> to vector<256x64xf32>
    %c0_53 = arith.constant 0 : index
    %c448 = arith.constant 448 : index
    %48 = vector.load %arg9[%c0_53, %c448] : memref<256x576xf32, #tpu.memory_space<vmem>>, vector<256x64xf32>
    tpu.vector_store %arg9[%c0_53, %c448], %47 {strides = array<i32>} : memref<256x576xf32, #tpu.memory_space<vmem>>, vector<256x64xf32>,
    %c0_54 = arith.constant 0 : index
    %c2_55 = arith.constant 2 : index
    %c2_56 = arith.constant 2 : index
    %c0_57 = arith.constant 0 : index
    %49 = vector.load %arg8[%c0_54, %c2_55, %c2_56, %c0_57] : memref<1x18x18x64xf32, #tpu.memory_space<vmem>>, vector<1x16x16x64xf32>
    %50 = vector.shape_cast %49 : vector<1x16x16x64xf32> to vector<16x16x64xf32>
    %51 = vector.shape_cast %50 : vector<16x16x64xf32> to vector<256x64xf32>
    %c0_58 = arith.constant 0 : index
    %c512 = arith.constant 512 : index
    %52 = vector.load %arg9[%c0_58, %c512] : memref<256x576xf32, #tpu.memory_space<vmem>>, vector<256x64xf32>
    tpu.vector_store %arg9[%c0_58, %c512], %51 {strides = array<i32>} : memref<256x576xf32, #tpu.memory_space<vmem>>, vector<256x64xf32>,
    %c0_59 = arith.constant 0 : index
    %c0_60 = arith.constant 0 : index
    %53 = vector.load %arg9[%c0_59, %c0_60] : memref<256x576xf32, #tpu.memory_space<vmem>>, vector<256x576xf32>
    %c0_61 = arith.constant 0 : index
    %c0_62 = arith.constant 0 : index
    %54 = vector.load %arg4[%c0_61, %c0_62] : memref<576x32xf32, #tpu.memory_space<vmem>>, vector<576x32xf32>
    %cst_63 = arith.constant dense<0.000000e+00> : vector<256x32xf32>
    %55 = tpu.matmul %53, %54, %cst_63 {dimension_numbers = #tpu.dot_dimension_numbers<[1], [0], [0], [1], [0, 0, 1, 1], [], []>} : vector<256x576xf32>, vector<576x32xf32>, vector<256x32xf32> -> vector<256x32xf32>
    %56 = vector.shape_cast %55 : vector<256x32xf32> to vector<1x256x32xf32>
    %c0_64 = arith.constant 0 : index
    %c0_65 = arith.constant 0 : index
    %c0_66 = arith.constant 0 : index
    %57 = vector.load %arg5[%c0_64, %c0_65, %c0_66] : memref<1x256x32xf32, #tpu.memory_space<vmem>>, vector<1x256x32xf32>
    tpu.vector_store %arg5[%c0_64, %c0_65, %c0_66], %56 {strides = array<i32>} : memref<1x256x32xf32, #tpu.memory_space<vmem>>, vector<1x256x32xf32>,
    %cst_67 = arith.constant dense<0.000000e+00> : vector<32xf32>
    %58 = vector.multi_reduction <add>, %55, %cst_67 [0] : vector<256x32xf32> to vector<32xf32>
    %59 = vector.shape_cast %58 : vector<32xf32> to vector<1x32xf32>
    %c0_68 = arith.constant 0 : index
    %c0_69 = arith.constant 0 : index
    %c0_70 = arith.constant 0 : index
    %60 = vector.load %arg6[%c0_68, %c0_69, %c0_70] : memref<1x1x32xf32, #tpu.memory_space<vmem>>, vector<1x1x32xf32>
    %61 = vector.shape_cast %60 : vector<1x1x32xf32> to vector<1x32xf32>
    %62 = vector.shape_cast %59 : vector<1x32xf32> to vector<1x1x32xf32>
    tpu.vector_store %arg6[%c0_68, %c0_69, %c0_70], %62 {strides = array<i32>} : memref<1x1x32xf32, #tpu.memory_space<vmem>>, vector<1x1x32xf32>,
    %63 = arith.mulf %55, %55 : vector<256x32xf32>
    %cst_71 = arith.constant dense<0.000000e+00> : vector<32xf32>
    %64 = vector.multi_reduction <add>, %63, %cst_71 [0] : vector<256x32xf32> to vector<32xf32>
    %65 = vector.shape_cast %64 : vector<32xf32> to vector<1x32xf32>
    %c0_72 = arith.constant 0 : index
    %c0_73 = arith.constant 0 : index
    %c0_74 = arith.constant 0 : index
    %66 = vector.load %arg7[%c0_72, %c0_73, %c0_74] : memref<1x1x32xf32, #tpu.memory_space<vmem>>, vector<1x1x32xf32>
    %67 = vector.shape_cast %66 : vector<1x1x32xf32> to vector<1x32xf32>
    %68 = vector.shape_cast %65 : vector<1x32xf32> to vector<1x1x32xf32>
    tpu.vector_store %arg7[%c0_72, %c0_73, %c0_74], %68 {strides = array<i32>} : memref<1x1x32xf32, #tpu.memory_space<vmem>>, vector<1x1x32xf32>,
    return
  }
  func.func @transform_0(%arg0: i32) -> (i32, i32, i32) {
    %c0_i32 = arith.constant 0 : i32
    %c0_i32_0 = arith.constant 0 : i32
    %c0_i32_1 = arith.constant 0 : i32
    return %arg0, %c0_i32, %c0_i32_0 : i32, i32, i32
  }
  func.func @transform_1(%arg0: i32) -> (i32, i32) {
    %c0_i32 = arith.constant 0 : i32
    %c0_i32_0 = arith.constant 0 : i32
    %c0_i32_1 = arith.constant 0 : i32
    return %c0_i32, %c0_i32_0 : i32, i32
  }
  func.func @transform_2(%arg0: i32) -> (i32, i32) {
    %c0_i32 = arith.constant 0 : i32
    %c0_i32_0 = arith.constant 0 : i32
    %c0_i32_1 = arith.constant 0 : i32
    return %c0_i32, %c0_i32_0 : i32, i32
  }
  func.func @transform_3(%arg0: i32) -> (i32, i32) {
    %c0_i32 = arith.constant 0 : i32
    %c0_i32_0 = arith.constant 0 : i32
    %c0_i32_1 = arith.constant 0 : i32
    return %c0_i32, %c0_i32_0 : i32, i32
  }
  func.func @transform_4(%arg0: i32) -> (i32, i32, i32) {
    %c0_i32 = arith.constant 0 : i32
    %c0_i32_0 = arith.constant 0 : i32
    %c0_i32_1 = arith.constant 0 : i32
    return %arg0, %c0_i32, %c0_i32_0 : i32, i32, i32
  }
  func.func @transform_5(%arg0: i32) -> (i32, i32, i32) {
    %c0_i32 = arith.constant 0 : i32
    %c0_i32_0 = arith.constant 0 : i32
    %c0_i32_1 = arith.constant 0 : i32
    return %arg0, %c0_i32, %c0_i32_0 : i32, i32, i32
  }
  func.func @transform_6(%arg0: i32) -> (i32, i32, i32) {
    %c0_i32 = arith.constant 0 : i32
    %c0_i32_0 = arith.constant 0 : i32
    %c0_i32_1 = arith.constant 0 : i32
    return %arg0, %c0_i32, %c0_i32_0 : i32, i32, i32
  }
}

module attributes {stable_mosaic.version = 11 : i64} {
  func.func @fuse_kernel(%arg0: i32, %arg1: memref<64x128xf32, #tpu.memory_space<vmem>>, %arg2: memref<64x128xf32, #tpu.memory_space<vmem>>, %arg3: memref<1x128xf32, #tpu.memory_space<vmem>>, %arg4: memref<1x128xf32, #tpu.memory_space<vmem>>, %arg5: memref<1x128xf32, #tpu.memory_space<vmem>>, %arg6: memref<1x128xf32, #tpu.memory_space<vmem>>, %arg7: memref<64x128xf32, #tpu.memory_space<vmem>>) attributes {dimension_semantics = [#tpu.dimension_semantics<parallel>], iteration_bounds = array<i64: 2>, scalar_prefetch = 0 : i64, scratch_operands = 0 : i64, tpu.core_type = #tpu.core_type<tc>, window_params = [{transform_indices = @transform_0, window_bounds = array<i64: 64, 128>}, {transform_indices = @transform_1, window_bounds = array<i64: 64, 128>}, {pipeline_mode = #tpu.pipeline_mode<synchronous>, transform_indices = @transform_2, window_bounds = array<i64: 1, 128>}, {pipeline_mode = #tpu.pipeline_mode<synchronous>, transform_indices = @transform_3, window_bounds = array<i64: 1, 128>}, {pipeline_mode = #tpu.pipeline_mode<synchronous>, transform_indices = @transform_4, window_bounds = array<i64: 1, 128>}, {pipeline_mode = #tpu.pipeline_mode<synchronous>, transform_indices = @transform_5, window_bounds = array<i64: 1, 128>}, {transform_indices = @transform_6, window_bounds = array<i64: 64, 128>}]} {
    %c0 = arith.constant 0 : index
    %c0_0 = arith.constant 0 : index
    %0 = vector.load %arg1[%c0, %c0_0] : memref<64x128xf32, #tpu.memory_space<vmem>>, vector<64x128xf32>
    %c0_1 = arith.constant 0 : index
    %c0_2 = arith.constant 0 : index
    %1 = vector.load %arg3[%c0_1, %c0_2] : memref<1x128xf32, #tpu.memory_space<vmem>>, vector<1x128xf32>
    %2 = vector.broadcast %1 : vector<1x128xf32> to vector<64x128xf32>
    %3 = arith.mulf %0, %2 : vector<64x128xf32>
    %c0_3 = arith.constant 0 : index
    %c0_4 = arith.constant 0 : index
    %4 = vector.load %arg4[%c0_3, %c0_4] : memref<1x128xf32, #tpu.memory_space<vmem>>, vector<1x128xf32>
    %5 = vector.broadcast %4 : vector<1x128xf32> to vector<64x128xf32>
    %6 = arith.addf %3, %5 : vector<64x128xf32>
    %c0_5 = arith.constant 0 : index
    %c0_6 = arith.constant 0 : index
    %7 = vector.load %arg2[%c0_5, %c0_6] : memref<64x128xf32, #tpu.memory_space<vmem>>, vector<64x128xf32>
    %c0_7 = arith.constant 0 : index
    %c0_8 = arith.constant 0 : index
    %8 = vector.load %arg5[%c0_7, %c0_8] : memref<1x128xf32, #tpu.memory_space<vmem>>, vector<1x128xf32>
    %9 = vector.broadcast %8 : vector<1x128xf32> to vector<64x128xf32>
    %10 = arith.mulf %7, %9 : vector<64x128xf32>
    %11 = arith.addf %6, %10 : vector<64x128xf32>
    %c0_9 = arith.constant 0 : index
    %c0_10 = arith.constant 0 : index
    %12 = vector.load %arg6[%c0_9, %c0_10] : memref<1x128xf32, #tpu.memory_space<vmem>>, vector<1x128xf32>
    %13 = vector.broadcast %12 : vector<1x128xf32> to vector<64x128xf32>
    %14 = arith.addf %11, %13 : vector<64x128xf32>
    %cst = arith.constant 0.000000e+00 : f32
    %15 = vector.broadcast %cst : f32 to vector<64x128xf32>
    %16 = arith.maximumf %14, %15 : vector<64x128xf32>
    %c0_11 = arith.constant 0 : index
    %c0_12 = arith.constant 0 : index
    %17 = vector.load %arg7[%c0_11, %c0_12] : memref<64x128xf32, #tpu.memory_space<vmem>>, vector<64x128xf32>
    tpu.vector_store %arg7[%c0_11, %c0_12], %16 {strides = array<i32>} : memref<64x128xf32, #tpu.memory_space<vmem>>, vector<64x128xf32>,
    return
  }
  func.func @transform_0(%arg0: i32) -> (i32, i32) {
    %c0_i32 = arith.constant 0 : i32
    %c0_i32_0 = arith.constant 0 : i32
    return %arg0, %c0_i32 : i32, i32
  }
  func.func @transform_1(%arg0: i32) -> (i32, i32) {
    %c0_i32 = arith.constant 0 : i32
    %c0_i32_0 = arith.constant 0 : i32
    return %arg0, %c0_i32 : i32, i32
  }
  func.func @transform_2(%arg0: i32) -> (i32, i32) {
    %c0_i32 = arith.constant 0 : i32
    %c0_i32_0 = arith.constant 0 : i32
    %c0_i32_1 = arith.constant 0 : i32
    return %c0_i32, %c0_i32_0 : i32, i32
  }
  func.func @transform_3(%arg0: i32) -> (i32, i32) {
    %c0_i32 = arith.constant 0 : i32
    %c0_i32_0 = arith.constant 0 : i32
    %c0_i32_1 = arith.constant 0 : i32
    return %c0_i32, %c0_i32_0 : i32, i32
  }
  func.func @transform_4(%arg0: i32) -> (i32, i32) {
    %c0_i32 = arith.constant 0 : i32
    %c0_i32_0 = arith.constant 0 : i32
    %c0_i32_1 = arith.constant 0 : i32
    return %c0_i32, %c0_i32_0 : i32, i32
  }
  func.func @transform_5(%arg0: i32) -> (i32, i32) {
    %c0_i32 = arith.constant 0 : i32
    %c0_i32_0 = arith.constant 0 : i32
    %c0_i32_1 = arith.constant 0 : i32
    return %c0_i32, %c0_i32_0 : i32, i32
  }
  func.func @transform_6(%arg0: i32) -> (i32, i32) {
    %c0_i32 = arith.constant 0 : i32
    %c0_i32_0 = arith.constant 0 : i32
    return %arg0, %c0_i32 : i32, i32
  }
}

</mosaic_0001>

<llo_original>
// kernel: adapter_forward.3
$region0: #{adapter_forward.3}
  #allocation0 [shape = 'u32[]', space=smem, size = 0x4, offset = 0x4, fixed_abs, tag = 'smem constant byte address 0x4 - core index']
  #allocation1 [shape = 'u32[144,128]{1,0:T(1,128)}', space=vmem, size = 0x12000, scoped, tag = 'internal scratch']
  %s0 = inlined_call_operand.vmem [shape: f32[512,36], index: 0, kind: input, shape index: {}]
  %s1 = inlined_call_operand.vmem [shape: f32[36,96], index: 1, kind: input, shape index: {}]
  %s2 = inlined_call_operand.vmem [shape: f32[512,96], index: 2, kind: output, shape index: {0}]
  %s3 = inlined_call_operand.vmem [shape: f32[2,1,96], index: 3, kind: output, shape index: {1}]
  %s4 = inlined_call_operand.vmem [shape: f32[2,1,96], index: 4, kind: output, shape index: {2}]
  %5 = xla_tuple %s2, %s3, %s4
  %s6 = sld [smem:[#allocation0]]
  $region57: #{adapter_forward.3} parent=0
    _
  %s8 = ssub.s32 1, %s6
  %s9 = scalar_select 0, %s8, %s6
  loop: start=0, step=1, limit=4
  $region2: #{adapter_forward.3} parent=0 // loop_pre_header
    _
  $region3: #{adapter_forward.3} parent=0 // loop_header
    %s11 = sphi 0, %s15
    %p12 = scmp.ge.s32.totalorder %s11, 4
    %s21 = sphi 0, %s23
    %s24 = sphi 0, %s21
    %s25 = sphi 0, %s24
    %s41 = sphi 0, %s25
    %s45 = sphi 0, %s45
    %s47 = sphi 0, %s45
    %s48 = sphi 0, %s47
    %s62 = sphi 0, %s48
    %s68 = sphi 0, %s70
    %s71 = sphi 0, %s68
    %s72 = sphi 0, %s71
    %s88 = sphi 0, %s72
    %s94 = sphi 0, %s96
    %s97 = sphi 0, %s94
    %s98 = sphi 0, %s97
    %s114 = sphi 0, %s98
    %s120 = sphi 0, %s122
    %s123 = sphi 0, %s120
    %s124 = sphi 0, %s123
    %s140 = sphi 0, %s124
  $region4: #{adapter_forward.3} parent=0 // loop_header_branch
    %14 = sbr.rel (%p12) target = $region8
  $region5: #{adapter_forward.3} parent=0 // loop_body
    %s16 = ssub.s32 %s11, 1
    %s17 = ssub.s32 %s11, 2
    %s18 = sadd.s32 %s11, 1
    %s19 = ssub.s32 %s11, %s18
    %p20 = scmp.eq.s32.totalorder %s19, 0
    %s22 = sadd.s32 %s21, 1
    %s23 = scalar_select %p20, %s21, %s22
    %p26 = pneg %p20
    %p27 = scmp.eq.s32.totalorder %s11, 1
    %p28 = por %p26, %p27
    %p29 = scmp.ne.s32.totalorder %s21, %s24
    %p30 = scmp.eq.s32.totalorder %s11, 0
    %p31 = por %p29, %p30
    %p32 = scmp.ne.s32.totalorder %s21, %s24
    %p33 = scmp.eq.s32.totalorder %s16, 1
    %p34 = por %p32, %p33
    %p35 = scmp.ne.s32.totalorder %s24, %s25
    %p36 = scmp.eq.s32.totalorder %s16, 0
    %p37 = por %p35, %p36
    %p38 = scmp.ne.s32.totalorder %s24, %s25
    %p39 = scmp.eq.s32.totalorder %s17, 1
    %p40 = por %p38, %p39
    %p42 = scmp.ne.s32.totalorder %s25, %s41
    %p43 = scmp.eq.s32.totalorder %s17, 0
    %p44 = por %p42, %p43
    %s46 = sadd.s32 %s45, 1
    %p49 = scmp.eq.s32.totalorder %s11, 1
    %p50 = scmp.ne.s32.totalorder %s45, %s47
    %p51 = scmp.eq.s32.totalorder %s11, 0
    %p52 = por %p50, %p51
    %p53 = scmp.ne.s32.totalorder %s45, %s47
    %p54 = scmp.eq.s32.totalorder %s16, 1
    %p55 = por %p53, %p54
    %p56 = scmp.ne.s32.totalorder %s47, %s48
    %p57 = scmp.eq.s32.totalorder %s16, 0
    %p58 = por %p56, %p57
    %p59 = scmp.ne.s32.totalorder %s47, %s48
    %p60 = scmp.eq.s32.totalorder %s17, 1
    %p61 = por %p59, %p60
    %p63 = scmp.ne.s32.totalorder %s48, %s62
    %p64 = scmp.eq.s32.totalorder %s17, 0
    %p65 = por %p63, %p64
    %s66 = ssub.s32 %s11, %s18
    %p67 = scmp.eq.s32.totalorder %s66, 0
    %s69 = sadd.s32 %s68, 1
    %s70 = scalar_select %p67, %s68, %s69
    %p73 = pneg %p67
    %p74 = scmp.eq.s32.totalorder %s11, 1
    %p75 = por %p73, %p74
    %p76 = scmp.ne.s32.totalorder %s68, %s71
    %p77 = scmp.eq.s32.totalorder %s11, 0
    %p78 = por %p76, %p77
    %p79 = scmp.ne.s32.totalorder %s68, %s71
    %p80 = scmp.eq.s32.totalorder %s16, 1
    %p81 = por %p79, %p80
    %p82 = scmp.ne.s32.totalorder %s71, %s72
    %p83 = scmp.eq.s32.totalorder %s16, 0
    %p84 = por %p82, %p83
    %p85 = scmp.ne.s32.totalorder %s71, %s72
    %p86 = scmp.eq.s32.totalorder %s17, 1
    %p87 = por %p85, %p86
    %p89 = scmp.ne.s32.totalorder %s72, %s88
    %p90 = scmp.eq.s32.totalorder %s17, 0
    %p91 = por %p89, %p90
    %s92 = ssub.s32 %s11, %s18
    %p93 = scmp.eq.s32.totalorder %s92, 0
    %s95 = sadd.s32 %s94, 1
    %s96 = scalar_select %p93, %s94, %s95
    %p99 = pneg %p93
    %p100 = scmp.eq.s32.totalorder %s11, 1
    %p101 = por %p99, %p100
    %p102 = scmp.ne.s32.totalorder %s94, %s97
    %p103 = scmp.eq.s32.totalorder %s11, 0
    %p104 = por %p102, %p103
    %p105 = scmp.ne.s32.totalorder %s94, %s97
    %p106 = scmp.eq.s32.totalorder %s16, 1
    %p107 = por %p105, %p106
    %p108 = scmp.ne.s32.totalorder %s97, %s98
    %p109 = scmp.eq.s32.totalorder %s16, 0
    %p110 = por %p108, %p109
    %p111 = scmp.ne.s32.totalorder %s97, %s98
    %p112 = scmp.eq.s32.totalorder %s17, 1
    %p113 = por %p111, %p112
    %p115 = scmp.ne.s32.totalorder %s98, %s114
    %p116 = scmp.eq.s32.totalorder %s17, 0
    %p117 = por %p115, %p116
    %s118 = ssub.s32 %s11, %s18
    %p119 = scmp.eq.s32.totalorder %s118, 0
    %s121 = sadd.s32 %s120, 1
    %s122 = scalar_select %p119, %s120, %s121
    %p125 = pneg %p119
    %p126 = scmp.eq.s32.totalorder %s11, 1
    %p127 = por %p125, %p126
    %p128 = scmp.ne.s32.totalorder %s120, %s123
    %p129 = scmp.eq.s32.totalorder %s11, 0
    %p130 = por %p128, %p129
    %p131 = scmp.ne.s32.totalorder %s120, %s123
    %p132 = scmp.eq.s32.totalorder %s16, 1
    %p133 = por %p131, %p132
    %p134 = scmp.ne.s32.totalorder %s123, %s124
    %p135 = scmp.eq.s32.totalorder %s16, 0
    %p136 = por %p134, %p135
    %p137 = scmp.ne.s32.totalorder %s123, %s124
    %p138 = scmp.eq.s32.totalorder %s17, 1
    %p139 = por %p137, %p138
    %p141 = scmp.ne.s32.totalorder %s124, %s140
    %p142 = scmp.eq.s32.totalorder %s17, 0
    %p143 = por %p141, %p142
    %p144 = scmp.le.s32.totalorder 1, %s11
    %p145 = scmp.lt.s32.totalorder %s11, 3
    %p146 = pnand %p144, %p145
    %p147 = pneg %p146
    // Predicated region
    $region9: #{adapter_forward.3} parent=5 // pred_check
      _
    $region10: #{adapter_forward.3} parent=5 // pred_check_branch
      %149 = sbr.rel (%p146) target = $region12
    $region11: #{adapter_forward.3} parent=5 // pred_region
      %s150 = ssub.s32 %s11, 1
      // Predicated region
      $region13: #{adapter_forward.3} parent=11 // pred_check
        %p151 = pneg %p58
      $region14: #{adapter_forward.3} parent=11 // pred_check_branch
        %153 = sbr.rel (%p151) target = $region16
      $region15: #{adapter_forward.3} parent=11 // pred_region
        _
      $region16: #{adapter_forward.3} parent=11 // pred_fallthru
        _
    $region12: #{adapter_forward.3} parent=5 // pred_fallthru
      _
    %p154 = scmp.lt.s32.totalorder %s11, 2
    // Predicated region
    $region17: #{adapter_forward.3} parent=5 // pred_check
      %p155 = pneg %p154
    $region18: #{adapter_forward.3} parent=5 // pred_check_branch
      %157 = sbr.rel (%p155) target = $region20
    $region19: #{adapter_forward.3} parent=5 // pred_region
      // Predicated region
      $region21: #{adapter_forward.3} parent=19 // pred_check
        %p158 = pneg %p31
      $region22: #{adapter_forward.3} parent=19 // pred_check_branch
        %160 = sbr.rel (%p158) target = $region24
      $region23: #{adapter_forward.3} parent=19 // pred_region
        %s161 = smul.u32 32, %s11
        %p162 = scmp.lt.s32.totalorder %s161, 63
        %s163 = scalar_select %p162, %s161, 63
        %s164 = smul.addr %s163, 8
        %s165 = scalar_lea.vmem %s0, %s164
        %s166 = smul.u32 32, %s11
      $region24: #{adapter_forward.3} parent=19 // pred_fallthru
        _
    $region20: #{adapter_forward.3} parent=5 // pred_fallthru
      _
    %p167 = scmp.le.s32.totalorder 1, %s11
    %p168 = scmp.lt.s32.totalorder %s11, 3
    %p169 = pnand %p167, %p168
    %p170 = pneg %p169
    // Predicated region
    $region25: #{adapter_forward.3} parent=5 // pred_check
      _
    $region26: #{adapter_forward.3} parent=5 // pred_check_branch
      %172 = sbr.rel (%p169) target = $region28
    $region27: #{adapter_forward.3} parent=5 // pred_region
      %s173 = ssub.s32 %s11, 1
      %s174 = smul.u32 32, %s16
      %p175 = scmp.lt.s32.totalorder %s174, 63
      %s176 = scalar_select %p175, %s174, 63
      %s177 = smul.addr %s176, 8
      %s178 = scalar_lea.vmem %s0, %s177
      %p179 = pneg %p37
      %p180 = pneg %p34
      %p181 = pneg %p58
      %p182 = pneg %p55
      %p183 = pneg %p84
      %p184 = pneg %p81
      %s185 = smul.u32 32, %s16
      %p186 = scmp.lt.s32.totalorder %s185, 63
      %s187 = scalar_select %p186, %s185, 63
      %s188 = smul.addr %s187, 8
      %s189 = scalar_lea.vmem %s2, %s188
      %p190 = pneg %p110
      %p191 = pneg %p107
      %p192 = scmp.lt.s32.totalorder %s16, 1
      %s193 = scalar_select %p192, %s16, 1
      %s194 = scalar_lea.vmem %s3, %s193
      %p195 = pneg %p136
      %p196 = pneg %p133
      %p197 = scmp.lt.s32.totalorder %s16, 1
      %s198 = scalar_select %p197, %s16, 1
      %s199 = scalar_lea.vmem %s4, %s198
      %s200 = smul.u32 32, %s16
      %p201 = scmp.lt.s32.totalorder %s200, 63
      %s202 = scalar_select %p201, %s200, 63
      %s203 = smul.addr %s202, 8
      %s204 = scalar_lea.vmem %s0, %s203
      %s205 = smul.u32 32, %s16
      %s206 = smul.u32 32, %s16
      %p207 = scmp.lt.s32.totalorder %s206, 63
      %s208 = scalar_select %p207, %s206, 63
      %s209 = smul.addr %s208, 8
      %s210 = scalar_lea.vmem %s2, %s209
      %s211 = smul.u32 32, %s16
      %p212 = scmp.lt.s32.totalorder %s16, 1
      %s213 = scalar_select %p212, %s16, 1
      %s214 = scalar_lea.vmem %s3, %s213
      %p215 = scmp.lt.s32.totalorder %s16, 1
      %s216 = scalar_select %p215, %s16, 1
      %s217 = scalar_lea.vmem %s4, %s216
      %v218 = vld [vmem:[%s204] sm:$0xff]
      %v219 = vld [vmem:[%s204 + $0x8] sm:$0xff]
      %v220 = vld [vmem:[%s204 + $0x10] sm:$0xff]
      %v221 = vld [vmem:[%s204 + $0x18] sm:$0xff]
      %v222 = vld [vmem:[%s204 + $0x20] sm:$0xff]
      %v223 = vld [vmem:[%s204 + $0x28] sm:$0xff]
      %v224 = vld [vmem:[%s204 + $0x30] sm:$0xff]
      %v225 = vld [vmem:[%s204 + $0x38] sm:$0xff]
      %v226 = vld [vmem:[%s204 + $0x40] sm:$0xff]
      %v227 = vld [vmem:[%s204 + $0x48] sm:$0xff]
      %v228 = vld [vmem:[%s204 + $0x50] sm:$0xff]
      %v229 = vld [vmem:[%s204 + $0x58] sm:$0xff]
      %v230 = vld [vmem:[%s204 + $0x60] sm:$0xff]
      %v231 = vld [vmem:[%s204 + $0x68] sm:$0xff]
      %v232 = vld [vmem:[%s204 + $0x70] sm:$0xff]
      %v233 = vld [vmem:[%s204 + $0x78] sm:$0xff]
      %v234 = vld [vmem:[%s204 + $0x80] sm:$0xff]
      %v235 = vld [vmem:[%s204 + $0x88] sm:$0xff]
      %v236 = vld [vmem:[%s204 + $0x90] sm:$0xff]
      %v237 = vld [vmem:[%s204 + $0x98] sm:$0xff]
      %v238 = vld [vmem:[%s204 + $0xa0] sm:$0xff]
      %v239 = vld [vmem:[%s204 + $0xa8] sm:$0xff]
      %v240 = vld [vmem:[%s204 + $0xb0] sm:$0xff]
      %v241 = vld [vmem:[%s204 + $0xb8] sm:$0xff]
      %v242 = vld [vmem:[%s204 + $0xc0] sm:$0xff]
      %v243 = vld [vmem:[%s204 + $0xc8] sm:$0xff]
      %v244 = vld [vmem:[%s204 + $0xd0] sm:$0xff]
      %v245 = vld [vmem:[%s204 + $0xd8] sm:$0xff]
      %v246 = vld [vmem:[%s204 + $0xe0] sm:$0xff]
      %v247 = vld [vmem:[%s204 + $0xe8] sm:$0xff]
      %v248 = vld [vmem:[%s204 + $0xf0] sm:$0xff]
      %v249 = vld [vmem:[%s204 + $0xf8] sm:$0xff]
      %v250 = vld [vmem:[%s1] sm:$0xff]
      %v251 = vld [vmem:[%s1 + $0x8] sm:$0xff]
      %v252 = vld [vmem:[%s1 + $0x10] sm:$0xff]
      %v253 = vld [vmem:[%s1 + $0x18] sm:$0xff]
      %v254 = vld [vmem:[%s1 + $0x20] sm:$0xf]
      %vm255 = vcmask 293888
      %v257 = vsel %vm255, %v218, 0
      %v260 = vsel %vm255, %v219, 0
      %v263 = vsel %vm255, %v220, 0
      %v266 = vsel %vm255, %v221, 0
      %v269 = vsel %vm255, %v222, 0
      %v272 = vsel %vm255, %v223, 0
      %v275 = vsel %vm255, %v224, 0
      %v278 = vsel %vm255, %v225, 0
      %v281 = vsel %vm255, %v226, 0
      %v284 = vsel %vm255, %v227, 0
      %v287 = vsel %vm255, %v228, 0
      %v290 = vsel %vm255, %v229, 0
      %v293 = vsel %vm255, %v230, 0
      %v296 = vsel %vm255, %v231, 0
      %v299 = vsel %vm255, %v232, 0
      %v302 = vsel %vm255, %v233, 0
      %v305 = vsel %vm255, %v234, 0
      %v308 = vsel %vm255, %v235, 0
      %v311 = vsel %vm255, %v236, 0
      %v314 = vsel %vm255, %v237, 0
      %v317 = vsel %vm255, %v238, 0
      %v320 = vsel %vm255, %v239, 0
      %v323 = vsel %vm255, %v240, 0
      %v326 = vsel %vm255, %v241, 0
      %v329 = vsel %vm255, %v242, 0
      %v332 = vsel %vm255, %v243, 0
      %v335 = vsel %vm255, %v244, 0
      %v338 = vsel %vm255, %v245, 0
      %v341 = vsel %vm255, %v246, 0
      %v344 = vsel %vm255, %v247, 0
      %v347 = vsel %vm255, %v248, 0
      %v350 = vsel %vm255, %v249, 0
      %vm352 = vcmask 1043456
      %v354 = vsel %vm352, %v254, 0
      %356 = vmatprep.subr.mxu0 0.0
      %357 = vmatpush1.msra.mxu0 %v250
      %358 = vmatprep.subr.mxu0 0.0
      %359 = vmatpush1.msra.mxu0 %v251
      %360 = vmatprep.subr.mxu0 0.0
      %361 = vmatpush1.msra.mxu0 %v252
      %362 = vmatprep.subr.mxu0 0.0
      %363 = vmatpush1.msra.mxu0 %v253
      %364 = vmatprep.subr.mxu0 0.0
      %365 = vmatpush1.msra.mxu0 %v354
      %366 = vmatprep.subr.mxu0 0.0
      %367 = vmatpush1.msra.mxu0 0.0
      %368 = vmatprep.subr.mxu0 0.0
      %369 = vmatpush1.msra.mxu0 0.0
      %370 = vmatprep.subr.mxu0 0.0
      %371 = vmatpush1.msra.mxu0 0.0
      %372 = vmatprep.subr.mxu0 0.0
      %373 = vmatpush1.msra.mxu0 0.0
      %374 = vmatprep.subr.mxu0 0.0
      %375 = vmatpush1.msra.mxu0 0.0
      %376 = vmatprep.subr.mxu0 0.0
      %377 = vmatpush1.msra.mxu0 0.0
      %378 = vmatprep.subr.mxu0 0.0
      %379 = vmatpush1.msra.mxu0 0.0
      %380 = vmatprep.subr.mxu0 0.0
      %381 = vmatpush1.msra.mxu0 0.0
      %382 = vmatprep.subr.mxu0 0.0
      %383 = vmatpush1.msra.mxu0 0.0
      %384 = vmatprep.subr.mxu0 0.0
      %385 = vmatpush1.msra.mxu0 0.0
      %386 = vmatprep.subr.mxu0 0.0
      %387 = vmatpush1.msra.mxu0 0.0
      %388 = vmatprep.subr.mxu0 0.0
      %389 = vmatpush1.msra.mxu0 0.0
      %390 = vmatprep.subr.mxu0 0.0
      %391 = vmatpush1.msra.mxu0 0.0
      %392 = vmatprep.subr.mxu0 0.0
      %393 = vmatpush1.msra.mxu0 0.0
      %394 = vmatprep.subr.mxu0 0.0
      %395 = vmatpush1.msra.mxu0 0.0
      %396 = vmatprep.subr.mxu0 0.0
      %397 = vmatpush1.msra.mxu0 0.0
      %398 = vmatprep.subr.mxu0 0.0
      %399 = vmatpush1.msra.mxu0 0.0
      %400 = vmatprep.subr.mxu0 0.0
      %401 = vmatpush1.msra.mxu0 0.0
      %402 = vmatprep.subr.mxu0 0.0
      %403 = vmatpush1.msra.mxu0 0.0
      %404 = vmatprep.subr.mxu0 0.0
      %405 = vmatpush1.msra.mxu0 0.0
      %406 = vmatprep.subr.mxu0 0.0
      %407 = vmatpush1.msra.mxu0 0.0
      %408 = vmatprep.subr.mxu0 0.0
      %409 = vmatpush1.msra.mxu0 0.0
      %410 = vmatprep.subr.mxu0 0.0
      %411 = vmatpush1.msra.mxu0 0.0
      %412 = vmatprep.subr.mxu0 0.0
      %413 = vmatpush1.msra.mxu0 0.0
      %414 = vmatprep.subr.mxu0 0.0
      %415 = vmatpush1.msra.mxu0 0.0
      %416 = vmatprep.subr.mxu0 0.0
      %417 = vmatpush1.msra.mxu0 0.0
      %418 = vmatprep.subr.mxu0 0.0
      %419 = vmatpush1.msra.mxu0 0.0
      %420 = vmatprep.mubr.f32.mxu0 0.0
      %421 = vmatmul.mubr.f32.gmra.mrb[0].mxu0 %v257
      %v422 = vpop.f32.mrb[0].mxu0
      %v423 = vadd.f32 0.0, %v422
      %v424 = vpop.f32.mrb[0].mxu0
      %425 = vmatprep.mubr.f32.mxu0 0.0
      %426 = vmatmul.mubr.f32.gmra.mrb[0].mxu0 %v260
      %v427 = vpop.f32.mrb[0].mxu0
      %v428 = vadd.f32 0.0, %v427
      %v429 = vpop.f32.mrb[0].mxu0
      %430 = vmatprep.mubr.f32.mxu0 0.0
      %431 = vmatmul.mubr.f32.gmra.mrb[0].mxu0 %v263
      %v432 = vpop.f32.mrb[0].mxu0
      %v433 = vadd.f32 0.0, %v432
      %v434 = vpop.f32.mrb[0].mxu0
      %435 = vmatprep.mubr.f32.mxu0 0.0
      %436 = vmatmul.mubr.f32.gmra.mrb[0].mxu0 %v266
      %v437 = vpop.f32.mrb[0].mxu0
      %v438 = vadd.f32 0.0, %v437
      %v439 = vpop.f32.mrb[0].mxu0
      %440 = vmatprep.mubr.f32.mxu0 0.0
      %441 = vmatmul.mubr.f32.gmra.mrb[0].mxu0 %v269
      %v442 = vpop.f32.mrb[0].mxu0
      %v443 = vadd.f32 0.0, %v442
      %v444 = vpop.f32.mrb[0].mxu0
      %445 = vmatprep.mubr.f32.mxu0 0.0
      %446 = vmatmul.mubr.f32.gmra.mrb[0].mxu0 %v272
      %v447 = vpop.f32.mrb[0].mxu0
      %v448 = vadd.f32 0.0, %v447
      %v449 = vpop.f32.mrb[0].mxu0
      %450 = vmatprep.mubr.f32.mxu0 0.0
      %451 = vmatmul.mubr.f32.gmra.mrb[0].mxu0 %v275
      %v452 = vpop.f32.mrb[0].mxu0
      %v453 = vadd.f32 0.0, %v452
      %v454 = vpop.f32.mrb[0].mxu0
      %455 = vmatprep.mubr.f32.mxu0 0.0
      %456 = vmatmul.mubr.f32.gmra.mrb[0].mxu0 %v278
      %v457 = vpop.f32.mrb[0].mxu0
      %v458 = vadd.f32 0.0, %v457
      %v459 = vpop.f32.mrb[0].mxu0
      %460 = vmatprep.mubr.f32.mxu0 0.0
      %461 = vmatmul.mubr.f32.gmra.mrb[0].mxu0 %v281
      %v462 = vpop.f32.mrb[0].mxu0
      %v463 = vadd.f32 0.0, %v462
      %v464 = vpop.f32.mrb[0].mxu0
      %465 = vmatprep.mubr.f32.mxu0 0.0
      %466 = vmatmul.mubr.f32.gmra.mrb[0].mxu0 %v284
      %v467 = vpop.f32.mrb[0].mxu0
      %v468 = vadd.f32 0.0, %v467
      %v469 = vpop.f32.mrb[0].mxu0
      %470 = vmatprep.mubr.f32.mxu0 0.0
      %471 = vmatmul.mubr.f32.gmra.mrb[0].mxu0 %v287
      %v472 = vpop.f32.mrb[0].mxu0
      %v473 = vadd.f32 0.0, %v472
      %v474 = vpop.f32.mrb[0].mxu0
      %475 = vmatprep.mubr.f32.mxu0 0.0
      %476 = vmatmul.mubr.f32.gmra.mrb[0].mxu0 %v290
      %v477 = vpop.f32.mrb[0].mxu0
      %v478 = vadd.f32 0.0, %v477
      %v479 = vpop.f32.mrb[0].mxu0
      %480 = vmatprep.mubr.f32.mxu0 0.0
      %481 = vmatmul.mubr.f32.gmra.mrb[0].mxu0 %v293
      %v482 = vpop.f32.mrb[0].mxu0
      %v483 = vadd.f32 0.0, %v482
      %v484 = vpop.f32.mrb[0].mxu0
      %485 = vmatprep.mubr.f32.mxu0 0.0
      %486 = vmatmul.mubr.f32.gmra.mrb[0].mxu0 %v296
      %v487 = vpop.f32.mrb[0].mxu0
      %v488 = vadd.f32 0.0, %v487
      %v489 = vpop.f32.mrb[0].mxu0
      %490 = vmatprep.mubr.f32.mxu0 0.0
      %491 = vmatmul.mubr.f32.gmra.mrb[0].mxu0 %v299
      %v492 = vpop.f32.mrb[0].mxu0
      %v493 = vadd.f32 0.0, %v492
      %v494 = vpop.f32.mrb[0].mxu0
      %495 = vmatprep.mubr.f32.mxu0 0.0
      %496 = vmatmul.mubr.f32.gmra.mrb[0].mxu0 %v302
      %v497 = vpop.f32.mrb[0].mxu0
      %v498 = vadd.f32 0.0, %v497
      %v499 = vpop.f32.mrb[0].mxu0
      %500 = vmatprep.mubr.f32.mxu0 0.0
      %501 = vmatmul.mubr.f32.gmra.mrb[0].mxu0 %v305
      %v502 = vpop.f32.mrb[0].mxu0
      %v503 = vadd.f32 0.0, %v502
      %v504 = vpop.f32.mrb[0].mxu0
      %505 = vmatprep.mubr.f32.mxu0 0.0
      %506 = vmatmul.mubr.f32.gmra.mrb[0].mxu0 %v308
      %v507 = vpop.f32.mrb[0].mxu0
      %v508 = vadd.f32 0.0, %v507
      %v509 = vpop.f32.mrb[0].mxu0
      %510 = vmatprep.mubr.f32.mxu0 0.0
      %511 = vmatmul.mubr.f32.gmra.mrb[0].mxu0 %v311
      %v512 = vpop.f32.mrb[0].mxu0
      %v513 = vadd.f32 0.0, %v512
      %v514 = vpop.f32.mrb[0].mxu0
      %515 = vmatprep.mubr.f32.mxu0 0.0
      %516 = vmatmul.mubr.f32.gmra.mrb[0].mxu0 %v314
      %v517 = vpop.f32.mrb[0].mxu0
      %v518 = vadd.f32 0.0, %v517
      %v519 = vpop.f32.mrb[0].mxu0
      %520 = vmatprep.mubr.f32.mxu0 0.0
      %521 = vmatmul.mubr.f32.gmra.mrb[0].mxu0 %v317
      %v522 = vpop.f32.mrb[0].mxu0
      %v523 = vadd.f32 0.0, %v522
      %v524 = vpop.f32.mrb[0].mxu0
      %525 = vmatprep.mubr.f32.mxu0 0.0
      %526 = vmatmul.mubr.f32.gmra.mrb[0].mxu0 %v320
      %v527 = vpop.f32.mrb[0].mxu0
      %v528 = vadd.f32 0.0, %v527
      %v529 = vpop.f32.mrb[0].mxu0
      %530 = vmatprep.mubr.f32.mxu0 0.0
      %531 = vmatmul.mubr.f32.gmra.mrb[0].mxu0 %v323
      %v532 = vpop.f32.mrb[0].mxu0
      %v533 = vadd.f32 0.0, %v532
      %v534 = vpop.f32.mrb[0].mxu0
      %535 = vmatprep.mubr.f32.mxu0 0.0
      %536 = vmatmul.mubr.f32.gmra.mrb[0].mxu0 %v326
      %v537 = vpop.f32.mrb[0].mxu0
      %v538 = vadd.f32 0.0, %v537
      %v539 = vpop.f32.mrb[0].mxu0
      %540 = vmatprep.mubr.f32.mxu0 0.0
      %541 = vmatmul.mubr.f32.gmra.mrb[0].mxu0 %v329
      %v542 = vpop.f32.mrb[0].mxu0
      %v543 = vadd.f32 0.0, %v542
      %v544 = vpop.f32.mrb[0].mxu0
      %545 = vmatprep.mubr.f32.mxu0 0.0
      %546 = vmatmul.mubr.f32.gmra.mrb[0].mxu0 %v332
      %v547 = vpop.f32.mrb[0].mxu0
      %v548 = vadd.f32 0.0, %v547
      %v549 = vpop.f32.mrb[0].mxu0
      %550 = vmatprep.mubr.f32.mxu0 0.0
      %551 = vmatmul.mubr.f32.gmra.mrb[0].mxu0 %v335
      %v552 = vpop.f32.mrb[0].mxu0
      %v553 = vadd.f32 0.0, %v552
      %v554 = vpop.f32.mrb[0].mxu0
      %555 = vmatprep.mubr.f32.mxu0 0.0
      %556 = vmatmul.mubr.f32.gmra.mrb[0].mxu0 %v338
      %v557 = vpop.f32.mrb[0].mxu0
      %v558 = vadd.f32 0.0, %v557
      %v559 = vpop.f32.mrb[0].mxu0
      %560 = vmatprep.mubr.f32.mxu0 0.0
      %561 = vmatmul.mubr.f32.gmra.mrb[0].mxu0 %v341
      %v562 = vpop.f32.mrb[0].mxu0
      %v563 = vadd.f32 0.0, %v562
      %v564 = vpop.f32.mrb[0].mxu0
      %565 = vmatprep.mubr.f32.mxu0 0.0
      %566 = vmatmul.mubr.f32.gmra.mrb[0].mxu0 %v344
      %v567 = vpop.f32.mrb[0].mxu0
      %v568 = vadd.f32 0.0, %v567
      %v569 = vpop.f32.mrb[0].mxu0
      %570 = vmatprep.mubr.f32.mxu0 0.0
      %571 = vmatmul.mubr.f32.gmra.mrb[0].mxu0 %v347
      %v572 = vpop.f32.mrb[0].mxu0
      %v573 = vadd.f32 0.0, %v572
      %v574 = vpop.f32.mrb[0].mxu0
      %575 = vmatprep.mubr.f32.mxu0 0.0
      %576 = vmatmul.mubr.f32.gmra.mrb[0].mxu0 %v350
      %v577 = vpop.f32.mrb[0].mxu0
      %v578 = vadd.f32 0.0, %v577
      %v579 = vpop.f32.mrb[0].mxu0
      %580 = vdwg.mxu0
      %vm581 = vcmask 785408
      %582 = vst.msk [vmem:[%s210] sm:$0xff] %vm581, %v423
      %583 = vst.msk [vmem:[%s210 + $0x8] sm:$0xff] %vm581, %v428
      %584 = vst.msk [vmem:[%s210 + $0x10] sm:$0xff] %vm581, %v433
      %585 = vst.msk [vmem:[%s210 + $0x18] sm:$0xff] %vm581, %v438
      %586 = vst.msk [vmem:[%s210 + $0x20] sm:$0xff] %vm581, %v443
      %587 = vst.msk [vmem:[%s210 + $0x28] sm:$0xff] %vm581, %v448
      %588 = vst.msk [vmem:[%s210 + $0x30] sm:$0xff] %vm581, %v453
      %589 = vst.msk [vmem:[%s210 + $0x38] sm:$0xff] %vm581, %v458
      %590 = vst.msk [vmem:[%s210 + $0x40] sm:$0xff] %vm581, %v463
      %591 = vst.msk [vmem:[%s210 + $0x48] sm:$0xff] %vm581, %v468
      %592 = vst.msk [vmem:[%s210 + $0x50] sm:$0xff] %vm581, %v473
      %593 = vst.msk [vmem:[%s210 + $0x58] sm:$0xff] %vm581, %v478
      %594 = vst.msk [vmem:[%s210 + $0x60] sm:$0xff] %vm581, %v483
      %595 = vst.msk [vmem:[%s210 + $0x68] sm:$0xff] %vm581, %v488
      %596 = vst.msk [vmem:[%s210 + $0x70] sm:$0xff] %vm581, %v493
      %597 = vst.msk [vmem:[%s210 + $0x78] sm:$0xff] %vm581, %v498
      %598 = vst.msk [vmem:[%s210 + $0x80] sm:$0xff] %vm581, %v503
      %599 = vst.msk [vmem:[%s210 + $0x88] sm:$0xff] %vm581, %v508
      %600 = vst.msk [vmem:[%s210 + $0x90] sm:$0xff] %vm581, %v513
      %601 = vst.msk [vmem:[%s210 + $0x98] sm:$0xff] %vm581, %v518
      %602 = vst.msk [vmem:[%s210 + $0xa0] sm:$0xff] %vm581, %v523
      %603 = vst.msk [vmem:[%s210 + $0xa8] sm:$0xff] %vm581, %v528
      %604 = vst.msk [vmem:[%s210 + $0xb0] sm:$0xff] %vm581, %v533
      %605 = vst.msk [vmem:[%s210 + $0xb8] sm:$0xff] %vm581, %v538
      %606 = vst.msk [vmem:[%s210 + $0xc0] sm:$0xff] %vm581, %v543
      %607 = vst.msk [vmem:[%s210 + $0xc8] sm:$0xff] %vm581, %v548
      %608 = vst.msk [vmem:[%s210 + $0xd0] sm:$0xff] %vm581, %v553
      %609 = vst.msk [vmem:[%s210 + $0xd8] sm:$0xff] %vm581, %v558
      %610 = vst.msk [vmem:[%s210 + $0xe0] sm:$0xff] %vm581, %v563
      %611 = vst.msk [vmem:[%s210 + $0xe8] sm:$0xff] %vm581, %v568
      %612 = vst.msk [vmem:[%s210 + $0xf0] sm:$0xff] %vm581, %v573
      %613 = vst.msk [vmem:[%s210 + $0xf8] sm:$0xff] %vm581, %v578
      %v614 = vsel %vm581, %v423, 0.0
      %v615 = vsel %vm581, %v428, 0.0
      %v616 = vadd.f32 %v614, %v615
      %v617 = vsel %vm581, %v433, 0.0
      %v618 = vadd.f32 %v616, %v617
      %v619 = vsel %vm581, %v438, 0.0
      %v620 = vadd.f32 %v618, %v619
      %v621 = vsel %vm581, %v443, 0.0
      %v622 = vadd.f32 %v620, %v621
      %v623 = vsel %vm581, %v448, 0.0
      %v624 = vadd.f32 %v622, %v623
      %v625 = vsel %vm581, %v453, 0.0
      %v626 = vadd.f32 %v624, %v625
      %v627 = vsel %vm581, %v458, 0.0
      %v628 = vadd.f32 %v626, %v627
      %v629 = vsel %vm581, %v463, 0.0
      %v630 = vadd.f32 %v628, %v629
      %v631 = vsel %vm581, %v468, 0.0
      %v632 = vadd.f32 %v630, %v631
      %v633 = vsel %vm581, %v473, 0.0
      %v634 = vadd.f32 %v632, %v633
      %v635 = vsel %vm581, %v478, 0.0
      %v636 = vadd.f32 %v634, %v635
      %v637 = vsel %vm581, %v483, 0.0
      %v638 = vadd.f32 %v636, %v637
      %v639 = vsel %vm581, %v488, 0.0
      %v640 = vadd.f32 %v638, %v639
      %v641 = vsel %vm581, %v493, 0.0
      %v642 = vadd.f32 %v640, %v641
      %v643 = vsel %vm581, %v498, 0.0
      %v644 = vadd.f32 %v642, %v643
      %v645 = vsel %vm581, %v503, 0.0
      %v646 = vadd.f32 %v644, %v645
      %v647 = vsel %vm581, %v508, 0.0
      %v648 = vadd.f32 %v646, %v647
      %v649 = vsel %vm581, %v513, 0.0
      %v650 = vadd.f32 %v648, %v649
      %v651 = vsel %vm581, %v518, 0.0
      %v652 = vadd.f32 %v650, %v651
      %v653 = vsel %vm581, %v523, 0.0
      %v654 = vadd.f32 %v652, %v653
      %v655 = vsel %vm581, %v528, 0.0
      %v656 = vadd.f32 %v654, %v655
      %v657 = vsel %vm581, %v533, 0.0
      %v658 = vadd.f32 %v656, %v657
      %v659 = vsel %vm581, %v538, 0.0
      %v660 = vadd.f32 %v658, %v659
      %v661 = vsel %vm581, %v543, 0.0
      %v662 = vadd.f32 %v660, %v661
      %v663 = vsel %vm581, %v548, 0.0
      %v664 = vadd.f32 %v662, %v663
      %v665 = vsel %vm581, %v553, 0.0
      %v666 = vadd.f32 %v664, %v665
      %v667 = vsel %vm581, %v558, 0.0
      %v668 = vadd.f32 %v666, %v667
      %v669 = vsel %vm581, %v563, 0.0
      %v670 = vadd.f32 %v668, %v669
      %v671 = vsel %vm581, %v568, 0.0
      %v672 = vadd.f32 %v670, %v671
      %v673 = vsel %vm581, %v573, 0.0
      %v674 = vadd.f32 %v672, %v673
      %v675 = vsel %vm581, %v578, 0.0
      %v676 = vadd.f32 %v674, %v675
      %v677 = vrot.slane %v676, 4
      %v678 = vadd.f32 %v676, %v677
      %v679 = vrot.slane %v678, 2
      %v680 = vadd.f32 %v678, %v679
      %v681 = vrot.slane %v680, 1
      %v682 = vadd.f32 %v680, %v681
      %vm683 = vcmask 778240
      %684 = vst.msk [vmem:[%s214] sm:$0x1] %vm683, %v682
      %v685 = vmul.f32 %v423, %v423
      %v686 = vmul.f32 %v428, %v428
      %v687 = vmul.f32 %v433, %v433
      %v688 = vmul.f32 %v438, %v438
      %v689 = vmul.f32 %v443, %v443
      %v690 = vmul.f32 %v448, %v448
      %v691 = vmul.f32 %v453, %v453
      %v692 = vmul.f32 %v458, %v458
      %v693 = vmul.f32 %v463, %v463
      %v694 = vmul.f32 %v468, %v468
      %v695 = vmul.f32 %v473, %v473
      %v696 = vmul.f32 %v478, %v478
      %v697 = vmul.f32 %v483, %v483
      %v698 = vmul.f32 %v488, %v488
      %v699 = vmul.f32 %v493, %v493
      %v700 = vmul.f32 %v498, %v498
      %v701 = vmul.f32 %v503, %v503
      %v702 = vmul.f32 %v508, %v508
      %v703 = vmul.f32 %v513, %v513
      %v704 = vmul.f32 %v518, %v518
      %v705 = vmul.f32 %v523, %v523
      %v706 = vmul.f32 %v528, %v528
      %v707 = vmul.f32 %v533, %v533
      %v708 = vmul.f32 %v538, %v538
      %v709 = vmul.f32 %v543, %v543
      %v710 = vmul.f32 %v548, %v548
      %v711 = vmul.f32 %v553, %v553
      %v712 = vmul.f32 %v558, %v558
      %v713 = vmul.f32 %v563, %v563
      %v714 = vmul.f32 %v568, %v568
      %v715 = vmul.f32 %v573, %v573
      %v716 = vmul.f32 %v578, %v578
      %v717 = vsel %vm581, %v685, 0.0
      %v718 = vsel %vm581, %v686, 0.0
      %v719 = vadd.f32 %v717, %v718
      %v720 = vsel %vm581, %v687, 0.0
      %v721 = vadd.f32 %v719, %v720
      %v722 = vsel %vm581, %v688, 0.0
      %v723 = vadd.f32 %v721, %v722
      %v724 = vsel %vm581, %v689, 0.0
      %v725 = vadd.f32 %v723, %v724
      %v726 = vsel %vm581, %v690, 0.0
      %v727 = vadd.f32 %v725, %v726
      %v728 = vsel %vm581, %v691, 0.0
      %v729 = vadd.f32 %v727, %v728
      %v730 = vsel %vm581, %v692, 0.0
      %v731 = vadd.f32 %v729, %v730
      %v732 = vsel %vm581, %v693, 0.0
      %v733 = vadd.f32 %v731, %v732
      %v734 = vsel %vm581, %v694, 0.0
      %v735 = vadd.f32 %v733, %v734
      %v736 = vsel %vm581, %v695, 0.0
      %v737 = vadd.f32 %v735, %v736
      %v738 = vsel %vm581, %v696, 0.0
      %v739 = vadd.f32 %v737, %v738
      %v740 = vsel %vm581, %v697, 0.0
      %v741 = vadd.f32 %v739, %v740
      %v742 = vsel %vm581, %v698, 0.0
      %v743 = vadd.f32 %v741, %v742
      %v744 = vsel %vm581, %v699, 0.0
      %v745 = vadd.f32 %v743, %v744
      %v746 = vsel %vm581, %v700, 0.0
      %v747 = vadd.f32 %v745, %v746
      %v748 = vsel %vm581, %v701, 0.0
      %v749 = vadd.f32 %v747, %v748
      %v750 = vsel %vm581, %v702, 0.0
      %v751 = vadd.f32 %v749, %v750
      %v752 = vsel %vm581, %v703, 0.0
      %v753 = vadd.f32 %v751, %v752
      %v754 = vsel %vm581, %v704, 0.0
      %v755 = vadd.f32 %v753, %v754
      %v756 = vsel %vm581, %v705, 0.0
      %v757 = vadd.f32 %v755, %v756
      %v758 = vsel %vm581, %v706, 0.0
      %v759 = vadd.f32 %v757, %v758
      %v760 = vsel %vm581, %v707, 0.0
      %v761 = vadd.f32 %v759, %v760
      %v762 = vsel %vm581, %v708, 0.0
      %v763 = vadd.f32 %v761, %v762
      %v764 = vsel %vm581, %v709, 0.0
      %v765 = vadd.f32 %v763, %v764
      %v766 = vsel %vm581, %v710, 0.0
      %v767 = vadd.f32 %v765, %v766
      %v768 = vsel %vm581, %v711, 0.0
      %v769 = vadd.f32 %v767, %v768
      %v770 = vsel %vm581, %v712, 0.0
      %v771 = vadd.f32 %v769, %v770
      %v772 = vsel %vm581, %v713, 0.0
      %v773 = vadd.f32 %v771, %v772
      %v774 = vsel %vm581, %v714, 0.0
      %v775 = vadd.f32 %v773, %v774
      %v776 = vsel %vm581, %v715, 0.0
      %v777 = vadd.f32 %v775, %v776
      %v778 = vsel %vm581, %v716, 0.0
      %v779 = vadd.f32 %v777, %v778
      %v780 = vrot.slane %v779, 4
      %v781 = vadd.f32 %v779, %v780
      %v782 = vrot.slane %v781, 2
      %v783 = vadd.f32 %v781, %v782
      %v784 = vrot.slane %v783, 1
      %v785 = vadd.f32 %v783, %v784
      %786 = vst.msk [vmem:[%s217] sm:$0x1] %vm683, %v785
      %s787 = smul.u32 32, %s16
      %p788 = scmp.lt.s32.totalorder %s787, 63
      %s789 = scalar_select %p788, %s787, 63
      %s790 = smul.addr %s789, 8
      %s791 = scalar_lea.vmem %s2, %s790
      %p792 = scmp.lt.s32.totalorder %s16, 1
      %s793 = scalar_select %p792, %s16, 1
      %s794 = scalar_lea.vmem %s3, %s793
      %p795 = scmp.lt.s32.totalorder %s16, 1
      %s796 = scalar_select %p795, %s16, 1
      %s797 = scalar_lea.vmem %s4, %s796
      // Predicated region
      $region29: #{adapter_forward.3} parent=27 // pred_check
        %p798 = pneg %p81
      $region30: #{adapter_forward.3} parent=27 // pred_check_branch
        %800 = sbr.rel (%p798) target = $region32
      $region31: #{adapter_forward.3} parent=27 // pred_region
        %s801 = smul.u32 32, %s16
      $region32: #{adapter_forward.3} parent=27 // pred_fallthru
        _
      // Predicated region
      $region33: #{adapter_forward.3} parent=27 // pred_check
        %p802 = pneg %p107
      $region34: #{adapter_forward.3} parent=27 // pred_check_branch
        %804 = sbr.rel (%p802) target = $region36
      $region35: #{adapter_forward.3} parent=27 // pred_region
        _
      $region36: #{adapter_forward.3} parent=27 // pred_fallthru
        _
      // Predicated region
      $region37: #{adapter_forward.3} parent=27 // pred_check
        %p805 = pneg %p133
      $region38: #{adapter_forward.3} parent=27 // pred_check_branch
        %807 = sbr.rel (%p805) target = $region40
      $region39: #{adapter_forward.3} parent=27 // pred_region
        _
      $region40: #{adapter_forward.3} parent=27 // pred_fallthru
        _
    $region28: #{adapter_forward.3} parent=5 // pred_fallthru
      _
    %p808 = scmp.le.s32.totalorder 2, %s11
    // Predicated region
    $region41: #{adapter_forward.3} parent=5 // pred_check
      %p809 = pneg %p808
    $region42: #{adapter_forward.3} parent=5 // pred_check_branch
      %811 = sbr.rel (%p809) target = $region44
    $region43: #{adapter_forward.3} parent=5 // pred_region
      %s812 = ssub.s32 %s11, 2
      // Predicated region
      $region45: #{adapter_forward.3} parent=43 // pred_check
        %p813 = pneg %p87
      $region46: #{adapter_forward.3} parent=43 // pred_check_branch
        %815 = sbr.rel (%p813) target = $region48
      $region47: #{adapter_forward.3} parent=43 // pred_region
        %s816 = smul.u32 32, %s17
        %p817 = scmp.lt.s32.totalorder %s816, 63
        %s818 = scalar_select %p817, %s816, 63
        %s819 = smul.addr %s818, 8
        %s820 = scalar_lea.vmem %s2, %s819
      $region48: #{adapter_forward.3} parent=43 // pred_fallthru
        _
      // Predicated region
      $region49: #{adapter_forward.3} parent=43 // pred_check
        %p821 = pneg %p113
      $region50: #{adapter_forward.3} parent=43 // pred_check_branch
        %823 = sbr.rel (%p821) target = $region52
      $region51: #{adapter_forward.3} parent=43 // pred_region
        %p824 = scmp.lt.s32.totalorder %s17, 1
        %s825 = scalar_select %p824, %s17, 1
        %s826 = scalar_lea.vmem %s3, %s825
      $region52: #{adapter_forward.3} parent=43 // pred_fallthru
        _
      // Predicated region
      $region53: #{adapter_forward.3} parent=43 // pred_check
        %p827 = pneg %p139
      $region54: #{adapter_forward.3} parent=43 // pred_check_branch
        %829 = sbr.rel (%p827) target = $region56
      $region55: #{adapter_forward.3} parent=43 // pred_region
        %p830 = scmp.lt.s32.totalorder %s17, 1
        %s831 = scalar_select %p830, %s17, 1
        %s832 = scalar_lea.vmem %s4, %s831
      $region56: #{adapter_forward.3} parent=43 // pred_fallthru
        _
    $region44: #{adapter_forward.3} parent=5 // pred_fallthru
      _
  $region6: #{adapter_forward.3} parent=0 // loop_footer
    %s15 = sadd.s32 1, %s11
  $region7: #{adapter_forward.3} parent=0 // loop_footer_branch
    %10 = sbr.rel target = $region3
  $region8: #{adapter_forward.3} parent=0 // loop_exit
    _

// kernel: adapter_forward.5
$region0: #{adapter_forward.5}
  #allocation0 [shape = 'u32[]', space=smem, size = 0x4, offset = 0x4, fixed_abs, tag = 'smem constant byte address 0x4 - core index']
  #allocation1 [shape = 'u32[144,128]{1,0:T(1,128)}', space=vmem, size = 0x12000, scoped, tag = 'internal scratch']
  %s0 = inlined_call_operand.vmem [shape: f32[128,128], index: 0, kind: input, shape index: {}]
  %s1 = inlined_call_operand.vmem [shape: f32[128,128], index: 1, kind: input, shape index: {}]
  %s2 = inlined_call_operand.vmem [shape: f32[1,128], index: 2, kind: input, shape index: {}]
  %s3 = inlined_call_operand.vmem [shape: f32[1,128], index: 3, kind: input, shape index: {}]
  %s4 = inlined_call_operand.vmem [shape: f32[1,128], index: 4, kind: input, shape index: {}]
  %s5 = inlined_call_operand.vmem [shape: f32[1,128], index: 5, kind: input, shape index: {}]
  %s6 = inlined_call_operand.vmem [shape: f32[128,128], index: 6, kind: output, shape index: {}]
  %s7 = sld [smem:[#allocation0]]
  $region57: #{adapter_forward.5} parent=0
    _
  %s9 = ssub.s32 1, %s7
  %s10 = scalar_select 0, %s9, %s7
  loop: start=0, step=1, limit=4
  $region2: #{adapter_forward.5} parent=0 // loop_pre_header
    _
  $region3: #{adapter_forward.5} parent=0 // loop_header
    %s12 = sphi 0, %s16
    %p13 = scmp.ge.s32.totalorder %s12, 4
    %s22 = sphi 0, %s24
    %s25 = sphi 0, %s22
    %s26 = sphi 0, %s25
    %s42 = sphi 0, %s26
    %s48 = sphi 0, %s50
    %s51 = sphi 0, %s48
    %s52 = sphi 0, %s51
    %s68 = sphi 0, %s52
    %s72 = sphi 0, %s72
    %s74 = sphi 0, %s72
    %s75 = sphi 0, %s74
    %s89 = sphi 0, %s75
    %s93 = sphi 0, %s93
    %s95 = sphi 0, %s93
    %s96 = sphi 0, %s95
    %s110 = sphi 0, %s96
    %s114 = sphi 0, %s114
    %s116 = sphi 0, %s114
    %s117 = sphi 0, %s116
    %s131 = sphi 0, %s117
    %s135 = sphi 0, %s135
    %s137 = sphi 0, %s135
    %s138 = sphi 0, %s137
    %s152 = sphi 0, %s138
    %s158 = sphi 0, %s160
    %s161 = sphi 0, %s158
    %s162 = sphi 0, %s161
    %s178 = sphi 0, %s162
  $region4: #{adapter_forward.5} parent=0 // loop_header_branch
    %15 = sbr.rel (%p13) target = $region8
  $region5: #{adapter_forward.5} parent=0 // loop_body
    %s17 = ssub.s32 %s12, 1
    %s18 = ssub.s32 %s12, 2
    %s19 = sadd.s32 %s12, 1
    %s20 = ssub.s32 %s12, %s19
    %p21 = scmp.eq.s32.totalorder %s20, 0
    %s23 = sadd.s32 %s22, 1
    %s24 = scalar_select %p21, %s22, %s23
    %p27 = pneg %p21
    %p28 = scmp.eq.s32.totalorder %s12, 1
    %p29 = por %p27, %p28
    %p30 = scmp.ne.s32.totalorder %s22, %s25
    %p31 = scmp.eq.s32.totalorder %s12, 0
    %p32 = por %p30, %p31
    %p33 = scmp.ne.s32.totalorder %s22, %s25
    %p34 = scmp.eq.s32.totalorder %s17, 1
    %p35 = por %p33, %p34
    %p36 = scmp.ne.s32.totalorder %s25, %s26
    %p37 = scmp.eq.s32.totalorder %s17, 0
    %p38 = por %p36, %p37
    %p39 = scmp.ne.s32.totalorder %s25, %s26
    %p40 = scmp.eq.s32.totalorder %s18, 1
    %p41 = por %p39, %p40
    %p43 = scmp.ne.s32.totalorder %s26, %s42
    %p44 = scmp.eq.s32.totalorder %s18, 0
    %p45 = por %p43, %p44
    %s46 = ssub.s32 %s12, %s19
    %p47 = scmp.eq.s32.totalorder %s46, 0
    %s49 = sadd.s32 %s48, 1
    %s50 = scalar_select %p47, %s48, %s49
    %p53 = pneg %p47
    %p54 = scmp.eq.s32.totalorder %s12, 1
    %p55 = por %p53, %p54
    %p56 = scmp.ne.s32.totalorder %s48, %s51
    %p57 = scmp.eq.s32.totalorder %s12, 0
    %p58 = por %p56, %p57
    %p59 = scmp.ne.s32.totalorder %s48, %s51
    %p60 = scmp.eq.s32.totalorder %s17, 1
    %p61 = por %p59, %p60
    %p62 = scmp.ne.s32.totalorder %s51, %s52
    %p63 = scmp.eq.s32.totalorder %s17, 0
    %p64 = por %p62, %p63
    %p65 = scmp.ne.s32.totalorder %s51, %s52
    %p66 = scmp.eq.s32.totalorder %s18, 1
    %p67 = por %p65, %p66
    %p69 = scmp.ne.s32.totalorder %s52, %s68
    %p70 = scmp.eq.s32.totalorder %s18, 0
    %p71 = por %p69, %p70
    %s73 = sadd.s32 %s72, 1
    %p76 = scmp.eq.s32.totalorder %s12, 1
    %p77 = scmp.ne.s32.totalorder %s72, %s74
    %p78 = scmp.eq.s32.totalorder %s12, 0
    %p79 = por %p77, %p78
    %p80 = scmp.ne.s32.totalorder %s72, %s74
    %p81 = scmp.eq.s32.totalorder %s17, 1
    %p82 = por %p80, %p81
    %p83 = scmp.ne.s32.totalorder %s74, %s75
    %p84 = scmp.eq.s32.totalorder %s17, 0
    %p85 = por %p83, %p84
    %p86 = scmp.ne.s32.totalorder %s74, %s75
    %p87 = scmp.eq.s32.totalorder %s18, 1
    %p88 = por %p86, %p87
    %p90 = scmp.ne.s32.totalorder %s75, %s89
    %p91 = scmp.eq.s32.totalorder %s18, 0
    %p92 = por %p90, %p91
    %s94 = sadd.s32 %s93, 1
    %p97 = scmp.eq.s32.totalorder %s12, 1
    %p98 = scmp.ne.s32.totalorder %s93, %s95
    %p99 = scmp.eq.s32.totalorder %s12, 0
    %p100 = por %p98, %p99
    %p101 = scmp.ne.s32.totalorder %s93, %s95
    %p102 = scmp.eq.s32.totalorder %s17, 1
    %p103 = por %p101, %p102
    %p104 = scmp.ne.s32.totalorder %s95, %s96
    %p105 = scmp.eq.s32.totalorder %s17, 0
    %p106 = por %p104, %p105
    %p107 = scmp.ne.s32.totalorder %s95, %s96
    %p108 = scmp.eq.s32.totalorder %s18, 1
    %p109 = por %p107, %p108
    %p111 = scmp.ne.s32.totalorder %s96, %s110
    %p112 = scmp.eq.s32.totalorder %s18, 0
    %p113 = por %p111, %p112
    %s115 = sadd.s32 %s114, 1
    %p118 = scmp.eq.s32.totalorder %s12, 1
    %p119 = scmp.ne.s32.totalorder %s114, %s116
    %p120 = scmp.eq.s32.totalorder %s12, 0
    %p121 = por %p119, %p120
    %p122 = scmp.ne.s32.totalorder %s114, %s116
    %p123 = scmp.eq.s32.totalorder %s17, 1
    %p124 = por %p122, %p123
    %p125 = scmp.ne.s32.totalorder %s116, %s117
    %p126 = scmp.eq.s32.totalorder %s17, 0
    %p127 = por %p125, %p126
    %p128 = scmp.ne.s32.totalorder %s116, %s117
    %p129 = scmp.eq.s32.totalorder %s18, 1
    %p130 = por %p128, %p129
    %p132 = scmp.ne.s32.totalorder %s117, %s131
    %p133 = scmp.eq.s32.totalorder %s18, 0
    %p134 = por %p132, %p133
    %s136 = sadd.s32 %s135, 1
    %p139 = scmp.eq.s32.totalorder %s12, 1
    %p140 = scmp.ne.s32.totalorder %s135, %s137
    %p141 = scmp.eq.s32.totalorder %s12, 0
    %p142 = por %p140, %p141
    %p143 = scmp.ne.s32.totalorder %s135, %s137
    %p144 = scmp.eq.s32.totalorder %s17, 1
    %p145 = por %p143, %p144
    %p146 = scmp.ne.s32.totalorder %s137, %s138
    %p147 = scmp.eq.s32.totalorder %s17, 0
    %p148 = por %p146, %p147
    %p149 = scmp.ne.s32.totalorder %s137, %s138
    %p150 = scmp.eq.s32.totalorder %s18, 1
    %p151 = por %p149, %p150
    %p153 = scmp.ne.s32.totalorder %s138, %s152
    %p154 = scmp.eq.s32.totalorder %s18, 0
    %p155 = por %p153, %p154
    %s156 = ssub.s32 %s12, %s19
    %p157 = scmp.eq.s32.totalorder %s156, 0
    %s159 = sadd.s32 %s158, 1
    %s160 = scalar_select %p157, %s158, %s159
    %p163 = pneg %p157
    %p164 = scmp.eq.s32.totalorder %s12, 1
    %p165 = por %p163, %p164
    %p166 = scmp.ne.s32.totalorder %s158, %s161
    %p167 = scmp.eq.s32.totalorder %s12, 0
    %p168 = por %p166, %p167
    %p169 = scmp.ne.s32.totalorder %s158, %s161
    %p170 = scmp.eq.s32.totalorder %s17, 1
    %p171 = por %p169, %p170
    %p172 = scmp.ne.s32.totalorder %s161, %s162
    %p173 = scmp.eq.s32.totalorder %s17, 0
    %p174 = por %p172, %p173
    %p175 = scmp.ne.s32.totalorder %s161, %s162
    %p176 = scmp.eq.s32.totalorder %s18, 1
    %p177 = por %p175, %p176
    %p179 = scmp.ne.s32.totalorder %s162, %s178
    %p180 = scmp.eq.s32.totalorder %s18, 0
    %p181 = por %p179, %p180
    %p182 = scmp.le.s32.totalorder 1, %s12
    %p183 = scmp.lt.s32.totalorder %s12, 3
    %p184 = pnand %p182, %p183
    %p185 = pneg %p184
    // Predicated region
    $region9: #{adapter_forward.5} parent=5 // pred_check
      _
    $region10: #{adapter_forward.5} parent=5 // pred_check_branch
      %187 = sbr.rel (%p184) target = $region12
    $region11: #{adapter_forward.5} parent=5 // pred_region
      %s188 = ssub.s32 %s12, 1
      // Predicated region
      $region13: #{adapter_forward.5} parent=11 // pred_check
        %p189 = pneg %p85
      $region14: #{adapter_forward.5} parent=11 // pred_check_branch
        %191 = sbr.rel (%p189) target = $region16
      $region15: #{adapter_forward.5} parent=11 // pred_region
        _
      $region16: #{adapter_forward.5} parent=11 // pred_fallthru
        _
      // Predicated region
      $region17: #{adapter_forward.5} parent=11 // pred_check
        %p192 = pneg %p106
      $region18: #{adapter_forward.5} parent=11 // pred_check_branch
        %194 = sbr.rel (%p192) target = $region20
      $region19: #{adapter_forward.5} parent=11 // pred_region
        _
      $region20: #{adapter_forward.5} parent=11 // pred_fallthru
        _
      // Predicated region
      $region21: #{adapter_forward.5} parent=11 // pred_check
        %p195 = pneg %p127
      $region22: #{adapter_forward.5} parent=11 // pred_check_branch
        %197 = sbr.rel (%p195) target = $region24
      $region23: #{adapter_forward.5} parent=11 // pred_region
        _
      $region24: #{adapter_forward.5} parent=11 // pred_fallthru
        _
      // Predicated region
      $region25: #{adapter_forward.5} parent=11 // pred_check
        %p198 = pneg %p148
      $region26: #{adapter_forward.5} parent=11 // pred_check_branch
        %200 = sbr.rel (%p198) target = $region28
      $region27: #{adapter_forward.5} parent=11 // pred_region
        _
      $region28: #{adapter_forward.5} parent=11 // pred_fallthru
        _
    $region12: #{adapter_forward.5} parent=5 // pred_fallthru
      _
    %p201 = scmp.lt.s32.totalorder %s12, 2
    // Predicated region
    $region29: #{adapter_forward.5} parent=5 // pred_check
      %p202 = pneg %p201
    $region30: #{adapter_forward.5} parent=5 // pred_check_branch
      %204 = sbr.rel (%p202) target = $region32
    $region31: #{adapter_forward.5} parent=5 // pred_region
      // Predicated region
      $region33: #{adapter_forward.5} parent=31 // pred_check
        %p205 = pneg %p32
      $region34: #{adapter_forward.5} parent=31 // pred_check_branch
        %207 = sbr.rel (%p205) target = $region36
      $region35: #{adapter_forward.5} parent=31 // pred_region
        %s208 = smul.u32 8, %s12
        %p209 = scmp.lt.s32.totalorder %s208, 15
        %s210 = scalar_select %p209, %s208, 15
        %s211 = smul.addr %s210, 8
        %s212 = scalar_lea.vmem %s0, %s211
        %s213 = smul.u32 8, %s12
      $region36: #{adapter_forward.5} parent=31 // pred_fallthru
        _
      // Predicated region
      $region37: #{adapter_forward.5} parent=31 // pred_check
        %p214 = pneg %p58
      $region38: #{adapter_forward.5} parent=31 // pred_check_branch
        %216 = sbr.rel (%p214) target = $region40
      $region39: #{adapter_forward.5} parent=31 // pred_region
        %s217 = smul.u32 8, %s12
        %p218 = scmp.lt.s32.totalorder %s217, 15
        %s219 = scalar_select %p218, %s217, 15
        %s220 = smul.addr %s219, 8
        %s221 = scalar_lea.vmem %s1, %s220
        %s222 = smul.u32 8, %s12
      $region40: #{adapter_forward.5} parent=31 // pred_fallthru
        _
    $region32: #{adapter_forward.5} parent=5 // pred_fallthru
      _
    %p223 = scmp.le.s32.totalorder 1, %s12
    %p224 = scmp.lt.s32.totalorder %s12, 3
    %p225 = pnand %p223, %p224
    %p226 = pneg %p225
    // Predicated region
    $region41: #{adapter_forward.5} parent=5 // pred_check
      _
    $region42: #{adapter_forward.5} parent=5 // pred_check_branch
      %228 = sbr.rel (%p225) target = $region44
    $region43: #{adapter_forward.5} parent=5 // pred_region
      %s229 = ssub.s32 %s12, 1
      %s230 = smul.u32 8, %s17
      %p231 = scmp.lt.s32.totalorder %s230, 15
      %s232 = scalar_select %p231, %s230, 15
      %s233 = smul.addr %s232, 8
      %s234 = scalar_lea.vmem %s0, %s233
      %p235 = pneg %p38
      %p236 = pneg %p35
      %s237 = smul.u32 8, %s17
      %p238 = scmp.lt.s32.totalorder %s237, 15
      %s239 = scalar_select %p238, %s237, 15
      %s240 = smul.addr %s239, 8
      %s241 = scalar_lea.vmem %s1, %s240
      %p242 = pneg %p64
      %p243 = pneg %p61
      %p244 = pneg %p85
      %p245 = pneg %p82
      %p246 = pneg %p106
      %p247 = pneg %p103
      %p248 = pneg %p127
      %p249 = pneg %p124
      %p250 = pneg %p148
      %p251 = pneg %p145
      %p252 = pneg %p174
      %p253 = pneg %p171
      %s254 = smul.u32 8, %s17
      %p255 = scmp.lt.s32.totalorder %s254, 15
      %s256 = scalar_select %p255, %s254, 15
      %s257 = smul.addr %s256, 8
      %s258 = scalar_lea.vmem %s6, %s257
      %s259 = smul.u32 8, %s17
      %p260 = scmp.lt.s32.totalorder %s259, 15
      %s261 = scalar_select %p260, %s259, 15
      %s262 = smul.addr %s261, 8
      %s263 = scalar_lea.vmem %s0, %s262
      %s264 = smul.u32 8, %s17
      %s265 = smul.u32 8, %s17
      %p266 = scmp.lt.s32.totalorder %s265, 15
      %s267 = scalar_select %p266, %s265, 15
      %s268 = smul.addr %s267, 8
      %s269 = scalar_lea.vmem %s1, %s268
      %s270 = smul.u32 8, %s17
      %s271 = smul.u32 8, %s17
      %p272 = scmp.lt.s32.totalorder %s271, 15
      %s273 = scalar_select %p272, %s271, 15
      %s274 = smul.addr %s273, 8
      %s275 = scalar_lea.vmem %s6, %s274
      %s276 = smul.u32 8, %s17
      %v277 = vld [vmem:[%s263] sm:$0xff]
      %v278 = vld [vmem:[%s263 + $0x8] sm:$0xff]
      %v279 = vld [vmem:[%s263 + $0x10] sm:$0xff]
      %v280 = vld [vmem:[%s263 + $0x18] sm:$0xff]
      %v281 = vld [vmem:[%s263 + $0x20] sm:$0xff]
      %v282 = vld [vmem:[%s263 + $0x28] sm:$0xff]
      %v283 = vld [vmem:[%s263 + $0x30] sm:$0xff]
      %v284 = vld [vmem:[%s263 + $0x38] sm:$0xff]
      %v285 = vld [vmem:[%s2] sm:$0x1]
      %v287 = vlaneseq
      %v288 = vshrl.u32 %v287, 7
      %v289 = vsub.s32 0, %v288
      %v290 = vrot.slane %v285, %v289
      %v292 = vmul.f32 %v277, %v290
      %v293 = vmul.f32 %v278, %v290
      %v294 = vmul.f32 %v279, %v290
      %v295 = vmul.f32 %v280, %v290
      %v296 = vmul.f32 %v281, %v290
      %v297 = vmul.f32 %v282, %v290
      %v298 = vmul.f32 %v283, %v290
      %v299 = vmul.f32 %v284, %v290
      %v300 = vld [vmem:[%s3] sm:$0x1]
      %v302 = vlaneseq
      %v303 = vshrl.u32 %v302, 7
      %v304 = vsub.s32 0, %v303
      %v305 = vrot.slane %v300, %v304
      %v307 = vadd.f32 %v292, %v305
      %v308 = vadd.f32 %v293, %v305
      %v309 = vadd.f32 %v294, %v305
      %v310 = vadd.f32 %v295, %v305
      %v311 = vadd.f32 %v296, %v305
      %v312 = vadd.f32 %v297, %v305
      %v313 = vadd.f32 %v298, %v305
      %v314 = vadd.f32 %v299, %v305
      %v315 = vld [vmem:[%s269] sm:$0xff]
      %v316 = vld [vmem:[%s269 + $0x8] sm:$0xff]
      %v317 = vld [vmem:[%s269 + $0x10] sm:$0xff]
      %v318 = vld [vmem:[%s269 + $0x18] sm:$0xff]
      %v319 = vld [vmem:[%s269 + $0x20] sm:$0xff]
      %v320 = vld [vmem:[%s269 + $0x28] sm:$0xff]
      %v321 = vld [vmem:[%s269 + $0x30] sm:$0xff]
      %v322 = vld [vmem:[%s269 + $0x38] sm:$0xff]
      %v323 = vld [vmem:[%s4] sm:$0x1]
      %v325 = vlaneseq
      %v326 = vshrl.u32 %v325, 7
      %v327 = vsub.s32 0, %v326
      %v328 = vrot.slane %v323, %v327
      %v330 = vmul.f32 %v315, %v328
      %v331 = vmul.f32 %v316, %v328
      %v332 = vmul.f32 %v317, %v328
      %v333 = vmul.f32 %v318, %v328
      %v334 = vmul.f32 %v319, %v328
      %v335 = vmul.f32 %v320, %v328
      %v336 = vmul.f32 %v321, %v328
      %v337 = vmul.f32 %v322, %v328
      %v338 = vadd.f32 %v307, %v330
      %v339 = vadd.f32 %v308, %v331
      %v340 = vadd.f32 %v309, %v332
      %v341 = vadd.f32 %v310, %v333
      %v342 = vadd.f32 %v311, %v334
      %v343 = vadd.f32 %v312, %v335
      %v344 = vadd.f32 %v313, %v336
      %v345 = vadd.f32 %v314, %v337
      %v346 = vld [vmem:[%s5] sm:$0x1]
      %v348 = vlaneseq
      %v349 = vshrl.u32 %v348, 7
      %v350 = vsub.s32 0, %v349
      %v351 = vrot.slane %v346, %v350
      %v353 = vadd.f32 %v338, %v351
      %v354 = vadd.f32 %v339, %v351
      %v355 = vadd.f32 %v340, %v351
      %v356 = vadd.f32 %v341, %v351
      %v357 = vadd.f32 %v342, %v351
      %v358 = vadd.f32 %v343, %v351
      %v359 = vadd.f32 %v344, %v351
      %v360 = vadd.f32 %v345, %v351
      %v361 = vmax.f32 %v353, 0.0
      %v362 = vmax.f32 %v354, 0.0
      %v363 = vmax.f32 %v355, 0.0
      %v364 = vmax.f32 %v356, 0.0
      %v365 = vmax.f32 %v357, 0.0
      %v366 = vmax.f32 %v358, 0.0
      %v367 = vmax.f32 %v359, 0.0
      %v368 = vmax.f32 %v360, 0.0
      %369 = vst [vmem:[%s275] sm:$0xff] %v361
      %370 = vst [vmem:[%s275 + $0x8] sm:$0xff] %v362
      %371 = vst [vmem:[%s275 + $0x10] sm:$0xff] %v363
      %372 = vst [vmem:[%s275 + $0x18] sm:$0xff] %v364
      %373 = vst [vmem:[%s275 + $0x20] sm:$0xff] %v365
      %374 = vst [vmem:[%s275 + $0x28] sm:$0xff] %v366
      %375 = vst [vmem:[%s275 + $0x30] sm:$0xff] %v367
      %376 = vst [vmem:[%s275 + $0x38] sm:$0xff] %v368
      %s377 = smul.u32 8, %s17
      %p378 = scmp.lt.s32.totalorder %s377, 15
      %s379 = scalar_select %p378, %s377, 15
      %s380 = smul.addr %s379, 8
      %s381 = scalar_lea.vmem %s6, %s380
      // Predicated region
      $region45: #{adapter_forward.5} parent=43 // pred_check
        %p382 = pneg %p171
      $region46: #{adapter_forward.5} parent=43 // pred_check_branch
        %384 = sbr.rel (%p382) target = $region48
      $region47: #{adapter_forward.5} parent=43 // pred_region
        %s385 = smul.u32 8, %s17
      $region48: #{adapter_forward.5} parent=43 // pred_fallthru
        _
    $region44: #{adapter_forward.5} parent=5 // pred_fallthru
      _
    %p386 = scmp.le.s32.totalorder 2, %s12
    // Predicated region
    $region49: #{adapter_forward.5} parent=5 // pred_check
      %p387 = pneg %p386
    $region50: #{adapter_forward.5} parent=5 // pred_check_branch
      %389 = sbr.rel (%p387) target = $region52
    $region51: #{adapter_forward.5} parent=5 // pred_region
      %s390 = ssub.s32 %s12, 2
      // Predicated region
      $region53: #{adapter_forward.5} parent=51 // pred_check
        %p391 = pneg %p177
      $region54: #{adapter_forward.5} parent=51 // pred_check_branch
        %393 = sbr.rel (%p391) target = $region56
      $region55: #{adapter_forward.5} parent=51 // pred_region
        %s394 = smul.u32 8, %s18
        %p395 = scmp.lt.s32.totalorder %s394, 15
        %s396 = scalar_select %p395, %s394, 15
        %s397 = smul.addr %s396, 8
        %s398 = scalar_lea.vmem %s6, %s397
      $region56: #{adapter_forward.5} parent=51 // pred_fallthru
        _
    $region52: #{adapter_forward.5} parent=5 // pred_fallthru
      _
  $region6: #{adapter_forward.5} parent=0 // loop_footer
    %s16 = sadd.s32 1, %s12
  $region7: #{adapter_forward.5} parent=0 // loop_footer_branch
    %11 = sbr.rel target = $region3
  $region8: #{adapter_forward.5} parent=0 // loop_exit
    _

// kernel: adapter_forward.4
$region0: #{adapter_forward.4}
  #allocation0 [shape = 'u32[]', space=smem, size = 0x4, offset = 0x4, fixed_abs, tag = 'smem constant byte address 0x4 - core index']
  #allocation1 [shape = 'u32[144,128]{1,0:T(1,128)}', space=vmem, size = 0x12000, scoped, tag = 'internal scratch']
  #allocation2 [shape = 'f32[1,18,18,64]{3,2,1,0:T(8,128)}', space=vmem, size = 0x36000, scoped, tag = 'scratch operand']
  #allocation3 [shape = 'f32[256,576]{1,0:T(8,128)}', space=vmem, size = 0xa0000, scoped, tag = 'scratch operand']
  %s0 = inlined_call_operand.vmem [shape: f32[2,256,96], index: 0, kind: input, shape index: {}]
  %s1 = inlined_call_operand.vmem [shape: f32[1,64], index: 1, kind: input, shape index: {}]
  %s2 = inlined_call_operand.vmem [shape: f32[1,64], index: 2, kind: input, shape index: {}]
  %s3 = inlined_call_operand.vmem [shape: f32[576,32], index: 3, kind: input, shape index: {}]
  %s4 = inlined_call_operand.vmem [shape: f32[2,256,32], index: 4, kind: output, shape index: {0}]
  %s5 = inlined_call_operand.vmem [shape: f32[2,1,32], index: 5, kind: output, shape index: {1}]
  %s6 = inlined_call_operand.vmem [shape: f32[2,1,32], index: 6, kind: output, shape index: {2}]
  %7 = xla_tuple %s4, %s5, %s6
  %s8 = sld [smem:[#allocation0]]
  $region65: #{adapter_forward.4} parent=0
    _
  %s10 = ssub.s32 1, %s8
  %s11 = scalar_select 0, %s10, %s8
  loop: start=0, step=1, limit=4
  $region2: #{adapter_forward.4} parent=0 // loop_pre_header
    _
  $region3: #{adapter_forward.4} parent=0 // loop_header
    %s13 = sphi 0, %s17
    %p14 = scmp.ge.s32.totalorder %s13, 4
    %s23 = sphi 0, %s25
    %s26 = sphi 0, %s23
    %s27 = sphi 0, %s26
    %s43 = sphi 0, %s27
    %s47 = sphi 0, %s47
    %s49 = sphi 0, %s47
    %s50 = sphi 0, %s49
    %s64 = sphi 0, %s50
    %s68 = sphi 0, %s68
    %s70 = sphi 0, %s68
    %s71 = sphi 0, %s70
    %s85 = sphi 0, %s71
    %s89 = sphi 0, %s89
    %s91 = sphi 0, %s89
    %s92 = sphi 0, %s91
    %s106 = sphi 0, %s92
    %s112 = sphi 0, %s114
    %s115 = sphi 0, %s112
    %s116 = sphi 0, %s115
    %s132 = sphi 0, %s116
    %s138 = sphi 0, %s140
    %s141 = sphi 0, %s138
    %s142 = sphi 0, %s141
    %s158 = sphi 0, %s142
    %s164 = sphi 0, %s166
    %s167 = sphi 0, %s164
    %s168 = sphi 0, %s167
    %s184 = sphi 0, %s168
  $region4: #{adapter_forward.4} parent=0 // loop_header_branch
    %16 = sbr.rel (%p14) target = $region8
  $region5: #{adapter_forward.4} parent=0 // loop_body
    %s18 = ssub.s32 %s13, 1
    %s19 = ssub.s32 %s13, 2
    %s20 = sadd.s32 %s13, 1
    %s21 = ssub.s32 %s13, %s20
    %p22 = scmp.eq.s32.totalorder %s21, 0
    %s24 = sadd.s32 %s23, 1
    %s25 = scalar_select %p22, %s23, %s24
    %p28 = pneg %p22
    %p29 = scmp.eq.s32.totalorder %s13, 1
    %p30 = por %p28, %p29
    %p31 = scmp.ne.s32.totalorder %s23, %s26
    %p32 = scmp.eq.s32.totalorder %s13, 0
    %p33 = por %p31, %p32
    %p34 = scmp.ne.s32.totalorder %s23, %s26
    %p35 = scmp.eq.s32.totalorder %s18, 1
    %p36 = por %p34, %p35
    %p37 = scmp.ne.s32.totalorder %s26, %s27
    %p38 = scmp.eq.s32.totalorder %s18, 0
    %p39 = por %p37, %p38
    %p40 = scmp.ne.s32.totalorder %s26, %s27
    %p41 = scmp.eq.s32.totalorder %s19, 1
    %p42 = por %p40, %p41
    %p44 = scmp.ne.s32.totalorder %s27, %s43
    %p45 = scmp.eq.s32.totalorder %s19, 0
    %p46 = por %p44, %p45
    %s48 = sadd.s32 %s47, 1
    %p51 = scmp.eq.s32.totalorder %s13, 1
    %p52 = scmp.ne.s32.totalorder %s47, %s49
    %p53 = scmp.eq.s32.totalorder %s13, 0
    %p54 = por %p52, %p53
    %p55 = scmp.ne.s32.totalorder %s47, %s49
    %p56 = scmp.eq.s32.totalorder %s18, 1
    %p57 = por %p55, %p56
    %p58 = scmp.ne.s32.totalorder %s49, %s50
    %p59 = scmp.eq.s32.totalorder %s18, 0
    %p60 = por %p58, %p59
    %p61 = scmp.ne.s32.totalorder %s49, %s50
    %p62 = scmp.eq.s32.totalorder %s19, 1
    %p63 = por %p61, %p62
    %p65 = scmp.ne.s32.totalorder %s50, %s64
    %p66 = scmp.eq.s32.totalorder %s19, 0
    %p67 = por %p65, %p66
    %s69 = sadd.s32 %s68, 1
    %p72 = scmp.eq.s32.totalorder %s13, 1
    %p73 = scmp.ne.s32.totalorder %s68, %s70
    %p74 = scmp.eq.s32.totalorder %s13, 0
    %p75 = por %p73, %p74
    %p76 = scmp.ne.s32.totalorder %s68, %s70
    %p77 = scmp.eq.s32.totalorder %s18, 1
    %p78 = por %p76, %p77
    %p79 = scmp.ne.s32.totalorder %s70, %s71
    %p80 = scmp.eq.s32.totalorder %s18, 0
    %p81 = por %p79, %p80
    %p82 = scmp.ne.s32.totalorder %s70, %s71
    %p83 = scmp.eq.s32.totalorder %s19, 1
    %p84 = por %p82, %p83
    %p86 = scmp.ne.s32.totalorder %s71, %s85
    %p87 = scmp.eq.s32.totalorder %s19, 0
    %p88 = por %p86, %p87
    %s90 = sadd.s32 %s89, 1
    %p93 = scmp.eq.s32.totalorder %s13, 1
    %p94 = scmp.ne.s32.totalorder %s89, %s91
    %p95 = scmp.eq.s32.totalorder %s13, 0
    %p96 = por %p94, %p95
    %p97 = scmp.ne.s32.totalorder %s89, %s91
    %p98 = scmp.eq.s32.totalorder %s18, 1
    %p99 = por %p97, %p98
    %p100 = scmp.ne.s32.totalorder %s91, %s92
    %p101 = scmp.eq.s32.totalorder %s18, 0
    %p102 = por %p100, %p101
    %p103 = scmp.ne.s32.totalorder %s91, %s92
    %p104 = scmp.eq.s32.totalorder %s19, 1
    %p105 = por %p103, %p104
    %p107 = scmp.ne.s32.totalorder %s92, %s106
    %p108 = scmp.eq.s32.totalorder %s19, 0
    %p109 = por %p107, %p108
    %s110 = ssub.s32 %s13, %s20
    %p111 = scmp.eq.s32.totalorder %s110, 0
    %s113 = sadd.s32 %s112, 1
    %s114 = scalar_select %p111, %s112, %s113
    %p117 = pneg %p111
    %p118 = scmp.eq.s32.totalorder %s13, 1
    %p119 = por %p117, %p118
    %p120 = scmp.ne.s32.totalorder %s112, %s115
    %p121 = scmp.eq.s32.totalorder %s13, 0
    %p122 = por %p120, %p121
    %p123 = scmp.ne.s32.totalorder %s112, %s115
    %p124 = scmp.eq.s32.totalorder %s18, 1
    %p125 = por %p123, %p124
    %p126 = scmp.ne.s32.totalorder %s115, %s116
    %p127 = scmp.eq.s32.totalorder %s18, 0
    %p128 = por %p126, %p127
    %p129 = scmp.ne.s32.totalorder %s115, %s116
    %p130 = scmp.eq.s32.totalorder %s19, 1
    %p131 = por %p129, %p130
    %p133 = scmp.ne.s32.totalorder %s116, %s132
    %p134 = scmp.eq.s32.totalorder %s19, 0
    %p135 = por %p133, %p134
    %s136 = ssub.s32 %s13, %s20
    %p137 = scmp.eq.s32.totalorder %s136, 0
    %s139 = sadd.s32 %s138, 1
    %s140 = scalar_select %p137, %s138, %s139
    %p143 = pneg %p137
    %p144 = scmp.eq.s32.totalorder %s13, 1
    %p145 = por %p143, %p144
    %p146 = scmp.ne.s32.totalorder %s138, %s141
    %p147 = scmp.eq.s32.totalorder %s13, 0
    %p148 = por %p146, %p147
    %p149 = scmp.ne.s32.totalorder %s138, %s141
    %p150 = scmp.eq.s32.totalorder %s18, 1
    %p151 = por %p149, %p150
    %p152 = scmp.ne.s32.totalorder %s141, %s142
    %p153 = scmp.eq.s32.totalorder %s18, 0
    %p154 = por %p152, %p153
    %p155 = scmp.ne.s32.totalorder %s141, %s142
    %p156 = scmp.eq.s32.totalorder %s19, 1
    %p157 = por %p155, %p156
    %p159 = scmp.ne.s32.totalorder %s142, %s158
    %p160 = scmp.eq.s32.totalorder %s19, 0
    %p161 = por %p159, %p160
    %s162 = ssub.s32 %s13, %s20
    %p163 = scmp.eq.s32.totalorder %s162, 0
    %s165 = sadd.s32 %s164, 1
    %s166 = scalar_select %p163, %s164, %s165
    %p169 = pneg %p163
    %p170 = scmp.eq.s32.totalorder %s13, 1
    %p171 = por %p169, %p170
    %p172 = scmp.ne.s32.totalorder %s164, %s167
    %p173 = scmp.eq.s32.totalorder %s13, 0
    %p174 = por %p172, %p173
    %p175 = scmp.ne.s32.totalorder %s164, %s167
    %p176 = scmp.eq.s32.totalorder %s18, 1
    %p177 = por %p175, %p176
    %p178 = scmp.ne.s32.totalorder %s167, %s168
    %p179 = scmp.eq.s32.totalorder %s18, 0
    %p180 = por %p178, %p179
    %p181 = scmp.ne.s32.totalorder %s167, %s168
    %p182 = scmp.eq.s32.totalorder %s19, 1
    %p183 = por %p181, %p182
    %p185 = scmp.ne.s32.totalorder %s168, %s184
    %p186 = scmp.eq.s32.totalorder %s19, 0
    %p187 = por %p185, %p186
    %p188 = scmp.le.s32.totalorder 1, %s13
    %p189 = scmp.lt.s32.totalorder %s13, 3
    %p190 = pnand %p188, %p189
    %p191 = pneg %p190
    // Predicated region
    $region9: #{adapter_forward.4} parent=5 // pred_check
      _
    $region10: #{adapter_forward.4} parent=5 // pred_check_branch
      %193 = sbr.rel (%p190) target = $region12
    $region11: #{adapter_forward.4} parent=5 // pred_region
      %s194 = ssub.s32 %s13, 1
      // Predicated region
      $region13: #{adapter_forward.4} parent=11 // pred_check
        %p195 = pneg %p60
      $region14: #{adapter_forward.4} parent=11 // pred_check_branch
        %197 = sbr.rel (%p195) target = $region16
      $region15: #{adapter_forward.4} parent=11 // pred_region
        _
      $region16: #{adapter_forward.4} parent=11 // pred_fallthru
        _
      // Predicated region
      $region17: #{adapter_forward.4} parent=11 // pred_check
        %p198 = pneg %p81
      $region18: #{adapter_forward.4} parent=11 // pred_check_branch
        %200 = sbr.rel (%p198) target = $region20
      $region19: #{adapter_forward.4} parent=11 // pred_region
        _
      $region20: #{adapter_forward.4} parent=11 // pred_fallthru
        _
      // Predicated region
      $region21: #{adapter_forward.4} parent=11 // pred_check
        %p201 = pneg %p102
      $region22: #{adapter_forward.4} parent=11 // pred_check_branch
        %203 = sbr.rel (%p201) target = $region24
      $region23: #{adapter_forward.4} parent=11 // pred_region
        _
      $region24: #{adapter_forward.4} parent=11 // pred_fallthru
        _
    $region12: #{adapter_forward.4} parent=5 // pred_fallthru
      _
    %p204 = scmp.lt.s32.totalorder %s13, 2
    // Predicated region
    $region25: #{adapter_forward.4} parent=5 // pred_check
      %p205 = pneg %p204
    $region26: #{adapter_forward.4} parent=5 // pred_check_branch
      %207 = sbr.rel (%p205) target = $region28
    $region27: #{adapter_forward.4} parent=5 // pred_region
      // Predicated region
      $region29: #{adapter_forward.4} parent=27 // pred_check
        %p208 = pneg %p33
      $region30: #{adapter_forward.4} parent=27 // pred_check_branch
        %210 = sbr.rel (%p208) target = $region32
      $region31: #{adapter_forward.4} parent=27 // pred_region
        %p211 = scmp.lt.s32.totalorder %s13, 1
        %s212 = scalar_select %p211, %s13, 1
        %s213 = smul.addr %s212, 32
        %s214 = smul.addr %s213, 8
        %s215 = scalar_lea.vmem %s0, %s214
      $region32: #{adapter_forward.4} parent=27 // pred_fallthru
        _
    $region28: #{adapter_forward.4} parent=5 // pred_fallthru
      _
    %p216 = scmp.le.s32.totalorder 1, %s13
    %p217 = scmp.lt.s32.totalorder %s13, 3
    %p218 = pnand %p216, %p217
    %p219 = pneg %p218
    // Predicated region
    $region33: #{adapter_forward.4} parent=5 // pred_check
      _
    $region34: #{adapter_forward.4} parent=5 // pred_check_branch
      %221 = sbr.rel (%p218) target = $region36
    $region35: #{adapter_forward.4} parent=5 // pred_region
      %s222 = ssub.s32 %s13, 1
      %p223 = scmp.lt.s32.totalorder %s18, 1
      %s224 = scalar_select %p223, %s18, 1
      %s225 = smul.addr %s224, 32
      %s226 = smul.addr %s225, 8
      %s227 = scalar_lea.vmem %s0, %s226
      %p228 = pneg %p39
      %p229 = pneg %p36
      %p230 = pneg %p60
      %p231 = pneg %p57
      %p232 = pneg %p81
      %p233 = pneg %p78
      %p234 = pneg %p102
      %p235 = pneg %p99
      %p236 = pneg %p128
      %p237 = pneg %p125
      %p238 = scmp.lt.s32.totalorder %s18, 1
      %s239 = scalar_select %p238, %s18, 1
      %s240 = smul.addr %s239, 32
      %s241 = smul.addr %s240, 8
      %s242 = scalar_lea.vmem %s4, %s241
      %p243 = pneg %p154
      %p244 = pneg %p151
      %p245 = scmp.lt.s32.totalorder %s18, 1
      %s246 = scalar_select %p245, %s18, 1
      %s247 = scalar_lea.vmem %s5, %s246
      %p248 = pneg %p180
      %p249 = pneg %p177
      %p250 = scmp.lt.s32.totalorder %s18, 1
      %s251 = scalar_select %p250, %s18, 1
      %s252 = scalar_lea.vmem %s6, %s251
      %p253 = scmp.lt.s32.totalorder %s18, 1
      %s254 = scalar_select %p253, %s18, 1
      %s255 = smul.addr %s254, 32
      %s256 = smul.addr %s255, 8
      %s257 = scalar_lea.vmem %s0, %s256
      %p258 = scmp.lt.s32.totalorder %s18, 1
      %s259 = scalar_select %p258, %s18, 1
      %s260 = smul.addr %s259, 32
      %s261 = smul.addr %s260, 8
      %s262 = scalar_lea.vmem %s4, %s261
      %p263 = scmp.lt.s32.totalorder %s18, 1
      %s264 = scalar_select %p263, %s18, 1
      %s265 = scalar_lea.vmem %s5, %s264
      %p266 = scmp.lt.s32.totalorder %s18, 1
      %s267 = scalar_select %p266, %s18, 1
      %s268 = scalar_lea.vmem %s6, %s267
      %v269 = vld [vmem:[%s1] sm:$0x1]
      %v270 = vld [vmem:[%s2] sm:$0x1]
      %vm271 = vcmask 523264
      %272 = vst.msk [vmem:[#allocation2] sm:$0xff] %vm271, 0.0
      %273 = vst.msk [vmem:[#allocation2 + $0x8] sm:$0xff] %vm271, 0.0
      %vm274 = vcmask 517120
      %275 = vst.msk [vmem:[#allocation2 + $0x10] sm:$0x3] %vm274, 0.0
      %276 = vst.msk [vmem:[#allocation2 + $0x18] sm:$0xff] %vm271, 0.0
      %277 = vst.msk [vmem:[#allocation2 + $0x20] sm:$0xff] %vm271, 0.0
      %278 = vst.msk [vmem:[#allocation2 + $0x28] sm:$0x3] %vm274, 0.0
      %279 = vst.msk [vmem:[#allocation2 + $0x30] sm:$0xff] %vm271, 0.0
      %280 = vst.msk [vmem:[#allocation2 + $0x38] sm:$0xff] %vm271, 0.0
      %281 = vst.msk [vmem:[#allocation2 + $0x40] sm:$0x3] %vm274, 0.0
      %282 = vst.msk [vmem:[#allocation2 + $0x48] sm:$0xff] %vm271, 0.0
      %283 = vst.msk [vmem:[#allocation2 + $0x50] sm:$0xff] %vm271, 0.0
      %284 = vst.msk [vmem:[#allocation2 + $0x58] sm:$0x3] %vm274, 0.0
      %285 = vst.msk [vmem:[#allocation2 + $0x60] sm:$0xff] %vm271, 0.0
      %286 = vst.msk [vmem:[#allocation2 + $0x68] sm:$0xff] %vm271, 0.0
      %287 = vst.msk [vmem:[#allocation2 + $0x70] sm:$0x3] %vm274, 0.0
      %288 = vst.msk [vmem:[#allocation2 + $0x78] sm:$0xff] %vm271, 0.0
      %289 = vst.msk [vmem:[#allocation2 + $0x80] sm:$0xff] %vm271, 0.0
      %290 = vst.msk [vmem:[#allocation2 + $0x88] sm:$0x3] %vm274, 0.0
      %291 = vst.msk [vmem:[#allocation2 + $0x90] sm:$0xff] %vm271, 0.0
      %292 = vst.msk [vmem:[#allocation2 + $0x98] sm:$0xff] %vm271, 0.0
      %293 = vst.msk [vmem:[#allocation2 + $0xa0] sm:$0x3] %vm274, 0.0
      %294 = vst.msk [vmem:[#allocation2 + $0xa8] sm:$0xff] %vm271, 0.0
      %295 = vst.msk [vmem:[#allocation2 + $0xb0] sm:$0xff] %vm271, 0.0
      %296 = vst.msk [vmem:[#allocation2 + $0xb8] sm:$0x3] %vm274, 0.0
      %297 = vst.msk [vmem:[#allocation2 + $0xc0] sm:$0xff] %vm271, 0.0
      %298 = vst.msk [vmem:[#allocation2 + $0xc8] sm:$0xff] %vm271, 0.0
      %299 = vst.msk [vmem:[#allocation2 + $0xd0] sm:$0x3] %vm274, 0.0
      %300 = vst.msk [vmem:[#allocation2 + $0xd8] sm:$0xff] %vm271, 0.0
      %301 = vst.msk [vmem:[#allocation2 + $0xe0] sm:$0xff] %vm271, 0.0
      %302 = vst.msk [vmem:[#allocation2 + $0xe8] sm:$0x3] %vm274, 0.0
      %303 = vst.msk [vmem:[#allocation2 + $0xf0] sm:$0xff] %vm271, 0.0
      %304 = vst.msk [vmem:[#allocation2 + $0xf8] sm:$0xff] %vm271, 0.0
      %305 = vst.msk [vmem:[#allocation2 + $0x100] sm:$0x3] %vm274, 0.0
      %306 = vst.msk [vmem:[#allocation2 + $0x108] sm:$0xff] %vm271, 0.0
      %307 = vst.msk [vmem:[#allocation2 + $0x110] sm:$0xff] %vm271, 0.0
      %308 = vst.msk [vmem:[#allocation2 + $0x118] sm:$0x3] %vm274, 0.0
      %309 = vst.msk [vmem:[#allocation2 + $0x120] sm:$0xff] %vm271, 0.0
      %310 = vst.msk [vmem:[#allocation2 + $0x128] sm:$0xff] %vm271, 0.0
      %311 = vst.msk [vmem:[#allocation2 + $0x130] sm:$0x3] %vm274, 0.0
      %312 = vst.msk [vmem:[#allocation2 + $0x138] sm:$0xff] %vm271, 0.0
      %313 = vst.msk [vmem:[#allocation2 + $0x140] sm:$0xff] %vm271, 0.0
      %314 = vst.msk [vmem:[#allocation2 + $0x148] sm:$0x3] %vm274, 0.0
      %315 = vst.msk [vmem:[#allocation2 + $0x150] sm:$0xff] %vm271, 0.0
      %316 = vst.msk [vmem:[#allocation2 + $0x158] sm:$0xff] %vm271, 0.0
      %317 = vst.msk [vmem:[#allocation2 + $0x160] sm:$0x3] %vm274, 0.0
      %318 = vst.msk [vmem:[#allocation2 + $0x168] sm:$0xff] %vm271, 0.0
      %319 = vst.msk [vmem:[#allocation2 + $0x170] sm:$0xff] %vm271, 0.0
      %320 = vst.msk [vmem:[#allocation2 + $0x178] sm:$0x3] %vm274, 0.0
      %321 = vst.msk [vmem:[#allocation2 + $0x180] sm:$0xff] %vm271, 0.0
      %322 = vst.msk [vmem:[#allocation2 + $0x188] sm:$0xff] %vm271, 0.0
      %323 = vst.msk [vmem:[#allocation2 + $0x190] sm:$0x3] %vm274, 0.0
      %324 = vst.msk [vmem:[#allocation2 + $0x198] sm:$0xff] %vm271, 0.0
      %325 = vst.msk [vmem:[#allocation2 + $0x1a0] sm:$0xff] %vm271, 0.0
      %326 = vst.msk [vmem:[#allocation2 + $0x1a8] sm:$0x3] %vm274, 0.0
      %v327 = vld [vmem:[%s257] sm:$0xff]
      %v328 = vld [vmem:[%s257 + $0x8] sm:$0xff]
      %v329 = vld [vmem:[%s257 + $0x10] sm:$0xff]
      %v330 = vld [vmem:[%s257 + $0x18] sm:$0xff]
      %v331 = vld [vmem:[%s257 + $0x20] sm:$0xff]
      %v332 = vld [vmem:[%s257 + $0x28] sm:$0xff]
      %v333 = vld [vmem:[%s257 + $0x30] sm:$0xff]
      %v334 = vld [vmem:[%s257 + $0x38] sm:$0xff]
      %v335 = vld [vmem:[%s257 + $0x40] sm:$0xff]
      %v336 = vld [vmem:[%s257 + $0x48] sm:$0xff]
      %v337 = vld [vmem:[%s257 + $0x50] sm:$0xff]
      %v338 = vld [vmem:[%s257 + $0x58] sm:$0xff]
      %v339 = vld [vmem:[%s257 + $0x60] sm:$0xff]
      %v340 = vld [vmem:[%s257 + $0x68] sm:$0xff]
      %v341 = vld [vmem:[%s257 + $0x70] sm:$0xff]
      %v342 = vld [vmem:[%s257 + $0x78] sm:$0xff]
      %v343 = vld [vmem:[%s257 + $0x80] sm:$0xff]
      %v344 = vld [vmem:[%s257 + $0x88] sm:$0xff]
      %v345 = vld [vmem:[%s257 + $0x90] sm:$0xff]
      %v346 = vld [vmem:[%s257 + $0x98] sm:$0xff]
      %v347 = vld [vmem:[%s257 + $0xa0] sm:$0xff]
      %v348 = vld [vmem:[%s257 + $0xa8] sm:$0xff]
      %v349 = vld [vmem:[%s257 + $0xb0] sm:$0xff]
      %v350 = vld [vmem:[%s257 + $0xb8] sm:$0xff]
      %v351 = vld [vmem:[%s257 + $0xc0] sm:$0xff]
      %v352 = vld [vmem:[%s257 + $0xc8] sm:$0xff]
      %v353 = vld [vmem:[%s257 + $0xd0] sm:$0xff]
      %v354 = vld [vmem:[%s257 + $0xd8] sm:$0xff]
      %v355 = vld [vmem:[%s257 + $0xe0] sm:$0xff]
      %v356 = vld [vmem:[%s257 + $0xe8] sm:$0xff]
      %v357 = vld [vmem:[%s257 + $0xf0] sm:$0xff]
      %v358 = vld [vmem:[%s257 + $0xf8] sm:$0xff]
      %v360 = vlaneseq
      %v361 = vshrl.u32 %v360, 7
      %v362 = vsub.s32 0, %v361
      %v363 = vrot.slane %v269, %v362
      %v365 = vmul.f32 %v327, %v363
      %v366 = vmul.f32 %v328, %v363
      %v367 = vmul.f32 %v329, %v363
      %v368 = vmul.f32 %v330, %v363
      %v369 = vmul.f32 %v331, %v363
      %v370 = vmul.f32 %v332, %v363
      %v371 = vmul.f32 %v333, %v363
      %v372 = vmul.f32 %v334, %v363
      %v373 = vmul.f32 %v335, %v363
      %v374 = vmul.f32 %v336, %v363
      %v375 = vmul.f32 %v337, %v363
      %v376 = vmul.f32 %v338, %v363
      %v377 = vmul.f32 %v339, %v363
      %v378 = vmul.f32 %v340, %v363
      %v379 = vmul.f32 %v341, %v363
      %v380 = vmul.f32 %v342, %v363
      %v381 = vmul.f32 %v343, %v363
      %v382 = vmul.f32 %v344, %v363
      %v383 = vmul.f32 %v345, %v363
      %v384 = vmul.f32 %v346, %v363
      %v385 = vmul.f32 %v347, %v363
      %v386 = vmul.f32 %v348, %v363
      %v387 = vmul.f32 %v349, %v363
      %v388 = vmul.f32 %v350, %v363
      %v389 = vmul.f32 %v351, %v363
      %v390 = vmul.f32 %v352, %v363
      %v391 = vmul.f32 %v353, %v363
      %v392 = vmul.f32 %v354, %v363
      %v393 = vmul.f32 %v355, %v363
      %v394 = vmul.f32 %v356, %v363
      %v395 = vmul.f32 %v357, %v363
      %v396 = vmul.f32 %v358, %v363
      %v398 = vlaneseq
      %v399 = vshrl.u32 %v398, 7
      %v400 = vsub.s32 0, %v399
      %v401 = vrot.slane %v270, %v400
      %v403 = vadd.f32 %v365, %v401
      %v404 = vadd.f32 %v366, %v401
      %v405 = vadd.f32 %v367, %v401
      %v406 = vadd.f32 %v368, %v401
      %v407 = vadd.f32 %v369, %v401
      %v408 = vadd.f32 %v370, %v401
      %v409 = vadd.f32 %v371, %v401
      %v410 = vadd.f32 %v372, %v401
      %v411 = vadd.f32 %v373, %v401
      %v412 = vadd.f32 %v374, %v401
      %v413 = vadd.f32 %v375, %v401
      %v414 = vadd.f32 %v376, %v401
      %v415 = vadd.f32 %v377, %v401
      %v416 = vadd.f32 %v378, %v401
      %v417 = vadd.f32 %v379, %v401
      %v418 = vadd.f32 %v380, %v401
      %v419 = vadd.f32 %v381, %v401
      %v420 = vadd.f32 %v382, %v401
      %v421 = vadd.f32 %v383, %v401
      %v422 = vadd.f32 %v384, %v401
      %v423 = vadd.f32 %v385, %v401
      %v424 = vadd.f32 %v386, %v401
      %v425 = vadd.f32 %v387, %v401
      %v426 = vadd.f32 %v388, %v401
      %v427 = vadd.f32 %v389, %v401
      %v428 = vadd.f32 %v390, %v401
      %v429 = vadd.f32 %v391, %v401
      %v430 = vadd.f32 %v392, %v401
      %v431 = vadd.f32 %v393, %v401
      %v432 = vadd.f32 %v394, %v401
      %v433 = vadd.f32 %v395, %v401
      %v434 = vadd.f32 %v396, %v401
      %v435 = vmax.f32 %v403, 0.0
      %v436 = vmax.f32 %v404, 0.0
      %v437 = vmax.f32 %v405, 0.0
      %v438 = vmax.f32 %v406, 0.0
      %v439 = vmax.f32 %v407, 0.0
      %v440 = vmax.f32 %v408, 0.0
      %v441 = vmax.f32 %v409, 0.0
      %v442 = vmax.f32 %v410, 0.0
      %v443 = vmax.f32 %v411, 0.0
      %v444 = vmax.f32 %v412, 0.0
      %v445 = vmax.f32 %v413, 0.0
      %v446 = vmax.f32 %v414, 0.0
      %v447 = vmax.f32 %v415, 0.0
      %v448 = vmax.f32 %v416, 0.0
      %v449 = vmax.f32 %v417, 0.0
      %v450 = vmax.f32 %v418, 0.0
      %v451 = vmax.f32 %v419, 0.0
      %v452 = vmax.f32 %v420, 0.0
      %v453 = vmax.f32 %v421, 0.0
      %v454 = vmax.f32 %v422, 0.0
      %v455 = vmax.f32 %v423, 0.0
      %v456 = vmax.f32 %v424, 0.0
      %v457 = vmax.f32 %v425, 0.0
      %v458 = vmax.f32 %v426, 0.0
      %v459 = vmax.f32 %v427, 0.0
      %v460 = vmax.f32 %v428, 0.0
      %v461 = vmax.f32 %v429, 0.0
      %v462 = vmax.f32 %v430, 0.0
      %v463 = vmax.f32 %v431, 0.0
      %v464 = vmax.f32 %v432, 0.0
      %v465 = vmax.f32 %v433, 0.0
      %v466 = vmax.f32 %v434, 0.0
      %s467 = scalar_lea.vmem [#allocation2], 24
      %468 = vst.msk [vmem:[%s467 + $0x1] sm:$0xff] %vm271, %v435
      %469 = vst.msk [vmem:[%s467 + $0x9] sm:$0xff] %vm271, %v436
      %470 = vst.msk [vmem:[%s467 + $0x19] sm:$0xff] %vm271, %v437
      %471 = vst.msk [vmem:[%s467 + $0x21] sm:$0xff] %vm271, %v438
      %472 = vst.msk [vmem:[%s467 + $0x31] sm:$0xff] %vm271, %v439
      %473 = vst.msk [vmem:[%s467 + $0x39] sm:$0xff] %vm271, %v440
      %474 = vst.msk [vmem:[%s467 + $0x49] sm:$0xff] %vm271, %v441
      %475 = vst.msk [vmem:[%s467 + $0x51] sm:$0xff] %vm271, %v442
      %476 = vst.msk [vmem:[%s467 + $0x61] sm:$0xff] %vm271, %v443
      %477 = vst.msk [vmem:[%s467 + $0x69] sm:$0xff] %vm271, %v444
      %478 = vst.msk [vmem:[%s467 + $0x79] sm:$0xff] %vm271, %v445
      %479 = vst.msk [vmem:[%s467 + $0x81] sm:$0xff] %vm271, %v446
      %480 = vst.msk [vmem:[%s467 + $0x91] sm:$0xff] %vm271, %v447
      %481 = vst.msk [vmem:[%s467 + $0x99] sm:$0xff] %vm271, %v448
      %482 = vst.msk [vmem:[%s467 + $0xa9] sm:$0xff] %vm271, %v449
      %483 = vst.msk [vmem:[%s467 + $0xb1] sm:$0xff] %vm271, %v450
      %484 = vst.msk [vmem:[%s467 + $0xc1] sm:$0xff] %vm271, %v451
      %485 = vst.msk [vmem:[%s467 + $0xc9] sm:$0xff] %vm271, %v452
      %486 = vst.msk [vmem:[%s467 + $0xd9] sm:$0xff] %vm271, %v453
      %487 = vst.msk [vmem:[%s467 + $0xe1] sm:$0xff] %vm271, %v454
      %488 = vst.msk [vmem:[%s467 + $0xf1] sm:$0xff] %vm271, %v455
      %489 = vst.msk [vmem:[%s467 + $0xf9] sm:$0xff] %vm271, %v456
      %490 = vst.msk [vmem:[%s467 + $0x109] sm:$0xff] %vm271, %v457
      %491 = vst.msk [vmem:[%s467 + $0x111] sm:$0xff] %vm271, %v458
      %492 = vst.msk [vmem:[%s467 + $0x121] sm:$0xff] %vm271, %v459
      %493 = vst.msk [vmem:[%s467 + $0x129] sm:$0xff] %vm271, %v460
      %494 = vst.msk [vmem:[%s467 + $0x139] sm:$0xff] %vm271, %v461
      %495 = vst.msk [vmem:[%s467 + $0x141] sm:$0xff] %vm271, %v462
      %496 = vst.msk [vmem:[%s467 + $0x151] sm:$0xff] %vm271, %v463
      %497 = vst.msk [vmem:[%s467 + $0x159] sm:$0xff] %vm271, %v464
      %498 = vst.msk [vmem:[%s467 + $0x169] sm:$0xff] %vm271, %v465
      %499 = vst.msk [vmem:[%s467 + $0x171] sm:$0xff] %vm271, %v466
      %v500 = vld [vmem:[#allocation2] sm:$0xff]
      %v501 = vld [vmem:[#allocation2 + $0x8] sm:$0xff]
      %v502 = vld [vmem:[#allocation2 + $0x18] sm:$0xff]
      %v503 = vld [vmem:[#allocation2 + $0x20] sm:$0xff]
      %v504 = vld [vmem:[#allocation2 + $0x30] sm:$0xff]
      %v505 = vld [vmem:[#allocation2 + $0x38] sm:$0xff]
      %v506 = vld [vmem:[#allocation2 + $0x48] sm:$0xff]
      %v507 = vld [vmem:[#allocation2 + $0x50] sm:$0xff]
      %v508 = vld [vmem:[#allocation2 + $0x60] sm:$0xff]
      %v509 = vld [vmem:[#allocation2 + $0x68] sm:$0xff]
      %v510 = vld [vmem:[#allocation2 + $0x78] sm:$0xff]
      %v511 = vld [vmem:[#allocation2 + $0x80] sm:$0xff]
      %v512 = vld [vmem:[#allocation2 + $0x90] sm:$0xff]
      %v513 = vld [vmem:[#allocation2 + $0x98] sm:$0xff]
      %v514 = vld [vmem:[#allocation2 + $0xa8] sm:$0xff]
      %v515 = vld [vmem:[#allocation2 + $0xb0] sm:$0xff]
      %v516 = vld [vmem:[#allocation2 + $0xc0] sm:$0xff]
      %v517 = vld [vmem:[#allocation2 + $0xc8] sm:$0xff]
      %v518 = vld [vmem:[#allocation2 + $0xd8] sm:$0xff]
      %v519 = vld [vmem:[#allocation2 + $0xe0] sm:$0xff]
      %v520 = vld [vmem:[#allocation2 + $0xf0] sm:$0xff]
      %v521 = vld [vmem:[#allocation2 + $0xf8] sm:$0xff]
      %v522 = vld [vmem:[#allocation2 + $0x108] sm:$0xff]
      %v523 = vld [vmem:[#allocation2 + $0x110] sm:$0xff]
      %v524 = vld [vmem:[#allocation2 + $0x120] sm:$0xff]
      %v525 = vld [vmem:[#allocation2 + $0x128] sm:$0xff]
      %v526 = vld [vmem:[#allocation2 + $0x138] sm:$0xff]
      %v527 = vld [vmem:[#allocation2 + $0x140] sm:$0xff]
      %v528 = vld [vmem:[#allocation2 + $0x150] sm:$0xff]
      %v529 = vld [vmem:[#allocation2 + $0x158] sm:$0xff]
      %v530 = vld [vmem:[#allocation2 + $0x168] sm:$0xff]
      %v531 = vld [vmem:[#allocation2 + $0x170] sm:$0xff]
      %532 = vst.msk [vmem:[#allocation3] sm:$0xff] %vm271, %v500
      %533 = vst.msk [vmem:[#allocation3 + $0x28] sm:$0xff] %vm271, %v501
      %534 = vst.msk [vmem:[#allocation3 + $0x50] sm:$0xff] %vm271, %v502
      %535 = vst.msk [vmem:[#allocation3 + $0x78] sm:$0xff] %vm271, %v503
      %536 = vst.msk [vmem:[#allocation3 + $0xa0] sm:$0xff] %vm271, %v504
      %537 = vst.msk [vmem:[#allocation3 + $0xc8] sm:$0xff] %vm271, %v505
      %538 = vst.msk [vmem:[#allocation3 + $0xf0] sm:$0xff] %vm271, %v506
      %539 = vst.msk [vmem:[#allocation3 + $0x118] sm:$0xff] %vm271, %v507
      %540 = vst.msk [vmem:[#allocation3 + $0x140] sm:$0xff] %vm271, %v508
      %541 = vst.msk [vmem:[#allocation3 + $0x168] sm:$0xff] %vm271, %v509
      %542 = vst.msk [vmem:[#allocation3 + $0x190] sm:$0xff] %vm271, %v510
      %543 = vst.msk [vmem:[#allocation3 + $0x1b8] sm:$0xff] %vm271, %v511
      %544 = vst.msk [vmem:[#allocation3 + $0x1e0] sm:$0xff] %vm271, %v512
      %545 = vst.msk [vmem:[#allocation3 + $0x208] sm:$0xff] %vm271, %v513
      %546 = vst.msk [vmem:[#allocation3 + $0x230] sm:$0xff] %vm271, %v514
      %547 = vst.msk [vmem:[#allocation3 + $0x258] sm:$0xff] %vm271, %v515
      %548 = vst.msk [vmem:[#allocation3 + $0x280] sm:$0xff] %vm271, %v516
      %549 = vst.msk [vmem:[#allocation3 + $0x2a8] sm:$0xff] %vm271, %v517
      %550 = vst.msk [vmem:[#allocation3 + $0x2d0] sm:$0xff] %vm271, %v518
      %551 = vst.msk [vmem:[#allocation3 + $0x2f8] sm:$0xff] %vm271, %v519
      %552 = vst.msk [vmem:[#allocation3 + $0x320] sm:$0xff] %vm271, %v520
      %553 = vst.msk [vmem:[#allocation3 + $0x348] sm:$0xff] %vm271, %v521
      %554 = vst.msk [vmem:[#allocation3 + $0x370] sm:$0xff] %vm271, %v522
      %555 = vst.msk [vmem:[#allocation3 + $0x398] sm:$0xff] %vm271, %v523
      %556 = vst.msk [vmem:[#allocation3 + $0x3c0] sm:$0xff] %vm271, %v524
      %557 = vst.msk [vmem:[#allocation3 + $0x3e8] sm:$0xff] %vm271, %v525
      %558 = vst.msk [vmem:[#allocation3 + $0x410] sm:$0xff] %vm271, %v526
      %559 = vst.msk [vmem:[#allocation3 + $0x438] sm:$0xff] %vm271, %v527
      %560 = vst.msk [vmem:[#allocation3 + $0x460] sm:$0xff] %vm271, %v528
      %561 = vst.msk [vmem:[#allocation3 + $0x488] sm:$0xff] %vm271, %v529
      %562 = vst.msk [vmem:[#allocation3 + $0x4b0] sm:$0xff] %vm271, %v530
      %563 = vst.msk [vmem:[#allocation3 + $0x4d8] sm:$0xff] %vm271, %v531
      %v564 = vld [vmem:[#allocation2 + $0x1] sm:$0xff]
      %v565 = vld [vmem:[#allocation2 + $0x9] sm:$0xff]
      %v566 = vld [vmem:[#allocation2 + $0x19] sm:$0xff]
      %v567 = vld [vmem:[#allocation2 + $0x21] sm:$0xff]
      %v568 = vld [vmem:[#allocation2 + $0x31] sm:$0xff]
      %v569 = vld [vmem:[#allocation2 + $0x39] sm:$0xff]
      %v570 = vld [vmem:[#allocation2 + $0x49] sm:$0xff]
      %v571 = vld [vmem:[#allocation2 + $0x51] sm:$0xff]
      %v572 = vld [vmem:[#allocation2 + $0x61] sm:$0xff]
      %v573 = vld [vmem:[#allocation2 + $0x69] sm:$0xff]
      %v574 = vld [vmem:[#allocation2 + $0x79] sm:$0xff]
      %v575 = vld [vmem:[#allocation2 + $0x81] sm:$0xff]
      %v576 = vld [vmem:[#allocation2 + $0x91] sm:$0xff]
      %v577 = vld [vmem:[#allocation2 + $0x99] sm:$0xff]
      %v578 = vld [vmem:[#allocation2 + $0xa9] sm:$0xff]
      %v579 = vld [vmem:[#allocation2 + $0xb1] sm:$0xff]
      %v580 = vld [vmem:[#allocation2 + $0xc1] sm:$0xff]
      %v581 = vld [vmem:[#allocation2 + $0xc9] sm:$0xff]
      %v582 = vld [vmem:[#allocation2 + $0xd9] sm:$0xff]
      %v583 = vld [vmem:[#allocation2 + $0xe1] sm:$0xff]
      %v584 = vld [vmem:[#allocation2 + $0xf1] sm:$0xff]
      %v585 = vld [vmem:[#allocation2 + $0xf9] sm:$0xff]
      %v586 = vld [vmem:[#allocation2 + $0x109] sm:$0xff]
      %v587 = vld [vmem:[#allocation2 + $0x111] sm:$0xff]
      %v588 = vld [vmem:[#allocation2 + $0x121] sm:$0xff]
      %v589 = vld [vmem:[#allocation2 + $0x129] sm:$0xff]
      %v590 = vld [vmem:[#allocation2 + $0x139] sm:$0xff]
      %v591 = vld [vmem:[#allocation2 + $0x141] sm:$0xff]
      %v592 = vld [vmem:[#allocation2 + $0x151] sm:$0xff]
      %v593 = vld [vmem:[#allocation2 + $0x159] sm:$0xff]
      %v594 = vld [vmem:[#allocation2 + $0x169] sm:$0xff]
      %v595 = vld [vmem:[#allocation2 + $0x171] sm:$0xff]
      %628 = vrot.lane.b32.xlu0 %v564, 64
      %v629 = vpop.permute.xlu0 %628
      %630 = vrot.lane.b32.xlu0 %v565, 64
      %v631 = vpop.permute.xlu0 %630
      %632 = vrot.lane.b32.xlu0 %v566, 64
      %v633 = vpop.permute.xlu0 %632
      %634 = vrot.lane.b32.xlu0 %v567, 64
      %v635 = vpop.permute.xlu0 %634
      %636 = vrot.lane.b32.xlu0 %v568, 64
      %v637 = vpop.permute.xlu0 %636
      %638 = vrot.lane.b32.xlu0 %v569, 64
      %v639 = vpop.permute.xlu0 %638
      %640 = vrot.lane.b32.xlu0 %v570, 64
      %v641 = vpop.permute.xlu0 %640
      %642 = vrot.lane.b32.xlu0 %v571, 64
      %v643 = vpop.permute.xlu0 %642
      %644 = vrot.lane.b32.xlu0 %v572, 64
      %v645 = vpop.permute.xlu0 %644
      %646 = vrot.lane.b32.xlu0 %v573, 64
      %v647 = vpop.permute.xlu0 %646
      %648 = vrot.lane.b32.xlu0 %v574, 64
      %v649 = vpop.permute.xlu0 %648
      %650 = vrot.lane.b32.xlu0 %v575, 64
      %v651 = vpop.permute.xlu0 %650
      %652 = vrot.lane.b32.xlu0 %v576, 64
      %v653 = vpop.permute.xlu0 %652
      %654 = vrot.lane.b32.xlu0 %v577, 64
      %v655 = vpop.permute.xlu0 %654
      %656 = vrot.lane.b32.xlu0 %v578, 64
      %v657 = vpop.permute.xlu0 %656
      %658 = vrot.lane.b32.xlu0 %v579, 64
      %v659 = vpop.permute.xlu0 %658
      %660 = vrot.lane.b32.xlu0 %v580, 64
      %v661 = vpop.permute.xlu0 %660
      %662 = vrot.lane.b32.xlu0 %v581, 64
      %v663 = vpop.permute.xlu0 %662
      %664 = vrot.lane.b32.xlu0 %v582, 64
      %v665 = vpop.permute.xlu0 %664
      %666 = vrot.lane.b32.xlu0 %v583, 64
      %v667 = vpop.permute.xlu0 %666
      %668 = vrot.lane.b32.xlu0 %v584, 64
      %v669 = vpop.permute.xlu0 %668
      %670 = vrot.lane.b32.xlu0 %v585, 64
      %v671 = vpop.permute.xlu0 %670
      %672 = vrot.lane.b32.xlu0 %v586, 64
      %v673 = vpop.permute.xlu0 %672
      %674 = vrot.lane.b32.xlu0 %v587, 64
      %v675 = vpop.permute.xlu0 %674
      %676 = vrot.lane.b32.xlu0 %v588, 64
      %v677 = vpop.permute.xlu0 %676
      %678 = vrot.lane.b32.xlu0 %v589, 64
      %v679 = vpop.permute.xlu0 %678
      %680 = vrot.lane.b32.xlu0 %v590, 64
      %v681 = vpop.permute.xlu0 %680
      %682 = vrot.lane.b32.xlu0 %v591, 64
      %v683 = vpop.permute.xlu0 %682
      %684 = vrot.lane.b32.xlu0 %v592, 64
      %v685 = vpop.permute.xlu0 %684
      %686 = vrot.lane.b32.xlu0 %v593, 64
      %v687 = vpop.permute.xlu0 %686
      %688 = vrot.lane.b32.xlu0 %v594, 64
      %v689 = vpop.permute.xlu0 %688
      %690 = vrot.lane.b32.xlu0 %v595, 64
      %v691 = vpop.permute.xlu0 %690
      %vm724 = vcmask 1048064
      %725 = vst.msk [vmem:[#allocation3] sm:$0xff] %vm724, %v629
      %726 = vst.msk [vmem:[#allocation3 + $0x28] sm:$0xff] %vm724, %v631
      %727 = vst.msk [vmem:[#allocation3 + $0x50] sm:$0xff] %vm724, %v633
      %728 = vst.msk [vmem:[#allocation3 + $0x78] sm:$0xff] %vm724, %v635
      %729 = vst.msk [vmem:[#allocation3 + $0xa0] sm:$0xff] %vm724, %v637
      %730 = vst.msk [vmem:[#allocation3 + $0xc8] sm:$0xff] %vm724, %v639
      %731 = vst.msk [vmem:[#allocation3 + $0xf0] sm:$0xff] %vm724, %v641
      %732 = vst.msk [vmem:[#allocation3 + $0x118] sm:$0xff] %vm724, %v643
      %733 = vst.msk [vmem:[#allocation3 + $0x140] sm:$0xff] %vm724, %v645
      %734 = vst.msk [vmem:[#allocation3 + $0x168] sm:$0xff] %vm724, %v647
      %735 = vst.msk [vmem:[#allocation3 + $0x190] sm:$0xff] %vm724, %v649
      %736 = vst.msk [vmem:[#allocation3 + $0x1b8] sm:$0xff] %vm724, %v651
      %737 = vst.msk [vmem:[#allocation3 + $0x1e0] sm:$0xff] %vm724, %v653
      %738 = vst.msk [vmem:[#allocation3 + $0x208] sm:$0xff] %vm724, %v655
      %739 = vst.msk [vmem:[#allocation3 + $0x230] sm:$0xff] %vm724, %v657
      %740 = vst.msk [vmem:[#allocation3 + $0x258] sm:$0xff] %vm724, %v659
      %741 = vst.msk [vmem:[#allocation3 + $0x280] sm:$0xff] %vm724, %v661
      %742 = vst.msk [vmem:[#allocation3 + $0x2a8] sm:$0xff] %vm724, %v663
      %743 = vst.msk [vmem:[#allocation3 + $0x2d0] sm:$0xff] %vm724, %v665
      %744 = vst.msk [vmem:[#allocation3 + $0x2f8] sm:$0xff] %vm724, %v667
      %745 = vst.msk [vmem:[#allocation3 + $0x320] sm:$0xff] %vm724, %v669
      %746 = vst.msk [vmem:[#allocation3 + $0x348] sm:$0xff] %vm724, %v671
      %747 = vst.msk [vmem:[#allocation3 + $0x370] sm:$0xff] %vm724, %v673
      %748 = vst.msk [vmem:[#allocation3 + $0x398] sm:$0xff] %vm724, %v675
      %749 = vst.msk [vmem:[#allocation3 + $0x3c0] sm:$0xff] %vm724, %v677
      %750 = vst.msk [vmem:[#allocation3 + $0x3e8] sm:$0xff] %vm724, %v679
      %751 = vst.msk [vmem:[#allocation3 + $0x410] sm:$0xff] %vm724, %v681
      %752 = vst.msk [vmem:[#allocation3 + $0x438] sm:$0xff] %vm724, %v683
      %753 = vst.msk [vmem:[#allocation3 + $0x460] sm:$0xff] %vm724, %v685
      %754 = vst.msk [vmem:[#allocation3 + $0x488] sm:$0xff] %vm724, %v687
      %755 = vst.msk [vmem:[#allocation3 + $0x4b0] sm:$0xff] %vm724, %v689
      %756 = vst.msk [vmem:[#allocation3 + $0x4d8] sm:$0xff] %vm724, %v691
      %v757 = vld [vmem:[#allocation2 + $0x2] sm:$0xff]
      %v758 = vld [vmem:[#allocation2 + $0xa] sm:$0xff]
      %v759 = vld [vmem:[#allocation2 + $0x1a] sm:$0xff]
      %v760 = vld [vmem:[#allocation2 + $0x22] sm:$0xff]
      %v761 = vld [vmem:[#allocation2 + $0x32] sm:$0xff]
      %v762 = vld [vmem:[#allocation2 + $0x3a] sm:$0xff]
      %v763 = vld [vmem:[#allocation2 + $0x4a] sm:$0xff]
      %v764 = vld [vmem:[#allocation2 + $0x52] sm:$0xff]
      %v765 = vld [vmem:[#allocation2 + $0x62] sm:$0xff]
      %v766 = vld [vmem:[#allocation2 + $0x6a] sm:$0xff]
      %v767 = vld [vmem:[#allocation2 + $0x7a] sm:$0xff]
      %v768 = vld [vmem:[#allocation2 + $0x82] sm:$0xff]
      %v769 = vld [vmem:[#allocation2 + $0x92] sm:$0xff]
      %v770 = vld [vmem:[#allocation2 + $0x9a] sm:$0xff]
      %v771 = vld [vmem:[#allocation2 + $0xaa] sm:$0xff]
      %v772 = vld [vmem:[#allocation2 + $0xb2] sm:$0xff]
      %v773 = vld [vmem:[#allocation2 + $0xc2] sm:$0xff]
      %v774 = vld [vmem:[#allocation2 + $0xca] sm:$0xff]
      %v775 = vld [vmem:[#allocation2 + $0xda] sm:$0xff]
      %v776 = vld [vmem:[#allocation2 + $0xe2] sm:$0xff]
      %v777 = vld [vmem:[#allocation2 + $0xf2] sm:$0xff]
      %v778 = vld [vmem:[#allocation2 + $0xfa] sm:$0xff]
      %v779 = vld [vmem:[#allocation2 + $0x10a] sm:$0xff]
      %v780 = vld [vmem:[#allocation2 + $0x112] sm:$0xff]
      %v781 = vld [vmem:[#allocation2 + $0x122] sm:$0xff]
      %v782 = vld [vmem:[#allocation2 + $0x12a] sm:$0xff]
      %v783 = vld [vmem:[#allocation2 + $0x13a] sm:$0xff]
      %v784 = vld [vmem:[#allocation2 + $0x142] sm:$0xff]
      %v785 = vld [vmem:[#allocation2 + $0x152] sm:$0xff]
      %v786 = vld [vmem:[#allocation2 + $0x15a] sm:$0xff]
      %v787 = vld [vmem:[#allocation2 + $0x16a] sm:$0xff]
      %v788 = vld [vmem:[#allocation2 + $0x172] sm:$0xff]
      %789 = vst.msk [vmem:[#allocation3 + $0x8] sm:$0xff] %vm271, %v757
      %790 = vst.msk [vmem:[#allocation3 + $0x30] sm:$0xff] %vm271, %v758
      %791 = vst.msk [vmem:[#allocation3 + $0x58] sm:$0xff] %vm271, %v759
      %792 = vst.msk [vmem:[#allocation3 + $0x80] sm:$0xff] %vm271, %v760
      %793 = vst.msk [vmem:[#allocation3 + $0xa8] sm:$0xff] %vm271, %v761
      %794 = vst.msk [vmem:[#allocation3 + $0xd0] sm:$0xff] %vm271, %v762
      %795 = vst.msk [vmem:[#allocation3 + $0xf8] sm:$0xff] %vm271, %v763
      %796 = vst.msk [vmem:[#allocation3 + $0x120] sm:$0xff] %vm271, %v764
      %797 = vst.msk [vmem:[#allocation3 + $0x148] sm:$0xff] %vm271, %v765
      %798 = vst.msk [vmem:[#allocation3 + $0x170] sm:$0xff] %vm271, %v766
      %799 = vst.msk [vmem:[#allocation3 + $0x198] sm:$0xff] %vm271, %v767
      %800 = vst.msk [vmem:[#allocation3 + $0x1c0] sm:$0xff] %vm271, %v768
      %801 = vst.msk [vmem:[#allocation3 + $0x1e8] sm:$0xff] %vm271, %v769
      %802 = vst.msk [vmem:[#allocation3 + $0x210] sm:$0xff] %vm271, %v770
      %803 = vst.msk [vmem:[#allocation3 + $0x238] sm:$0xff] %vm271, %v771
      %804 = vst.msk [vmem:[#allocation3 + $0x260] sm:$0xff] %vm271, %v772
      %805 = vst.msk [vmem:[#allocation3 + $0x288] sm:$0xff] %vm271, %v773
      %806 = vst.msk [vmem:[#allocation3 + $0x2b0] sm:$0xff] %vm271, %v774
      %807 = vst.msk [vmem:[#allocation3 + $0x2d8] sm:$0xff] %vm271, %v775
      %808 = vst.msk [vmem:[#allocation3 + $0x300] sm:$0xff] %vm271, %v776
      %809 = vst.msk [vmem:[#allocation3 + $0x328] sm:$0xff] %vm271, %v777
      %810 = vst.msk [vmem:[#allocation3 + $0x350] sm:$0xff] %vm271, %v778
      %811 = vst.msk [vmem:[#allocation3 + $0x378] sm:$0xff] %vm271, %v779
      %812 = vst.msk [vmem:[#allocation3 + $0x3a0] sm:$0xff] %vm271, %v780
      %813 = vst.msk [vmem:[#allocation3 + $0x3c8] sm:$0xff] %vm271, %v781
      %814 = vst.msk [vmem:[#allocation3 + $0x3f0] sm:$0xff] %vm271, %v782
      %815 = vst.msk [vmem:[#allocation3 + $0x418] sm:$0xff] %vm271, %v783
      %816 = vst.msk [vmem:[#allocation3 + $0x440] sm:$0xff] %vm271, %v784
      %817 = vst.msk [vmem:[#allocation3 + $0x468] sm:$0xff] %vm271, %v785
      %818 = vst.msk [vmem:[#allocation3 + $0x490] sm:$0xff] %vm271, %v786
      %819 = vst.msk [vmem:[#allocation3 + $0x4b8] sm:$0xff] %vm271, %v787
      %820 = vst.msk [vmem:[#allocation3 + $0x4e0] sm:$0xff] %vm271, %v788
      %v821 = vld [vmem:[%s467] sm:$0xff]
      %v822 = vld [vmem:[%s467 + $0x8] sm:$0xff]
      %v823 = vld [vmem:[%s467 + $0x18] sm:$0xff]
      %v824 = vld [vmem:[%s467 + $0x20] sm:$0xff]
      %v825 = vld [vmem:[%s467 + $0x30] sm:$0xff]
      %v826 = vld [vmem:[%s467 + $0x38] sm:$0xff]
      %v827 = vld [vmem:[%s467 + $0x48] sm:$0xff]
      %v828 = vld [vmem:[%s467 + $0x50] sm:$0xff]
      %v829 = vld [vmem:[%s467 + $0x60] sm:$0xff]
      %v830 = vld [vmem:[%s467 + $0x68] sm:$0xff]
      %v831 = vld [vmem:[%s467 + $0x78] sm:$0xff]
      %v832 = vld [vmem:[%s467 + $0x80] sm:$0xff]
      %v833 = vld [vmem:[%s467 + $0x90] sm:$0xff]
      %v834 = vld [vmem:[%s467 + $0x98] sm:$0xff]
      %v835 = vld [vmem:[%s467 + $0xa8] sm:$0xff]
      %v836 = vld [vmem:[%s467 + $0xb0] sm:$0xff]
      %v837 = vld [vmem:[%s467 + $0xc0] sm:$0xff]
      %v838 = vld [vmem:[%s467 + $0xc8] sm:$0xff]
      %v839 = vld [vmem:[%s467 + $0xd8] sm:$0xff]
      %v840 = vld [vmem:[%s467 + $0xe0] sm:$0xff]
      %v841 = vld [vmem:[%s467 + $0xf0] sm:$0xff]
      %v842 = vld [vmem:[%s467 + $0xf8] sm:$0xff]
      %v843 = vld [vmem:[%s467 + $0x108] sm:$0xff]
      %v844 = vld [vmem:[%s467 + $0x110] sm:$0xff]
      %v845 = vld [vmem:[%s467 + $0x120] sm:$0xff]
      %v846 = vld [vmem:[%s467 + $0x128] sm:$0xff]
      %v847 = vld [vmem:[%s467 + $0x138] sm:$0xff]
      %v848 = vld [vmem:[%s467 + $0x140] sm:$0xff]
      %v849 = vld [vmem:[%s467 + $0x150] sm:$0xff]
      %v850 = vld [vmem:[%s467 + $0x158] sm:$0xff]
      %v851 = vld [vmem:[%s467 + $0x168] sm:$0xff]
      %v852 = vld [vmem:[%s467 + $0x170] sm:$0xff]
      %885 = vrot.lane.b32.xlu0 %v821, 64
      %v886 = vpop.permute.xlu0 %885
      %887 = vrot.lane.b32.xlu0 %v822, 64
      %v888 = vpop.permute.xlu0 %887
      %889 = vrot.lane.b32.xlu0 %v823, 64
      %v890 = vpop.permute.xlu0 %889
      %891 = vrot.lane.b32.xlu0 %v824, 64
      %v892 = vpop.permute.xlu0 %891
      %893 = vrot.lane.b32.xlu0 %v825, 64
      %v894 = vpop.permute.xlu0 %893
      %895 = vrot.lane.b32.xlu0 %v826, 64
      %v896 = vpop.permute.xlu0 %895
      %897 = vrot.lane.b32.xlu0 %v827, 64
      %v898 = vpop.permute.xlu0 %897
      %899 = vrot.lane.b32.xlu0 %v828, 64
      %v900 = vpop.permute.xlu0 %899
      %901 = vrot.lane.b32.xlu0 %v829, 64
      %v902 = vpop.permute.xlu0 %901
      %903 = vrot.lane.b32.xlu0 %v830, 64
      %v904 = vpop.permute.xlu0 %903
      %905 = vrot.lane.b32.xlu0 %v831, 64
      %v906 = vpop.permute.xlu0 %905
      %907 = vrot.lane.b32.xlu0 %v832, 64
      %v908 = vpop.permute.xlu0 %907
      %909 = vrot.lane.b32.xlu0 %v833, 64
      %v910 = vpop.permute.xlu0 %909
      %911 = vrot.lane.b32.xlu0 %v834, 64
      %v912 = vpop.permute.xlu0 %911
      %913 = vrot.lane.b32.xlu0 %v835, 64
      %v914 = vpop.permute.xlu0 %913
      %915 = vrot.lane.b32.xlu0 %v836, 64
      %v916 = vpop.permute.xlu0 %915
      %917 = vrot.lane.b32.xlu0 %v837, 64
      %v918 = vpop.permute.xlu0 %917
      %919 = vrot.lane.b32.xlu0 %v838, 64
      %v920 = vpop.permute.xlu0 %919
      %921 = vrot.lane.b32.xlu0 %v839, 64
      %v922 = vpop.permute.xlu0 %921
      %923 = vrot.lane.b32.xlu0 %v840, 64
      %v924 = vpop.permute.xlu0 %923
      %925 = vrot.lane.b32.xlu0 %v841, 64
      %v926 = vpop.permute.xlu0 %925
      %927 = vrot.lane.b32.xlu0 %v842, 64
      %v928 = vpop.permute.xlu0 %927
      %929 = vrot.lane.b32.xlu0 %v843, 64
      %v930 = vpop.permute.xlu0 %929
      %931 = vrot.lane.b32.xlu0 %v844, 64
      %v932 = vpop.permute.xlu0 %931
      %933 = vrot.lane.b32.xlu0 %v845, 64
      %v934 = vpop.permute.xlu0 %933
      %935 = vrot.lane.b32.xlu0 %v846, 64
      %v936 = vpop.permute.xlu0 %935
      %937 = vrot.lane.b32.xlu0 %v847, 64
      %v938 = vpop.permute.xlu0 %937
      %939 = vrot.lane.b32.xlu0 %v848, 64
      %v940 = vpop.permute.xlu0 %939
      %941 = vrot.lane.b32.xlu0 %v849, 64
      %v942 = vpop.permute.xlu0 %941
      %943 = vrot.lane.b32.xlu0 %v850, 64
      %v944 = vpop.permute.xlu0 %943
      %945 = vrot.lane.b32.xlu0 %v851, 64
      %v946 = vpop.permute.xlu0 %945
      %947 = vrot.lane.b32.xlu0 %v852, 64
      %v948 = vpop.permute.xlu0 %947
      %981 = vst.msk [vmem:[#allocation3 + $0x8] sm:$0xff] %vm724, %v886
      %982 = vst.msk [vmem:[#allocation3 + $0x30] sm:$0xff] %vm724, %v888
      %983 = vst.msk [vmem:[#allocation3 + $0x58] sm:$0xff] %vm724, %v890
      %984 = vst.msk [vmem:[#allocation3 + $0x80] sm:$0xff] %vm724, %v892
      %985 = vst.msk [vmem:[#allocation3 + $0xa8] sm:$0xff] %vm724, %v894
      %986 = vst.msk [vmem:[#allocation3 + $0xd0] sm:$0xff] %vm724, %v896
      %987 = vst.msk [vmem:[#allocation3 + $0xf8] sm:$0xff] %vm724, %v898
      %988 = vst.msk [vmem:[#allocation3 + $0x120] sm:$0xff] %vm724, %v900
      %989 = vst.msk [vmem:[#allocation3 + $0x148] sm:$0xff] %vm724, %v902
      %990 = vst.msk [vmem:[#allocation3 + $0x170] sm:$0xff] %vm724, %v904
      %991 = vst.msk [vmem:[#allocation3 + $0x198] sm:$0xff] %vm724, %v906
      %992 = vst.msk [vmem:[#allocation3 + $0x1c0] sm:$0xff] %vm724, %v908
      %993 = vst.msk [vmem:[#allocation3 + $0x1e8] sm:$0xff] %vm724, %v910
      %994 = vst.msk [vmem:[#allocation3 + $0x210] sm:$0xff] %vm724, %v912
      %995 = vst.msk [vmem:[#allocation3 + $0x238] sm:$0xff] %vm724, %v914
      %996 = vst.msk [vmem:[#allocation3 + $0x260] sm:$0xff] %vm724, %v916
      %997 = vst.msk [vmem:[#allocation3 + $0x288] sm:$0xff] %vm724, %v918
      %998 = vst.msk [vmem:[#allocation3 + $0x2b0] sm:$0xff] %vm724, %v920
      %999 = vst.msk [vmem:[#allocation3 + $0x2d8] sm:$0xff] %vm724, %v922
      %1000 = vst.msk [vmem:[#allocation3 + $0x300] sm:$0xff] %vm724, %v924
      %1001 = vst.msk [vmem:[#allocation3 + $0x328] sm:$0xff] %vm724, %v926
      %1002 = vst.msk [vmem:[#allocation3 + $0x350] sm:$0xff] %vm724, %v928
      %1003 = vst.msk [vmem:[#allocation3 + $0x378] sm:$0xff] %vm724, %v930
      %1004 = vst.msk [vmem:[#allocation3 + $0x3a0] sm:$0xff] %vm724, %v932
      %1005 = vst.msk [vmem:[#allocation3 + $0x3c8] sm:$0xff] %vm724, %v934
      %1006 = vst.msk [vmem:[#allocation3 + $0x3f0] sm:$0xff] %vm724, %v936
      %1007 = vst.msk [vmem:[#allocation3 + $0x418] sm:$0xff] %vm724, %v938
      %1008 = vst.msk [vmem:[#allocation3 + $0x440] sm:$0xff] %vm724, %v940
      %1009 = vst.msk [vmem:[#allocation3 + $0x468] sm:$0xff] %vm724, %v942
      %1010 = vst.msk [vmem:[#allocation3 + $0x490] sm:$0xff] %vm724, %v944
      %1011 = vst.msk [vmem:[#allocation3 + $0x4b8] sm:$0xff] %vm724, %v946
      %1012 = vst.msk [vmem:[#allocation3 + $0x4e0] sm:$0xff] %vm724, %v948
      %v1013 = vld [vmem:[%s467 + $0x1] sm:$0xff]
      %v1014 = vld [vmem:[%s467 + $0x9] sm:$0xff]
      %v1015 = vld [vmem:[%s467 + $0x19] sm:$0xff]
      %v1016 = vld [vmem:[%s467 + $0x21] sm:$0xff]
      %v1017 = vld [vmem:[%s467 + $0x31] sm:$0xff]
      %v1018 = vld [vmem:[%s467 + $0x39] sm:$0xff]
      %v1019 = vld [vmem:[%s467 + $0x49] sm:$0xff]
      %v1020 = vld [vmem:[%s467 + $0x51] sm:$0xff]
      %v1021 = vld [vmem:[%s467 + $0x61] sm:$0xff]
      %v1022 = vld [vmem:[%s467 + $0x69] sm:$0xff]
      %v1023 = vld [vmem:[%s467 + $0x79] sm:$0xff]
      %v1024 = vld [vmem:[%s467 + $0x81] sm:$0xff]
      %v1025 = vld [vmem:[%s467 + $0x91] sm:$0xff]
      %v1026 = vld [vmem:[%s467 + $0x99] sm:$0xff]
      %v1027 = vld [vmem:[%s467 + $0xa9] sm:$0xff]
      %v1028 = vld [vmem:[%s467 + $0xb1] sm:$0xff]
      %v1029 = vld [vmem:[%s467 + $0xc1] sm:$0xff]
      %v1030 = vld [vmem:[%s467 + $0xc9] sm:$0xff]
      %v1031 = vld [vmem:[%s467 + $0xd9] sm:$0xff]
      %v1032 = vld [vmem:[%s467 + $0xe1] sm:$0xff]
      %v1033 = vld [vmem:[%s467 + $0xf1] sm:$0xff]
      %v1034 = vld [vmem:[%s467 + $0xf9] sm:$0xff]
      %v1035 = vld [vmem:[%s467 + $0x109] sm:$0xff]
      %v1036 = vld [vmem:[%s467 + $0x111] sm:$0xff]
      %v1037 = vld [vmem:[%s467 + $0x121] sm:$0xff]
      %v1038 = vld [vmem:[%s467 + $0x129] sm:$0xff]
      %v1039 = vld [vmem:[%s467 + $0x139] sm:$0xff]
      %v1040 = vld [vmem:[%s467 + $0x141] sm:$0xff]
      %v1041 = vld [vmem:[%s467 + $0x151] sm:$0xff]
      %v1042 = vld [vmem:[%s467 + $0x159] sm:$0xff]
      %v1043 = vld [vmem:[%s467 + $0x169] sm:$0xff]
      %v1044 = vld [vmem:[%s467 + $0x171] sm:$0xff]
      %1045 = vst.msk [vmem:[#allocation3 + $0x10] sm:$0xff] %vm271, %v1013
      %1046 = vst.msk [vmem:[#allocation3 + $0x38] sm:$0xff] %vm271, %v1014
      %1047 = vst.msk [vmem:[#allocation3 + $0x60] sm:$0xff] %vm271, %v1015
      %1048 = vst.msk [vmem:[#allocation3 + $0x88] sm:$0xff] %vm271, %v1016
      %1049 = vst.msk [vmem:[#allocation3 + $0xb0] sm:$0xff] %vm271, %v1017
      %1050 = vst.msk [vmem:[#allocation3 + $0xd8] sm:$0xff] %vm271, %v1018
      %1051 = vst.msk [vmem:[#allocation3 + $0x100] sm:$0xff] %vm271, %v1019
      %1052 = vst.msk [vmem:[#allocation3 + $0x128] sm:$0xff] %vm271, %v1020
      %1053 = vst.msk [vmem:[#allocation3 + $0x150] sm:$0xff] %vm271, %v1021
      %1054 = vst.msk [vmem:[#allocation3 + $0x178] sm:$0xff] %vm271, %v1022
      %1055 = vst.msk [vmem:[#allocation3 + $0x1a0] sm:$0xff] %vm271, %v1023
      %1056 = vst.msk [vmem:[#allocation3 + $0x1c8] sm:$0xff] %vm271, %v1024
      %1057 = vst.msk [vmem:[#allocation3 + $0x1f0] sm:$0xff] %vm271, %v1025
      %1058 = vst.msk [vmem:[#allocation3 + $0x218] sm:$0xff] %vm271, %v1026
      %1059 = vst.msk [vmem:[#allocation3 + $0x240] sm:$0xff] %vm271, %v1027
      %1060 = vst.msk [vmem:[#allocation3 + $0x268] sm:$0xff] %vm271, %v1028
      %1061 = vst.msk [vmem:[#allocation3 + $0x290] sm:$0xff] %vm271, %v1029
      %1062 = vst.msk [vmem:[#allocation3 + $0x2b8] sm:$0xff] %vm271, %v1030
      %1063 = vst.msk [vmem:[#allocation3 + $0x2e0] sm:$0xff] %vm271, %v1031
      %1064 = vst.msk [vmem:[#allocation3 + $0x308] sm:$0xff] %vm271, %v1032
      %1065 = vst.msk [vmem:[#allocation3 + $0x330] sm:$0xff] %vm271, %v1033
      %1066 = vst.msk [vmem:[#allocation3 + $0x358] sm:$0xff] %vm271, %v1034
      %1067 = vst.msk [vmem:[#allocation3 + $0x380] sm:$0xff] %vm271, %v1035
      %1068 = vst.msk [vmem:[#allocation3 + $0x3a8] sm:$0xff] %vm271, %v1036
      %1069 = vst.msk [vmem:[#allocation3 + $0x3d0] sm:$0xff] %vm271, %v1037
      %1070 = vst.msk [vmem:[#allocation3 + $0x3f8] sm:$0xff] %vm271, %v1038
      %1071 = vst.msk [vmem:[#allocation3 + $0x420] sm:$0xff] %vm271, %v1039
      %1072 = vst.msk [vmem:[#allocation3 + $0x448] sm:$0xff] %vm271, %v1040
      %1073 = vst.msk [vmem:[#allocation3 + $0x470] sm:$0xff] %vm271, %v1041
      %1074 = vst.msk [vmem:[#allocation3 + $0x498] sm:$0xff] %vm271, %v1042
      %1075 = vst.msk [vmem:[#allocation3 + $0x4c0] sm:$0xff] %vm271, %v1043
      %1076 = vst.msk [vmem:[#allocation3 + $0x4e8] sm:$0xff] %vm271, %v1044
      %v1077 = vld [vmem:[%s467 + $0x2] sm:$0xff]
      %v1078 = vld [vmem:[%s467 + $0xa] sm:$0xff]
      %v1079 = vld [vmem:[%s467 + $0x1a] sm:$0xff]
      %v1080 = vld [vmem:[%s467 + $0x22] sm:$0xff]
      %v1081 = vld [vmem:[%s467 + $0x32] sm:$0xff]
      %v1082 = vld [vmem:[%s467 + $0x3a] sm:$0xff]
      %v1083 = vld [vmem:[%s467 + $0x4a] sm:$0xff]
      %v1084 = vld [vmem:[%s467 + $0x52] sm:$0xff]
      %v1085 = vld [vmem:[%s467 + $0x62] sm:$0xff]
      %v1086 = vld [vmem:[%s467 + $0x6a] sm:$0xff]
      %v1087 = vld [vmem:[%s467 + $0x7a] sm:$0xff]
      %v1088 = vld [vmem:[%s467 + $0x82] sm:$0xff]
      %v1089 = vld [vmem:[%s467 + $0x92] sm:$0xff]
      %v1090 = vld [vmem:[%s467 + $0x9a] sm:$0xff]
      %v1091 = vld [vmem:[%s467 + $0xaa] sm:$0xff]
      %v1092 = vld [vmem:[%s467 + $0xb2] sm:$0xff]
      %v1093 = vld [vmem:[%s467 + $0xc2] sm:$0xff]
      %v1094 = vld [vmem:[%s467 + $0xca] sm:$0xff]
      %v1095 = vld [vmem:[%s467 + $0xda] sm:$0xff]
      %v1096 = vld [vmem:[%s467 + $0xe2] sm:$0xff]
      %v1097 = vld [vmem:[%s467 + $0xf2] sm:$0xff]
      %v1098 = vld [vmem:[%s467 + $0xfa] sm:$0xff]
      %v1099 = vld [vmem:[%s467 + $0x10a] sm:$0xff]
      %v1100 = vld [vmem:[%s467 + $0x112] sm:$0xff]
      %v1101 = vld [vmem:[%s467 + $0x122] sm:$0xff]
      %v1102 = vld [vmem:[%s467 + $0x12a] sm:$0xff]
      %v1103 = vld [vmem:[%s467 + $0x13a] sm:$0xff]
      %v1104 = vld [vmem:[%s467 + $0x142] sm:$0xff]
      %v1105 = vld [vmem:[%s467 + $0x152] sm:$0xff]
      %v1106 = vld [vmem:[%s467 + $0x15a] sm:$0xff]
      %v1107 = vld [vmem:[%s467 + $0x16a] sm:$0xff]
      %v1108 = vld [vmem:[%s467 + $0x172] sm:$0xff]
      %1141 = vrot.lane.b32.xlu0 %v1077, 64
      %v1142 = vpop.permute.xlu0 %1141
      %1143 = vrot.lane.b32.xlu0 %v1078, 64
      %v1144 = vpop.permute.xlu0 %1143
      %1145 = vrot.lane.b32.xlu0 %v1079, 64
      %v1146 = vpop.permute.xlu0 %1145
      %1147 = vrot.lane.b32.xlu0 %v1080, 64
      %v1148 = vpop.permute.xlu0 %1147
      %1149 = vrot.lane.b32.xlu0 %v1081, 64
      %v1150 = vpop.permute.xlu0 %1149
      %1151 = vrot.lane.b32.xlu0 %v1082, 64
      %v1152 = vpop.permute.xlu0 %1151
      %1153 = vrot.lane.b32.xlu0 %v1083, 64
      %v1154 = vpop.permute.xlu0 %1153
      %1155 = vrot.lane.b32.xlu0 %v1084, 64
      %v1156 = vpop.permute.xlu0 %1155
      %1157 = vrot.lane.b32.xlu0 %v1085, 64
      %v1158 = vpop.permute.xlu0 %1157
      %1159 = vrot.lane.b32.xlu0 %v1086, 64
      %v1160 = vpop.permute.xlu0 %1159
      %1161 = vrot.lane.b32.xlu0 %v1087, 64
      %v1162 = vpop.permute.xlu0 %1161
      %1163 = vrot.lane.b32.xlu0 %v1088, 64
      %v1164 = vpop.permute.xlu0 %1163
      %1165 = vrot.lane.b32.xlu0 %v1089, 64
      %v1166 = vpop.permute.xlu0 %1165
      %1167 = vrot.lane.b32.xlu0 %v1090, 64
      %v1168 = vpop.permute.xlu0 %1167
      %1169 = vrot.lane.b32.xlu0 %v1091, 64
      %v1170 = vpop.permute.xlu0 %1169
      %1171 = vrot.lane.b32.xlu0 %v1092, 64
      %v1172 = vpop.permute.xlu0 %1171
      %1173 = vrot.lane.b32.xlu0 %v1093, 64
      %v1174 = vpop.permute.xlu0 %1173
      %1175 = vrot.lane.b32.xlu0 %v1094, 64
      %v1176 = vpop.permute.xlu0 %1175
      %1177 = vrot.lane.b32.xlu0 %v1095, 64
      %v1178 = vpop.permute.xlu0 %1177
      %1179 = vrot.lane.b32.xlu0 %v1096, 64
      %v1180 = vpop.permute.xlu0 %1179
      %1181 = vrot.lane.b32.xlu0 %v1097, 64
      %v1182 = vpop.permute.xlu0 %1181
      %1183 = vrot.lane.b32.xlu0 %v1098, 64
      %v1184 = vpop.permute.xlu0 %1183
      %1185 = vrot.lane.b32.xlu0 %v1099, 64
      %v1186 = vpop.permute.xlu0 %1185
      %1187 = vrot.lane.b32.xlu0 %v1100, 64
      %v1188 = vpop.permute.xlu0 %1187
      %1189 = vrot.lane.b32.xlu0 %v1101, 64
      %v1190 = vpop.permute.xlu0 %1189
      %1191 = vrot.lane.b32.xlu0 %v1102, 64
      %v1192 = vpop.permute.xlu0 %1191
      %1193 = vrot.lane.b32.xlu0 %v1103, 64
      %v1194 = vpop.permute.xlu0 %1193
      %1195 = vrot.lane.b32.xlu0 %v1104, 64
      %v1196 = vpop.permute.xlu0 %1195
      %1197 = vrot.lane.b32.xlu0 %v1105, 64
      %v1198 = vpop.permute.xlu0 %1197
      %1199 = vrot.lane.b32.xlu0 %v1106, 64
      %v1200 = vpop.permute.xlu0 %1199
      %1201 = vrot.lane.b32.xlu0 %v1107, 64
      %v1202 = vpop.permute.xlu0 %1201
      %1203 = vrot.lane.b32.xlu0 %v1108, 64
      %v1204 = vpop.permute.xlu0 %1203
      %1237 = vst.msk [vmem:[#allocation3 + $0x10] sm:$0xff] %vm724, %v1142
      %1238 = vst.msk [vmem:[#allocation3 + $0x38] sm:$0xff] %vm724, %v1144
      %1239 = vst.msk [vmem:[#allocation3 + $0x60] sm:$0xff] %vm724, %v1146
      %1240 = vst.msk [vmem:[#allocation3 + $0x88] sm:$0xff] %vm724, %v1148
      %1241 = vst.msk [vmem:[#allocation3 + $0xb0] sm:$0xff] %vm724, %v1150
      %1242 = vst.msk [vmem:[#allocation3 + $0xd8] sm:$0xff] %vm724, %v1152
      %1243 = vst.msk [vmem:[#allocation3 + $0x100] sm:$0xff] %vm724, %v1154
      %1244 = vst.msk [vmem:[#allocation3 + $0x128] sm:$0xff] %vm724, %v1156
      %1245 = vst.msk [vmem:[#allocation3 + $0x150] sm:$0xff] %vm724, %v1158
      %1246 = vst.msk [vmem:[#allocation3 + $0x178] sm:$0xff] %vm724, %v1160
      %1247 = vst.msk [vmem:[#allocation3 + $0x1a0] sm:$0xff] %vm724, %v1162
      %1248 = vst.msk [vmem:[#allocation3 + $0x1c8] sm:$0xff] %vm724, %v1164
      %1249 = vst.msk [vmem:[#allocation3 + $0x1f0] sm:$0xff] %vm724, %v1166
      %1250 = vst.msk [vmem:[#allocation3 + $0x218] sm:$0xff] %vm724, %v1168
      %1251 = vst.msk [vmem:[#allocation3 + $0x240] sm:$0xff] %vm724, %v1170
      %1252 = vst.msk [vmem:[#allocation3 + $0x268] sm:$0xff] %vm724, %v1172
      %1253 = vst.msk [vmem:[#allocation3 + $0x290] sm:$0xff] %vm724, %v1174
      %1254 = vst.msk [vmem:[#allocation3 + $0x2b8] sm:$0xff] %vm724, %v1176
      %1255 = vst.msk [vmem:[#allocation3 + $0x2e0] sm:$0xff] %vm724, %v1178
      %1256 = vst.msk [vmem:[#allocation3 + $0x308] sm:$0xff] %vm724, %v1180
      %1257 = vst.msk [vmem:[#allocation3 + $0x330] sm:$0xff] %vm724, %v1182
      %1258 = vst.msk [vmem:[#allocation3 + $0x358] sm:$0xff] %vm724, %v1184
      %1259 = vst.msk [vmem:[#allocation3 + $0x380] sm:$0xff] %vm724, %v1186
      %1260 = vst.msk [vmem:[#allocation3 + $0x3a8] sm:$0xff] %vm724, %v1188
      %1261 = vst.msk [vmem:[#allocation3 + $0x3d0] sm:$0xff] %vm724, %v1190
      %1262 = vst.msk [vmem:[#allocation3 + $0x3f8] sm:$0xff] %vm724, %v1192
      %1263 = vst.msk [vmem:[#allocation3 + $0x420] sm:$0xff] %vm724, %v1194
      %1264 = vst.msk [vmem:[#allocation3 + $0x448] sm:$0xff] %vm724, %v1196
      %1265 = vst.msk [vmem:[#allocation3 + $0x470] sm:$0xff] %vm724, %v1198
      %1266 = vst.msk [vmem:[#allocation3 + $0x498] sm:$0xff] %vm724, %v1200
      %1267 = vst.msk [vmem:[#allocation3 + $0x4c0] sm:$0xff] %vm724, %v1202
      %1268 = vst.msk [vmem:[#allocation3 + $0x4e8] sm:$0xff] %vm724, %v1204
      %s1269 = scalar_lea.vmem [#allocation2], 48
      %v1270 = vld [vmem:[%s1269] sm:$0xff]
      %v1271 = vld [vmem:[%s1269 + $0x8] sm:$0xff]
      %v1272 = vld [vmem:[%s1269 + $0x18] sm:$0xff]
      %v1273 = vld [vmem:[%s1269 + $0x20] sm:$0xff]
      %v1274 = vld [vmem:[%s1269 + $0x30] sm:$0xff]
      %v1275 = vld [vmem:[%s1269 + $0x38] sm:$0xff]
      %v1276 = vld [vmem:[%s1269 + $0x48] sm:$0xff]
      %v1277 = vld [vmem:[%s1269 + $0x50] sm:$0xff]
      %v1278 = vld [vmem:[%s1269 + $0x60] sm:$0xff]
      %v1279 = vld [vmem:[%s1269 + $0x68] sm:$0xff]
      %v1280 = vld [vmem:[%s1269 + $0x78] sm:$0xff]
      %v1281 = vld [vmem:[%s1269 + $0x80] sm:$0xff]
      %v1282 = vld [vmem:[%s1269 + $0x90] sm:$0xff]
      %v1283 = vld [vmem:[%s1269 + $0x98] sm:$0xff]
      %v1284 = vld [vmem:[%s1269 + $0xa8] sm:$0xff]
      %v1285 = vld [vmem:[%s1269 + $0xb0] sm:$0xff]
      %v1286 = vld [vmem:[%s1269 + $0xc0] sm:$0xff]
      %v1287 = vld [vmem:[%s1269 + $0xc8] sm:$0xff]
      %v1288 = vld [vmem:[%s1269 + $0xd8] sm:$0xff]
      %v1289 = vld [vmem:[%s1269 + $0xe0] sm:$0xff]
      %v1290 = vld [vmem:[%s1269 + $0xf0] sm:$0xff]
      %v1291 = vld [vmem:[%s1269 + $0xf8] sm:$0xff]
      %v1292 = vld [vmem:[%s1269 + $0x108] sm:$0xff]
      %v1293 = vld [vmem:[%s1269 + $0x110] sm:$0xff]
      %v1294 = vld [vmem:[%s1269 + $0x120] sm:$0xff]
      %v1295 = vld [vmem:[%s1269 + $0x128] sm:$0xff]
      %v1296 = vld [vmem:[%s1269 + $0x138] sm:$0xff]
      %v1297 = vld [vmem:[%s1269 + $0x140] sm:$0xff]
      %v1298 = vld [vmem:[%s1269 + $0x150] sm:$0xff]
      %v1299 = vld [vmem:[%s1269 + $0x158] sm:$0xff]
      %v1300 = vld [vmem:[%s1269 + $0x168] sm:$0xff]
      %v1301 = vld [vmem:[%s1269 + $0x170] sm:$0xff]
      %1302 = vst.msk [vmem:[#allocation3 + $0x18] sm:$0xff] %vm271, %v1270
      %1303 = vst.msk [vmem:[#allocation3 + $0x40] sm:$0xff] %vm271, %v1271
      %1304 = vst.msk [vmem:[#allocation3 + $0x68] sm:$0xff] %vm271, %v1272
      %1305 = vst.msk [vmem:[#allocation3 + $0x90] sm:$0xff] %vm271, %v1273
      %1306 = vst.msk [vmem:[#allocation3 + $0xb8] sm:$0xff] %vm271, %v1274
      %1307 = vst.msk [vmem:[#allocation3 + $0xe0] sm:$0xff] %vm271, %v1275
      %1308 = vst.msk [vmem:[#allocation3 + $0x108] sm:$0xff] %vm271, %v1276
      %1309 = vst.msk [vmem:[#allocation3 + $0x130] sm:$0xff] %vm271, %v1277
      %1310 = vst.msk [vmem:[#allocation3 + $0x158] sm:$0xff] %vm271, %v1278
      %1311 = vst.msk [vmem:[#allocation3 + $0x180] sm:$0xff] %vm271, %v1279
      %1312 = vst.msk [vmem:[#allocation3 + $0x1a8] sm:$0xff] %vm271, %v1280
      %1313 = vst.msk [vmem:[#allocation3 + $0x1d0] sm:$0xff] %vm271, %v1281
      %1314 = vst.msk [vmem:[#allocation3 + $0x1f8] sm:$0xff] %vm271, %v1282
      %1315 = vst.msk [vmem:[#allocation3 + $0x220] sm:$0xff] %vm271, %v1283
      %1316 = vst.msk [vmem:[#allocation3 + $0x248] sm:$0xff] %vm271, %v1284
      %1317 = vst.msk [vmem:[#allocation3 + $0x270] sm:$0xff] %vm271, %v1285
      %1318 = vst.msk [vmem:[#allocation3 + $0x298] sm:$0xff] %vm271, %v1286
      %1319 = vst.msk [vmem:[#allocation3 + $0x2c0] sm:$0xff] %vm271, %v1287
      %1320 = vst.msk [vmem:[#allocation3 + $0x2e8] sm:$0xff] %vm271, %v1288
      %1321 = vst.msk [vmem:[#allocation3 + $0x310] sm:$0xff] %vm271, %v1289
      %1322 = vst.msk [vmem:[#allocation3 + $0x338] sm:$0xff] %vm271, %v1290
      %1323 = vst.msk [vmem:[#allocation3 + $0x360] sm:$0xff] %vm271, %v1291
      %1324 = vst.msk [vmem:[#allocation3 + $0x388] sm:$0xff] %vm271, %v1292
      %1325 = vst.msk [vmem:[#allocation3 + $0x3b0] sm:$0xff] %vm271, %v1293
      %1326 = vst.msk [vmem:[#allocation3 + $0x3d8] sm:$0xff] %vm271, %v1294
      %1327 = vst.msk [vmem:[#allocation3 + $0x400] sm:$0xff] %vm271, %v1295
      %1328 = vst.msk [vmem:[#allocation3 + $0x428] sm:$0xff] %vm271, %v1296
      %1329 = vst.msk [vmem:[#allocation3 + $0x450] sm:$0xff] %vm271, %v1297
      %1330 = vst.msk [vmem:[#allocation3 + $0x478] sm:$0xff] %vm271, %v1298
      %1331 = vst.msk [vmem:[#allocation3 + $0x4a0] sm:$0xff] %vm271, %v1299
      %1332 = vst.msk [vmem:[#allocation3 + $0x4c8] sm:$0xff] %vm271, %v1300
      %1333 = vst.msk [vmem:[#allocation3 + $0x4f0] sm:$0xff] %vm271, %v1301
      %v1334 = vld [vmem:[%s1269 + $0x1] sm:$0xff]
      %v1335 = vld [vmem:[%s1269 + $0x9] sm:$0xff]
      %v1336 = vld [vmem:[%s1269 + $0x19] sm:$0xff]
      %v1337 = vld [vmem:[%s1269 + $0x21] sm:$0xff]
      %v1338 = vld [vmem:[%s1269 + $0x31] sm:$0xff]
      %v1339 = vld [vmem:[%s1269 + $0x39] sm:$0xff]
      %v1340 = vld [vmem:[%s1269 + $0x49] sm:$0xff]
      %v1341 = vld [vmem:[%s1269 + $0x51] sm:$0xff]
      %v1342 = vld [vmem:[%s1269 + $0x61] sm:$0xff]
      %v1343 = vld [vmem:[%s1269 + $0x69] sm:$0xff]
      %v1344 = vld [vmem:[%s1269 + $0x79] sm:$0xff]
      %v1345 = vld [vmem:[%s1269 + $0x81] sm:$0xff]
      %v1346 = vld [vmem:[%s1269 + $0x91] sm:$0xff]
      %v1347 = vld [vmem:[%s1269 + $0x99] sm:$0xff]
      %v1348 = vld [vmem:[%s1269 + $0xa9] sm:$0xff]
      %v1349 = vld [vmem:[%s1269 + $0xb1] sm:$0xff]
      %v1350 = vld [vmem:[%s1269 + $0xc1] sm:$0xff]
      %v1351 = vld [vmem:[%s1269 + $0xc9] sm:$0xff]
      %v1352 = vld [vmem:[%s1269 + $0xd9] sm:$0xff]
      %v1353 = vld [vmem:[%s1269 + $0xe1] sm:$0xff]
      %v1354 = vld [vmem:[%s1269 + $0xf1] sm:$0xff]
      %v1355 = vld [vmem:[%s1269 + $0xf9] sm:$0xff]
      %v1356 = vld [vmem:[%s1269 + $0x109] sm:$0xff]
      %v1357 = vld [vmem:[%s1269 + $0x111] sm:$0xff]
      %v1358 = vld [vmem:[%s1269 + $0x121] sm:$0xff]
      %v1359 = vld [vmem:[%s1269 + $0x129] sm:$0xff]
      %v1360 = vld [vmem:[%s1269 + $0x139] sm:$0xff]
      %v1361 = vld [vmem:[%s1269 + $0x141] sm:$0xff]
      %v1362 = vld [vmem:[%s1269 + $0x151] sm:$0xff]
      %v1363 = vld [vmem:[%s1269 + $0x159] sm:$0xff]
      %v1364 = vld [vmem:[%s1269 + $0x169] sm:$0xff]
      %v1365 = vld [vmem:[%s1269 + $0x171] sm:$0xff]
      %1398 = vrot.lane.b32.xlu0 %v1334, 64
      %v1399 = vpop.permute.xlu0 %1398
      %1400 = vrot.lane.b32.xlu0 %v1335, 64
      %v1401 = vpop.permute.xlu0 %1400
      %1402 = vrot.lane.b32.xlu0 %v1336, 64
      %v1403 = vpop.permute.xlu0 %1402
      %1404 = vrot.lane.b32.xlu0 %v1337, 64
      %v1405 = vpop.permute.xlu0 %1404
      %1406 = vrot.lane.b32.xlu0 %v1338, 64
      %v1407 = vpop.permute.xlu0 %1406
      %1408 = vrot.lane.b32.xlu0 %v1339, 64
      %v1409 = vpop.permute.xlu0 %1408
      %1410 = vrot.lane.b32.xlu0 %v1340, 64
      %v1411 = vpop.permute.xlu0 %1410
      %1412 = vrot.lane.b32.xlu0 %v1341, 64
      %v1413 = vpop.permute.xlu0 %1412
      %1414 = vrot.lane.b32.xlu0 %v1342, 64
      %v1415 = vpop.permute.xlu0 %1414
      %1416 = vrot.lane.b32.xlu0 %v1343, 64
      %v1417 = vpop.permute.xlu0 %1416
      %1418 = vrot.lane.b32.xlu0 %v1344, 64
      %v1419 = vpop.permute.xlu0 %1418
      %1420 = vrot.lane.b32.xlu0 %v1345, 64
      %v1421 = vpop.permute.xlu0 %1420
      %1422 = vrot.lane.b32.xlu0 %v1346, 64
      %v1423 = vpop.permute.xlu0 %1422
      %1424 = vrot.lane.b32.xlu0 %v1347, 64
      %v1425 = vpop.permute.xlu0 %1424
      %1426 = vrot.lane.b32.xlu0 %v1348, 64
      %v1427 = vpop.permute.xlu0 %1426
      %1428 = vrot.lane.b32.xlu0 %v1349, 64
      %v1429 = vpop.permute.xlu0 %1428
      %1430 = vrot.lane.b32.xlu0 %v1350, 64
      %v1431 = vpop.permute.xlu0 %1430
      %1432 = vrot.lane.b32.xlu0 %v1351, 64
      %v1433 = vpop.permute.xlu0 %1432
      %1434 = vrot.lane.b32.xlu0 %v1352, 64
      %v1435 = vpop.permute.xlu0 %1434
      %1436 = vrot.lane.b32.xlu0 %v1353, 64
      %v1437 = vpop.permute.xlu0 %1436
      %1438 = vrot.lane.b32.xlu0 %v1354, 64
      %v1439 = vpop.permute.xlu0 %1438
      %1440 = vrot.lane.b32.xlu0 %v1355, 64
      %v1441 = vpop.permute.xlu0 %1440
      %1442 = vrot.lane.b32.xlu0 %v1356, 64
      %v1443 = vpop.permute.xlu0 %1442
      %1444 = vrot.lane.b32.xlu0 %v1357, 64
      %v1445 = vpop.permute.xlu0 %1444
      %1446 = vrot.lane.b32.xlu0 %v1358, 64
      %v1447 = vpop.permute.xlu0 %1446
      %1448 = vrot.lane.b32.xlu0 %v1359, 64
      %v1449 = vpop.permute.xlu0 %1448
      %1450 = vrot.lane.b32.xlu0 %v1360, 64
      %v1451 = vpop.permute.xlu0 %1450
      %1452 = vrot.lane.b32.xlu0 %v1361, 64
      %v1453 = vpop.permute.xlu0 %1452
      %1454 = vrot.lane.b32.xlu0 %v1362, 64
      %v1455 = vpop.permute.xlu0 %1454
      %1456 = vrot.lane.b32.xlu0 %v1363, 64
      %v1457 = vpop.permute.xlu0 %1456
      %1458 = vrot.lane.b32.xlu0 %v1364, 64
      %v1459 = vpop.permute.xlu0 %1458
      %1460 = vrot.lane.b32.xlu0 %v1365, 64
      %v1461 = vpop.permute.xlu0 %1460
      %1494 = vst.msk [vmem:[#allocation3 + $0x18] sm:$0xff] %vm724, %v1399
      %1495 = vst.msk [vmem:[#allocation3 + $0x40] sm:$0xff] %vm724, %v1401
      %1496 = vst.msk [vmem:[#allocation3 + $0x68] sm:$0xff] %vm724, %v1403
      %1497 = vst.msk [vmem:[#allocation3 + $0x90] sm:$0xff] %vm724, %v1405
      %1498 = vst.msk [vmem:[#allocation3 + $0xb8] sm:$0xff] %vm724, %v1407
      %1499 = vst.msk [vmem:[#allocation3 + $0xe0] sm:$0xff] %vm724, %v1409
      %1500 = vst.msk [vmem:[#allocation3 + $0x108] sm:$0xff] %vm724, %v1411
      %1501 = vst.msk [vmem:[#allocation3 + $0x130] sm:$0xff] %vm724, %v1413
      %1502 = vst.msk [vmem:[#allocation3 + $0x158] sm:$0xff] %vm724, %v1415
      %1503 = vst.msk [vmem:[#allocation3 + $0x180] sm:$0xff] %vm724, %v1417
      %1504 = vst.msk [vmem:[#allocation3 + $0x1a8] sm:$0xff] %vm724, %v1419
      %1505 = vst.msk [vmem:[#allocation3 + $0x1d0] sm:$0xff] %vm724, %v1421
      %1506 = vst.msk [vmem:[#allocation3 + $0x1f8] sm:$0xff] %vm724, %v1423
      %1507 = vst.msk [vmem:[#allocation3 + $0x220] sm:$0xff] %vm724, %v1425
      %1508 = vst.msk [vmem:[#allocation3 + $0x248] sm:$0xff] %vm724, %v1427
      %1509 = vst.msk [vmem:[#allocation3 + $0x270] sm:$0xff] %vm724, %v1429
      %1510 = vst.msk [vmem:[#allocation3 + $0x298] sm:$0xff] %vm724, %v1431
      %1511 = vst.msk [vmem:[#allocation3 + $0x2c0] sm:$0xff] %vm724, %v1433
      %1512 = vst.msk [vmem:[#allocation3 + $0x2e8] sm:$0xff] %vm724, %v1435
      %1513 = vst.msk [vmem:[#allocation3 + $0x310] sm:$0xff] %vm724, %v1437
      %1514 = vst.msk [vmem:[#allocation3 + $0x338] sm:$0xff] %vm724, %v1439
      %1515 = vst.msk [vmem:[#allocation3 + $0x360] sm:$0xff] %vm724, %v1441
      %1516 = vst.msk [vmem:[#allocation3 + $0x388] sm:$0xff] %vm724, %v1443
      %1517 = vst.msk [vmem:[#allocation3 + $0x3b0] sm:$0xff] %vm724, %v1445
      %1518 = vst.msk [vmem:[#allocation3 + $0x3d8] sm:$0xff] %vm724, %v1447
      %1519 = vst.msk [vmem:[#allocation3 + $0x400] sm:$0xff] %vm724, %v1449
      %1520 = vst.msk [vmem:[#allocation3 + $0x428] sm:$0xff] %vm724, %v1451
      %1521 = vst.msk [vmem:[#allocation3 + $0x450] sm:$0xff] %vm724, %v1453
      %1522 = vst.msk [vmem:[#allocation3 + $0x478] sm:$0xff] %vm724, %v1455
      %1523 = vst.msk [vmem:[#allocation3 + $0x4a0] sm:$0xff] %vm724, %v1457
      %1524 = vst.msk [vmem:[#allocation3 + $0x4c8] sm:$0xff] %vm724, %v1459
      %1525 = vst.msk [vmem:[#allocation3 + $0x4f0] sm:$0xff] %vm724, %v1461
      %v1526 = vld [vmem:[%s1269 + $0x2] sm:$0xff]
      %v1527 = vld [vmem:[%s1269 + $0xa] sm:$0xff]
      %v1528 = vld [vmem:[%s1269 + $0x1a] sm:$0xff]
      %v1529 = vld [vmem:[%s1269 + $0x22] sm:$0xff]
      %v1530 = vld [vmem:[%s1269 + $0x32] sm:$0xff]
      %v1531 = vld [vmem:[%s1269 + $0x3a] sm:$0xff]
      %v1532 = vld [vmem:[%s1269 + $0x4a] sm:$0xff]
      %v1533 = vld [vmem:[%s1269 + $0x52] sm:$0xff]
      %v1534 = vld [vmem:[%s1269 + $0x62] sm:$0xff]
      %v1535 = vld [vmem:[%s1269 + $0x6a] sm:$0xff]
      %v1536 = vld [vmem:[%s1269 + $0x7a] sm:$0xff]
      %v1537 = vld [vmem:[%s1269 + $0x82] sm:$0xff]
      %v1538 = vld [vmem:[%s1269 + $0x92] sm:$0xff]
      %v1539 = vld [vmem:[%s1269 + $0x9a] sm:$0xff]
      %v1540 = vld [vmem:[%s1269 + $0xaa] sm:$0xff]
      %v1541 = vld [vmem:[%s1269 + $0xb2] sm:$0xff]
      %v1542 = vld [vmem:[%s1269 + $0xc2] sm:$0xff]
      %v1543 = vld [vmem:[%s1269 + $0xca] sm:$0xff]
      %v1544 = vld [vmem:[%s1269 + $0xda] sm:$0xff]
      %v1545 = vld [vmem:[%s1269 + $0xe2] sm:$0xff]
      %v1546 = vld [vmem:[%s1269 + $0xf2] sm:$0xff]
      %v1547 = vld [vmem:[%s1269 + $0xfa] sm:$0xff]
      %v1548 = vld [vmem:[%s1269 + $0x10a] sm:$0xff]
      %v1549 = vld [vmem:[%s1269 + $0x112] sm:$0xff]
      %v1550 = vld [vmem:[%s1269 + $0x122] sm:$0xff]
      %v1551 = vld [vmem:[%s1269 + $0x12a] sm:$0xff]
      %v1552 = vld [vmem:[%s1269 + $0x13a] sm:$0xff]
      %v1553 = vld [vmem:[%s1269 + $0x142] sm:$0xff]
      %v1554 = vld [vmem:[%s1269 + $0x152] sm:$0xff]
      %v1555 = vld [vmem:[%s1269 + $0x15a] sm:$0xff]
      %v1556 = vld [vmem:[%s1269 + $0x16a] sm:$0xff]
      %v1557 = vld [vmem:[%s1269 + $0x172] sm:$0xff]
      %1558 = vst.msk [vmem:[#allocation3 + $0x20] sm:$0xff] %vm271, %v1526
      %1559 = vst.msk [vmem:[#allocation3 + $0x48] sm:$0xff] %vm271, %v1527
      %1560 = vst.msk [vmem:[#allocation3 + $0x70] sm:$0xff] %vm271, %v1528
      %1561 = vst.msk [vmem:[#allocation3 + $0x98] sm:$0xff] %vm271, %v1529
      %1562 = vst.msk [vmem:[#allocation3 + $0xc0] sm:$0xff] %vm271, %v1530
      %1563 = vst.msk [vmem:[#allocation3 + $0xe8] sm:$0xff] %vm271, %v1531
      %1564 = vst.msk [vmem:[#allocation3 + $0x110] sm:$0xff] %vm271, %v1532
      %1565 = vst.msk [vmem:[#allocation3 + $0x138] sm:$0xff] %vm271, %v1533
      %1566 = vst.msk [vmem:[#allocation3 + $0x160] sm:$0xff] %vm271, %v1534
      %1567 = vst.msk [vmem:[#allocation3 + $0x188] sm:$0xff] %vm271, %v1535
      %1568 = vst.msk [vmem:[#allocation3 + $0x1b0] sm:$0xff] %vm271, %v1536
      %1569 = vst.msk [vmem:[#allocation3 + $0x1d8] sm:$0xff] %vm271, %v1537
      %1570 = vst.msk [vmem:[#allocation3 + $0x200] sm:$0xff] %vm271, %v1538
      %1571 = vst.msk [vmem:[#allocation3 + $0x228] sm:$0xff] %vm271, %v1539
      %1572 = vst.msk [vmem:[#allocation3 + $0x250] sm:$0xff] %vm271, %v1540
      %1573 = vst.msk [vmem:[#allocation3 + $0x278] sm:$0xff] %vm271, %v1541
      %1574 = vst.msk [vmem:[#allocation3 + $0x2a0] sm:$0xff] %vm271, %v1542
      %1575 = vst.msk [vmem:[#allocation3 + $0x2c8] sm:$0xff] %vm271, %v1543
      %1576 = vst.msk [vmem:[#allocation3 + $0x2f0] sm:$0xff] %vm271, %v1544
      %1577 = vst.msk [vmem:[#allocation3 + $0x318] sm:$0xff] %vm271, %v1545
      %1578 = vst.msk [vmem:[#allocation3 + $0x340] sm:$0xff] %vm271, %v1546
      %1579 = vst.msk [vmem:[#allocation3 + $0x368] sm:$0xff] %vm271, %v1547
      %1580 = vst.msk [vmem:[#allocation3 + $0x390] sm:$0xff] %vm271, %v1548
      %1581 = vst.msk [vmem:[#allocation3 + $0x3b8] sm:$0xff] %vm271, %v1549
      %1582 = vst.msk [vmem:[#allocation3 + $0x3e0] sm:$0xff] %vm271, %v1550
      %1583 = vst.msk [vmem:[#allocation3 + $0x408] sm:$0xff] %vm271, %v1551
      %1584 = vst.msk [vmem:[#allocation3 + $0x430] sm:$0xff] %vm271, %v1552
      %1585 = vst.msk [vmem:[#allocation3 + $0x458] sm:$0xff] %vm271, %v1553
      %1586 = vst.msk [vmem:[#allocation3 + $0x480] sm:$0xff] %vm271, %v1554
      %1587 = vst.msk [vmem:[#allocation3 + $0x4a8] sm:$0xff] %vm271, %v1555
      %1588 = vst.msk [vmem:[#allocation3 + $0x4d0] sm:$0xff] %vm271, %v1556
      %1589 = vst.msk [vmem:[#allocation3 + $0x4f8] sm:$0xff] %vm271, %v1557
      %v1590 = vld [vmem:[#allocation3] sm:$0xff]
      %v1591 = vld [vmem:[#allocation3 + $0x8] sm:$0xff]
      %v1592 = vld [vmem:[#allocation3 + $0x10] sm:$0xff]
      %v1593 = vld [vmem:[#allocation3 + $0x18] sm:$0xff]
      %v1594 = vld [vmem:[#allocation3 + $0x20] sm:$0xff]
      %v1595 = vld [vmem:[#allocation3 + $0x28] sm:$0xff]
      %v1596 = vld [vmem:[#allocation3 + $0x30] sm:$0xff]
      %v1597 = vld [vmem:[#allocation3 + $0x38] sm:$0xff]
      %v1598 = vld [vmem:[#allocation3 + $0x40] sm:$0xff]
      %v1599 = vld [vmem:[#allocation3 + $0x48] sm:$0xff]
      %v1600 = vld [vmem:[#allocation3 + $0x50] sm:$0xff]
      %v1601 = vld [vmem:[#allocation3 + $0x58] sm:$0xff]
      %v1602 = vld [vmem:[#allocation3 + $0x60] sm:$0xff]
      %v1603 = vld [vmem:[#allocation3 + $0x68] sm:$0xff]
      %v1604 = vld [vmem:[#allocation3 + $0x70] sm:$0xff]
      %v1605 = vld [vmem:[#allocation3 + $0x78] sm:$0xff]
      %v1606 = vld [vmem:[#allocation3 + $0x80] sm:$0xff]
      %v1607 = vld [vmem:[#allocation3 + $0x88] sm:$0xff]
      %v1608 = vld [vmem:[#allocation3 + $0x90] sm:$0xff]
      %v1609 = vld [vmem:[#allocation3 + $0x98] sm:$0xff]
      %v1610 = vld [vmem:[#allocation3 + $0xa0] sm:$0xff]
      %v1611 = vld [vmem:[#allocation3 + $0xa8] sm:$0xff]
      %v1612 = vld [vmem:[#allocation3 + $0xb0] sm:$0xff]
      %v1613 = vld [vmem:[#allocation3 + $0xb8] sm:$0xff]
      %v1614 = vld [vmem:[#allocation3 + $0xc0] sm:$0xff]
      %v1615 = vld [vmem:[#allocation3 + $0xc8] sm:$0xff]
      %v1616 = vld [vmem:[#allocation3 + $0xd0] sm:$0xff]
      %v1617 = vld [vmem:[#allocation3 + $0xd8] sm:$0xff]
      %v1618 = vld [vmem:[#allocation3 + $0xe0] sm:$0xff]
      %v1619 = vld [vmem:[#allocation3 + $0xe8] sm:$0xff]
      %v1620 = vld [vmem:[#allocation3 + $0xf0] sm:$0xff]
      %v1621 = vld [vmem:[#allocation3 + $0xf8] sm:$0xff]
      %v1622 = vld [vmem:[#allocation3 + $0x100] sm:$0xff]
      %v1623 = vld [vmem:[#allocation3 + $0x108] sm:$0xff]
      %v1624 = vld [vmem:[#allocation3 + $0x110] sm:$0xff]
      %v1625 = vld [vmem:[#allocation3 + $0x118] sm:$0xff]
      %v1626 = vld [vmem:[#allocation3 + $0x120] sm:$0xff]
      %v1627 = vld [vmem:[#allocation3 + $0x128] sm:$0xff]
      %v1628 = vld [vmem:[#allocation3 + $0x130] sm:$0xff]
      %v1629 = vld [vmem:[#allocation3 + $0x138] sm:$0xff]
      %v1630 = vld [vmem:[#allocation3 + $0x140] sm:$0xff]
      %v1631 = vld [vmem:[#allocation3 + $0x148] sm:$0xff]
      %v1632 = vld [vmem:[#allocation3 + $0x150] sm:$0xff]
      %v1633 = vld [vmem:[#allocation3 + $0x158] sm:$0xff]
      %v1634 = vld [vmem:[#allocation3 + $0x160] sm:$0xff]
      %v1635 = vld [vmem:[#allocation3 + $0x168] sm:$0xff]
      %v1636 = vld [vmem:[#allocation3 + $0x170] sm:$0xff]
      %v1637 = vld [vmem:[#allocation3 + $0x178] sm:$0xff]
      %v1638 = vld [vmem:[#allocation3 + $0x180] sm:$0xff]
      %v1639 = vld [vmem:[#allocation3 + $0x188] sm:$0xff]
      %v1640 = vld [vmem:[#allocation3 + $0x190] sm:$0xff]
      %v1641 = vld [vmem:[#allocation3 + $0x198] sm:$0xff]
      %v1642 = vld [vmem:[#allocation3 + $0x1a0] sm:$0xff]
      %v1643 = vld [vmem:[#allocation3 + $0x1a8] sm:$0xff]
      %v1644 = vld [vmem:[#allocation3 + $0x1b0] sm:$0xff]
      %v1645 = vld [vmem:[#allocation3 + $0x1b8] sm:$0xff]
      %v1646 = vld [vmem:[#allocation3 + $0x1c0] sm:$0xff]
      %v1647 = vld [vmem:[#allocation3 + $0x1c8] sm:$0xff]
      %v1648 = vld [vmem:[#allocation3 + $0x1d0] sm:$0xff]
      %v1649 = vld [vmem:[#allocation3 + $0x1d8] sm:$0xff]
      %v1650 = vld [vmem:[#allocation3 + $0x1e0] sm:$0xff]
      %v1651 = vld [vmem:[#allocation3 + $0x1e8] sm:$0xff]
      %v1652 = vld [vmem:[#allocation3 + $0x1f0] sm:$0xff]
      %v1653 = vld [vmem:[#allocation3 + $0x1f8] sm:$0xff]
      %v1654 = vld [vmem:[#allocation3 + $0x200] sm:$0xff]
      %v1655 = vld [vmem:[#allocation3 + $0x208] sm:$0xff]
      %v1656 = vld [vmem:[#allocation3 + $0x210] sm:$0xff]
      %v1657 = vld [vmem:[#allocation3 + $0x218] sm:$0xff]
      %v1658 = vld [vmem:[#allocation3 + $0x220] sm:$0xff]
      %v1659 = vld [vmem:[#allocation3 + $0x228] sm:$0xff]
      %v1660 = vld [vmem:[#allocation3 + $0x230] sm:$0xff]
      %v1661 = vld [vmem:[#allocation3 + $0x238] sm:$0xff]
      %v1662 = vld [vmem:[#allocation3 + $0x240] sm:$0xff]
      %v1663 = vld [vmem:[#allocation3 + $0x248] sm:$0xff]
      %v1664 = vld [vmem:[#allocation3 + $0x250] sm:$0xff]
      %v1665 = vld [vmem:[#allocation3 + $0x258] sm:$0xff]
      %v1666 = vld [vmem:[#allocation3 + $0x260] sm:$0xff]
      %v1667 = vld [vmem:[#allocation3 + $0x268] sm:$0xff]
      %v1668 = vld [vmem:[#allocation3 + $0x270] sm:$0xff]
      %v1669 = vld [vmem:[#allocation3 + $0x278] sm:$0xff]
      %v1670 = vld [vmem:[#allocation3 + $0x280] sm:$0xff]
      %v1671 = vld [vmem:[#allocation3 + $0x288] sm:$0xff]
      %v1672 = vld [vmem:[#allocation3 + $0x290] sm:$0xff]
      %v1673 = vld [vmem:[#allocation3 + $0x298] sm:$0xff]
      %v1674 = vld [vmem:[#allocation3 + $0x2a0] sm:$0xff]
      %v1675 = vld [vmem:[#allocation3 + $0x2a8] sm:$0xff]
      %v1676 = vld [vmem:[#allocation3 + $0x2b0] sm:$0xff]
      %v1677 = vld [vmem:[#allocation3 + $0x2b8] sm:$0xff]
      %v1678 = vld [vmem:[#allocation3 + $0x2c0] sm:$0xff]
      %v1679 = vld [vmem:[#allocation3 + $0x2c8] sm:$0xff]
      %v1680 = vld [vmem:[#allocation3 + $0x2d0] sm:$0xff]
      %v1681 = vld [vmem:[#allocation3 + $0x2d8] sm:$0xff]
      %v1682 = vld [vmem:[#allocation3 + $0x2e0] sm:$0xff]
      %v1683 = vld [vmem:[#allocation3 + $0x2e8] sm:$0xff]
      %v1684 = vld [vmem:[#allocation3 + $0x2f0] sm:$0xff]
      %v1685 = vld [vmem:[#allocation3 + $0x2f8] sm:$0xff]
      %v1686 = vld [vmem:[#allocation3 + $0x300] sm:$0xff]
      %v1687 = vld [vmem:[#allocation3 + $0x308] sm:$0xff]
      %v1688 = vld [vmem:[#allocation3 + $0x310] sm:$0xff]
      %v1689 = vld [vmem:[#allocation3 + $0x318] sm:$0xff]
      %v1690 = vld [vmem:[#allocation3 + $0x320] sm:$0xff]
      %v1691 = vld [vmem:[#allocation3 + $0x328] sm:$0xff]
      %v1692 = vld [vmem:[#allocation3 + $0x330] sm:$0xff]
      %v1693 = vld [vmem:[#allocation3 + $0x338] sm:$0xff]
      %v1694 = vld [vmem:[#allocation3 + $0x340] sm:$0xff]
      %v1695 = vld [vmem:[#allocation3 + $0x348] sm:$0xff]
      %v1696 = vld [vmem:[#allocation3 + $0x350] sm:$0xff]
      %v1697 = vld [vmem:[#allocation3 + $0x358] sm:$0xff]
      %v1698 = vld [vmem:[#allocation3 + $0x360] sm:$0xff]
      %v1699 = vld [vmem:[#allocation3 + $0x368] sm:$0xff]
      %v1700 = vld [vmem:[#allocation3 + $0x370] sm:$0xff]
      %v1701 = vld [vmem:[#allocation3 + $0x378] sm:$0xff]
      %v1702 = vld [vmem:[#allocation3 + $0x380] sm:$0xff]
      %v1703 = vld [vmem:[#allocation3 + $0x388] sm:$0xff]
      %v1704 = vld [vmem:[#allocation3 + $0x390] sm:$0xff]
      %v1705 = vld [vmem:[#allocation3 + $0x398] sm:$0xff]
      %v1706 = vld [vmem:[#allocation3 + $0x3a0] sm:$0xff]
      %v1707 = vld [vmem:[#allocation3 + $0x3a8] sm:$0xff]
      %v1708 = vld [vmem:[#allocation3 + $0x3b0] sm:$0xff]
      %v1709 = vld [vmem:[#allocation3 + $0x3b8] sm:$0xff]
      %v1710 = vld [vmem:[#allocation3 + $0x3c0] sm:$0xff]
      %v1711 = vld [vmem:[#allocation3 + $0x3c8] sm:$0xff]
      %v1712 = vld [vmem:[#allocation3 + $0x3d0] sm:$0xff]
      %v1713 = vld [vmem:[#allocation3 + $0x3d8] sm:$0xff]
      %v1714 = vld [vmem:[#allocation3 + $0x3e0] sm:$0xff]
      %v1715 = vld [vmem:[#allocation3 + $0x3e8] sm:$0xff]
      %v1716 = vld [vmem:[#allocation3 + $0x3f0] sm:$0xff]
      %v1717 = vld [vmem:[#allocation3 + $0x3f8] sm:$0xff]
      %v1718 = vld [vmem:[#allocation3 + $0x400] sm:$0xff]
      %v1719 = vld [vmem:[#allocation3 + $0x408] sm:$0xff]
      %v1720 = vld [vmem:[#allocation3 + $0x410] sm:$0xff]
      %v1721 = vld [vmem:[#allocation3 + $0x418] sm:$0xff]
      %v1722 = vld [vmem:[#allocation3 + $0x420] sm:$0xff]
      %v1723 = vld [vmem:[#allocation3 + $0x428] sm:$0xff]
      %v1724 = vld [vmem:[#allocation3 + $0x430] sm:$0xff]
      %v1725 = vld [vmem:[#allocation3 + $0x438] sm:$0xff]
      %v1726 = vld [vmem:[#allocation3 + $0x440] sm:$0xff]
      %v1727 = vld [vmem:[#allocation3 + $0x448] sm:$0xff]
      %v1728 = vld [vmem:[#allocation3 + $0x450] sm:$0xff]
      %v1729 = vld [vmem:[#allocation3 + $0x458] sm:$0xff]
      %v1730 = vld [vmem:[#allocation3 + $0x460] sm:$0xff]
      %v1731 = vld [vmem:[#allocation3 + $0x468] sm:$0xff]
      %v1732 = vld [vmem:[#allocation3 + $0x470] sm:$0xff]
      %v1733 = vld [vmem:[#allocation3 + $0x478] sm:$0xff]
      %v1734 = vld [vmem:[#allocation3 + $0x480] sm:$0xff]
      %v1735 = vld [vmem:[#allocation3 + $0x488] sm:$0xff]
      %v1736 = vld [vmem:[#allocation3 + $0x490] sm:$0xff]
      %v1737 = vld [vmem:[#allocation3 + $0x498] sm:$0xff]
      %v1738 = vld [vmem:[#allocation3 + $0x4a0] sm:$0xff]
      %v1739 = vld [vmem:[#allocation3 + $0x4a8] sm:$0xff]
      %v1740 = vld [vmem:[#allocation3 + $0x4b0] sm:$0xff]
      %v1741 = vld [vmem:[#allocation3 + $0x4b8] sm:$0xff]
      %v1742 = vld [vmem:[#allocation3 + $0x4c0] sm:$0xff]
      %v1743 = vld [vmem:[#allocation3 + $0x4c8] sm:$0xff]
      %v1744 = vld [vmem:[#allocation3 + $0x4d0] sm:$0xff]
      %v1745 = vld [vmem:[#allocation3 + $0x4d8] sm:$0xff]
      %v1746 = vld [vmem:[#allocation3 + $0x4e0] sm:$0xff]
      %v1747 = vld [vmem:[#allocation3 + $0x4e8] sm:$0xff]
      %v1748 = vld [vmem:[#allocation3 + $0x4f0] sm:$0xff]
      %v1749 = vld [vmem:[#allocation3 + $0x4f8] sm:$0xff]
      %v1750 = vld [vmem:[%s3] sm:$0xff]
      %v1751 = vld [vmem:[%s3 + $0x8] sm:$0xff]
      %v1752 = vld [vmem:[%s3 + $0x10] sm:$0xff]
      %v1753 = vld [vmem:[%s3 + $0x18] sm:$0xff]
      %v1754 = vld [vmem:[%s3 + $0x20] sm:$0xff]
      %v1755 = vld [vmem:[%s3 + $0x28] sm:$0xff]
      %v1756 = vld [vmem:[%s3 + $0x30] sm:$0xff]
      %v1757 = vld [vmem:[%s3 + $0x38] sm:$0xff]
      %v1758 = vld [vmem:[%s3 + $0x40] sm:$0xff]
      %v1759 = vld [vmem:[%s3 + $0x48] sm:$0xff]
      %v1760 = vld [vmem:[%s3 + $0x50] sm:$0xff]
      %v1761 = vld [vmem:[%s3 + $0x58] sm:$0xff]
      %v1762 = vld [vmem:[%s3 + $0x60] sm:$0xff]
      %v1763 = vld [vmem:[%s3 + $0x68] sm:$0xff]
      %v1764 = vld [vmem:[%s3 + $0x70] sm:$0xff]
      %v1765 = vld [vmem:[%s3 + $0x78] sm:$0xff]
      %v1766 = vld [vmem:[%s3 + $0x80] sm:$0xff]
      %v1767 = vld [vmem:[%s3 + $0x88] sm:$0xff]
      %v1768 = vld [vmem:[%s3 + $0x90] sm:$0xff]
      %v1769 = vld [vmem:[%s3 + $0x98] sm:$0xff]
      %v1770 = vld [vmem:[%s3 + $0xa0] sm:$0xff]
      %v1771 = vld [vmem:[%s3 + $0xa8] sm:$0xff]
      %v1772 = vld [vmem:[%s3 + $0xb0] sm:$0xff]
      %v1773 = vld [vmem:[%s3 + $0xb8] sm:$0xff]
      %v1774 = vld [vmem:[%s3 + $0xc0] sm:$0xff]
      %v1775 = vld [vmem:[%s3 + $0xc8] sm:$0xff]
      %v1776 = vld [vmem:[%s3 + $0xd0] sm:$0xff]
      %v1777 = vld [vmem:[%s3 + $0xd8] sm:$0xff]
      %v1778 = vld [vmem:[%s3 + $0xe0] sm:$0xff]
      %v1779 = vld [vmem:[%s3 + $0xe8] sm:$0xff]
      %v1780 = vld [vmem:[%s3 + $0xf0] sm:$0xff]
      %v1781 = vld [vmem:[%s3 + $0xf8] sm:$0xff]
      %v1782 = vld [vmem:[%s3 + $0x100] sm:$0xff]
      %v1783 = vld [vmem:[%s3 + $0x108] sm:$0xff]
      %v1784 = vld [vmem:[%s3 + $0x110] sm:$0xff]
      %v1785 = vld [vmem:[%s3 + $0x118] sm:$0xff]
      %v1786 = vld [vmem:[%s3 + $0x120] sm:$0xff]
      %v1787 = vld [vmem:[%s3 + $0x128] sm:$0xff]
      %v1788 = vld [vmem:[%s3 + $0x130] sm:$0xff]
      %v1789 = vld [vmem:[%s3 + $0x138] sm:$0xff]
      %v1790 = vld [vmem:[%s3 + $0x140] sm:$0xff]
      %v1791 = vld [vmem:[%s3 + $0x148] sm:$0xff]
      %v1792 = vld [vmem:[%s3 + $0x150] sm:$0xff]
      %v1793 = vld [vmem:[%s3 + $0x158] sm:$0xff]
      %v1794 = vld [vmem:[%s3 + $0x160] sm:$0xff]
      %v1795 = vld [vmem:[%s3 + $0x168] sm:$0xff]
      %v1796 = vld [vmem:[%s3 + $0x170] sm:$0xff]
      %v1797 = vld [vmem:[%s3 + $0x178] sm:$0xff]
      %v1798 = vld [vmem:[%s3 + $0x180] sm:$0xff]
      %v1799 = vld [vmem:[%s3 + $0x188] sm:$0xff]
      %v1800 = vld [vmem:[%s3 + $0x190] sm:$0xff]
      %v1801 = vld [vmem:[%s3 + $0x198] sm:$0xff]
      %v1802 = vld [vmem:[%s3 + $0x1a0] sm:$0xff]
      %v1803 = vld [vmem:[%s3 + $0x1a8] sm:$0xff]
      %v1804 = vld [vmem:[%s3 + $0x1b0] sm:$0xff]
      %v1805 = vld [vmem:[%s3 + $0x1b8] sm:$0xff]
      %v1806 = vld [vmem:[%s3 + $0x1c0] sm:$0xff]
      %v1807 = vld [vmem:[%s3 + $0x1c8] sm:$0xff]
      %v1808 = vld [vmem:[%s3 + $0x1d0] sm:$0xff]
      %v1809 = vld [vmem:[%s3 + $0x1d8] sm:$0xff]
      %v1810 = vld [vmem:[%s3 + $0x1e0] sm:$0xff]
      %v1811 = vld [vmem:[%s3 + $0x1e8] sm:$0xff]
      %v1812 = vld [vmem:[%s3 + $0x1f0] sm:$0xff]
      %v1813 = vld [vmem:[%s3 + $0x1f8] sm:$0xff]
      %v1814 = vld [vmem:[%s3 + $0x200] sm:$0xff]
      %v1815 = vld [vmem:[%s3 + $0x208] sm:$0xff]
      %v1816 = vld [vmem:[%s3 + $0x210] sm:$0xff]
      %v1817 = vld [vmem:[%s3 + $0x218] sm:$0xff]
      %v1818 = vld [vmem:[%s3 + $0x220] sm:$0xff]
      %v1819 = vld [vmem:[%s3 + $0x228] sm:$0xff]
      %v1820 = vld [vmem:[%s3 + $0x230] sm:$0xff]
      %v1821 = vld [vmem:[%s3 + $0x238] sm:$0xff]
      %v1823 = vsel %vm271, %v1594, 0
      %v1826 = vsel %vm271, %v1599, 0
      %v1829 = vsel %vm271, %v1604, 0
      %v1832 = vsel %vm271, %v1609, 0
      %v1835 = vsel %vm271, %v1614, 0
      %v1838 = vsel %vm271, %v1619, 0
      %v1841 = vsel %vm271, %v1624, 0
      %v1844 = vsel %vm271, %v1629, 0
      %v1847 = vsel %vm271, %v1634, 0
      %v1850 = vsel %vm271, %v1639, 0
      %v1853 = vsel %vm271, %v1644, 0
      %v1856 = vsel %vm271, %v1649, 0
      %v1859 = vsel %vm271, %v1654, 0
      %v1862 = vsel %vm271, %v1659, 0
      %v1865 = vsel %vm271, %v1664, 0
      %v1868 = vsel %vm271, %v1669, 0
      %v1871 = vsel %vm271, %v1674, 0
      %v1874 = vsel %vm271, %v1679, 0
      %v1877 = vsel %vm271, %v1684, 0
      %v1880 = vsel %vm271, %v1689, 0
      %v1883 = vsel %vm271, %v1694, 0
      %v1886 = vsel %vm271, %v1699, 0
      %v1889 = vsel %vm271, %v1704, 0
      %v1892 = vsel %vm271, %v1709, 0
      %v1895 = vsel %vm271, %v1714, 0
      %v1898 = vsel %vm271, %v1719, 0
      %v1901 = vsel %vm271, %v1724, 0
      %v1904 = vsel %vm271, %v1729, 0
      %v1907 = vsel %vm271, %v1734, 0
      %v1910 = vsel %vm271, %v1739, 0
      %v1913 = vsel %vm271, %v1744, 0
      %v1916 = vsel %vm271, %v1749, 0
      %1918 = vmatprep.subr.mxu0 0.0
      %1919 = vmatpush1.msra.mxu0 %v1750
      %1920 = vmatprep.subr.mxu0 0.0
      %1921 = vmatpush1.msra.mxu0 %v1751
      %1922 = vmatprep.subr.mxu0 0.0
      %1923 = vmatpush1.msra.mxu0 %v1752
      %1924 = vmatprep.subr.mxu0 0.0
      %1925 = vmatpush1.msra.mxu0 %v1753
      %1926 = vmatprep.subr.mxu0 0.0
      %1927 = vmatpush1.msra.mxu0 %v1754
      %1928 = vmatprep.subr.mxu0 0.0
      %1929 = vmatpush1.msra.mxu0 %v1755
      %1930 = vmatprep.subr.mxu0 0.0
      %1931 = vmatpush1.msra.mxu0 %v1756
      %1932 = vmatprep.subr.mxu0 0.0
      %1933 = vmatpush1.msra.mxu0 %v1757
      %1934 = vmatprep.subr.mxu0 0.0
      %1935 = vmatpush1.msra.mxu0 %v1758
      %1936 = vmatprep.subr.mxu0 0.0
      %1937 = vmatpush1.msra.mxu0 %v1759
      %1938 = vmatprep.subr.mxu0 0.0
      %1939 = vmatpush1.msra.mxu0 %v1760
      %1940 = vmatprep.subr.mxu0 0.0
      %1941 = vmatpush1.msra.mxu0 %v1761
      %1942 = vmatprep.subr.mxu0 0.0
      %1943 = vmatpush1.msra.mxu0 %v1762
      %1944 = vmatprep.subr.mxu0 0.0
      %1945 = vmatpush1.msra.mxu0 %v1763
      %1946 = vmatprep.subr.mxu0 0.0
      %1947 = vmatpush1.msra.mxu0 %v1764
      %1948 = vmatprep.subr.mxu0 0.0
      %1949 = vmatpush1.msra.mxu0 %v1765
      %1950 = vmatprep.subr.mxu0 0.0
      %1951 = vmatpush1.msra.mxu0 %v1766
      %1952 = vmatprep.subr.mxu0 0.0
      %1953 = vmatpush1.msra.mxu0 %v1767
      %1954 = vmatprep.subr.mxu0 0.0
      %1955 = vmatpush1.msra.mxu0 %v1768
      %1956 = vmatprep.subr.mxu0 0.0
      %1957 = vmatpush1.msra.mxu0 %v1769
      %1958 = vmatprep.subr.mxu0 0.0
      %1959 = vmatpush1.msra.mxu0 %v1770
      %1960 = vmatprep.subr.mxu0 0.0
      %1961 = vmatpush1.msra.mxu0 %v1771
      %1962 = vmatprep.subr.mxu0 0.0
      %1963 = vmatpush1.msra.mxu0 %v1772
      %1964 = vmatprep.subr.mxu0 0.0
      %1965 = vmatpush1.msra.mxu0 %v1773
      %1966 = vmatprep.subr.mxu0 0.0
      %1967 = vmatpush1.msra.mxu0 %v1774
      %1968 = vmatprep.subr.mxu0 0.0
      %1969 = vmatpush1.msra.mxu0 %v1775
      %1970 = vmatprep.subr.mxu0 0.0
      %1971 = vmatpush1.msra.mxu0 %v1776
      %1972 = vmatprep.subr.mxu0 0.0
      %1973 = vmatpush1.msra.mxu0 %v1777
      %1974 = vmatprep.subr.mxu0 0.0
      %1975 = vmatpush1.msra.mxu0 %v1778
      %1976 = vmatprep.subr.mxu0 0.0
      %1977 = vmatpush1.msra.mxu0 %v1779
      %1978 = vmatprep.subr.mxu0 0.0
      %1979 = vmatpush1.msra.mxu0 %v1780
      %1980 = vmatprep.subr.mxu0 0.0
      %1981 = vmatpush1.msra.mxu0 %v1781
      %1982 = vmatprep.mubr.f32.mxu0 %v1591
      %1983 = vmatmul.mubr.f32.gmra.mrb[0].mxu0 %v1590
      %v1984 = vpop.f32.mrb[0].mxu0
      %v1985 = vadd.f32 0.0, %v1984
      %v1986 = vpop.f32.mrb[0].mxu0
      %1987 = vmatprep.mubr.f32.mxu0 %v1596
      %1988 = vmatmul.mubr.f32.gmra.mrb[0].mxu0 %v1595
      %v1989 = vpop.f32.mrb[0].mxu0
      %v1990 = vadd.f32 0.0, %v1989
      %v1991 = vpop.f32.mrb[0].mxu0
      %1992 = vmatprep.mubr.f32.mxu0 %v1601
      %1993 = vmatmul.mubr.f32.gmra.mrb[0].mxu0 %v1600
      %v1994 = vpop.f32.mrb[0].mxu0
      %v1995 = vadd.f32 0.0, %v1994
      %v1996 = vpop.f32.mrb[0].mxu0
      %1997 = vmatprep.mubr.f32.mxu0 %v1606
      %1998 = vmatmul.mubr.f32.gmra.mrb[0].mxu0 %v1605
      %v1999 = vpop.f32.mrb[0].mxu0
      %v2000 = vadd.f32 0.0, %v1999
      %v2001 = vpop.f32.mrb[0].mxu0
      %2002 = vmatprep.mubr.f32.mxu0 %v1611
      %2003 = vmatmul.mubr.f32.gmra.mrb[0].mxu0 %v1610
      %v2004 = vpop.f32.mrb[0].mxu0
      %v2005 = vadd.f32 0.0, %v2004
      %v2006 = vpop.f32.mrb[0].mxu0
      %2007 = vmatprep.mubr.f32.mxu0 %v1616
      %2008 = vmatmul.mubr.f32.gmra.mrb[0].mxu0 %v1615
      %v2009 = vpop.f32.mrb[0].mxu0
      %v2010 = vadd.f32 0.0, %v2009
      %v2011 = vpop.f32.mrb[0].mxu0
      %2012 = vmatprep.mubr.f32.mxu0 %v1621
      %2013 = vmatmul.mubr.f32.gmra.mrb[0].mxu0 %v1620
      %v2014 = vpop.f32.mrb[0].mxu0
      %v2015 = vadd.f32 0.0, %v2014
      %v2016 = vpop.f32.mrb[0].mxu0
      %2017 = vmatprep.mubr.f32.mxu0 %v1626
      %2018 = vmatmul.mubr.f32.gmra.mrb[0].mxu0 %v1625
      %v2019 = vpop.f32.mrb[0].mxu0
      %v2020 = vadd.f32 0.0, %v2019
      %v2021 = vpop.f32.mrb[0].mxu0
      %2022 = vmatprep.mubr.f32.mxu0 %v1631
      %2023 = vmatmul.mubr.f32.gmra.mrb[0].mxu0 %v1630
      %v2024 = vpop.f32.mrb[0].mxu0
      %v2025 = vadd.f32 0.0, %v2024
      %v2026 = vpop.f32.mrb[0].mxu0
      %2027 = vmatprep.mubr.f32.mxu0 %v1636
      %2028 = vmatmul.mubr.f32.gmra.mrb[0].mxu0 %v1635
      %v2029 = vpop.f32.mrb[0].mxu0
      %v2030 = vadd.f32 0.0, %v2029
      %v2031 = vpop.f32.mrb[0].mxu0
      %2032 = vmatprep.mubr.f32.mxu0 %v1641
      %2033 = vmatmul.mubr.f32.gmra.mrb[0].mxu0 %v1640
      %v2034 = vpop.f32.mrb[0].mxu0
      %v2035 = vadd.f32 0.0, %v2034
      %v2036 = vpop.f32.mrb[0].mxu0
      %2037 = vmatprep.mubr.f32.mxu0 %v1646
      %2038 = vmatmul.mubr.f32.gmra.mrb[0].mxu0 %v1645
      %v2039 = vpop.f32.mrb[0].mxu0
      %v2040 = vadd.f32 0.0, %v2039
      %v2041 = vpop.f32.mrb[0].mxu0
      %2042 = vmatprep.mubr.f32.mxu0 %v1651
      %2043 = vmatmul.mubr.f32.gmra.mrb[0].mxu0 %v1650
      %v2044 = vpop.f32.mrb[0].mxu0
      %v2045 = vadd.f32 0.0, %v2044
      %v2046 = vpop.f32.mrb[0].mxu0
      %2047 = vmatprep.mubr.f32.mxu0 %v1656
      %2048 = vmatmul.mubr.f32.gmra.mrb[0].mxu0 %v1655
      %v2049 = vpop.f32.mrb[0].mxu0
      %v2050 = vadd.f32 0.0, %v2049
      %v2051 = vpop.f32.mrb[0].mxu0
      %2052 = vmatprep.mubr.f32.mxu0 %v1661
      %2053 = vmatmul.mubr.f32.gmra.mrb[0].mxu0 %v1660
      %v2054 = vpop.f32.mrb[0].mxu0
      %v2055 = vadd.f32 0.0, %v2054
      %v2056 = vpop.f32.mrb[0].mxu0
      %2057 = vmatprep.mubr.f32.mxu0 %v1666
      %2058 = vmatmul.mubr.f32.gmra.mrb[0].mxu0 %v1665
      %v2059 = vpop.f32.mrb[0].mxu0
      %v2060 = vadd.f32 0.0, %v2059
      %v2061 = vpop.f32.mrb[0].mxu0
      %2062 = vmatprep.mubr.f32.mxu0 %v1671
      %2063 = vmatmul.mubr.f32.gmra.mrb[0].mxu0 %v1670
      %v2064 = vpop.f32.mrb[0].mxu0
      %v2065 = vadd.f32 0.0, %v2064
      %v2066 = vpop.f32.mrb[0].mxu0
      %2067 = vmatprep.mubr.f32.mxu0 %v1676
      %2068 = vmatmul.mubr.f32.gmra.mrb[0].mxu0 %v1675
      %v2069 = vpop.f32.mrb[0].mxu0
      %v2070 = vadd.f32 0.0, %v2069
      %v2071 = vpop.f32.mrb[0].mxu0
      %2072 = vmatprep.mubr.f32.mxu0 %v1681
      %2073 = vmatmul.mubr.f32.gmra.mrb[0].mxu0 %v1680
      %v2074 = vpop.f32.mrb[0].mxu0
      %v2075 = vadd.f32 0.0, %v2074
      %v2076 = vpop.f32.mrb[0].mxu0
      %2077 = vmatprep.mubr.f32.mxu0 %v1686
      %2078 = vmatmul.mubr.f32.gmra.mrb[0].mxu0 %v1685
      %v2079 = vpop.f32.mrb[0].mxu0
      %v2080 = vadd.f32 0.0, %v2079
      %v2081 = vpop.f32.mrb[0].mxu0
      %2082 = vmatprep.mubr.f32.mxu0 %v1691
      %2083 = vmatmul.mubr.f32.gmra.mrb[0].mxu0 %v1690
      %v2084 = vpop.f32.mrb[0].mxu0
      %v2085 = vadd.f32 0.0, %v2084
      %v2086 = vpop.f32.mrb[0].mxu0
      %2087 = vmatprep.mubr.f32.mxu0 %v1696
      %2088 = vmatmul.mubr.f32.gmra.mrb[0].mxu0 %v1695
      %v2089 = vpop.f32.mrb[0].mxu0
      %v2090 = vadd.f32 0.0, %v2089
      %v2091 = vpop.f32.mrb[0].mxu0
      %2092 = vmatprep.mubr.f32.mxu0 %v1701
      %2093 = vmatmul.mubr.f32.gmra.mrb[0].mxu0 %v1700
      %v2094 = vpop.f32.mrb[0].mxu0
      %v2095 = vadd.f32 0.0, %v2094
      %v2096 = vpop.f32.mrb[0].mxu0
      %2097 = vmatprep.mubr.f32.mxu0 %v1706
      %2098 = vmatmul.mubr.f32.gmra.mrb[0].mxu0 %v1705
      %v2099 = vpop.f32.mrb[0].mxu0
      %v2100 = vadd.f32 0.0, %v2099
      %v2101 = vpop.f32.mrb[0].mxu0
      %2102 = vmatprep.mubr.f32.mxu0 %v1711
      %2103 = vmatmul.mubr.f32.gmra.mrb[0].mxu0 %v1710
      %v2104 = vpop.f32.mrb[0].mxu0
      %v2105 = vadd.f32 0.0, %v2104
      %v2106 = vpop.f32.mrb[0].mxu0
      %2107 = vmatprep.mubr.f32.mxu0 %v1716
      %2108 = vmatmul.mubr.f32.gmra.mrb[0].mxu0 %v1715
      %v2109 = vpop.f32.mrb[0].mxu0
      %v2110 = vadd.f32 0.0, %v2109
      %v2111 = vpop.f32.mrb[0].mxu0
      %2112 = vmatprep.mubr.f32.mxu0 %v1721
      %2113 = vmatmul.mubr.f32.gmra.mrb[0].mxu0 %v1720
      %v2114 = vpop.f32.mrb[0].mxu0
      %v2115 = vadd.f32 0.0, %v2114
      %v2116 = vpop.f32.mrb[0].mxu0
      %2117 = vmatprep.mubr.f32.mxu0 %v1726
      %2118 = vmatmul.mubr.f32.gmra.mrb[0].mxu0 %v1725
      %v2119 = vpop.f32.mrb[0].mxu0
      %v2120 = vadd.f32 0.0, %v2119
      %v2121 = vpop.f32.mrb[0].mxu0
      %2122 = vmatprep.mubr.f32.mxu0 %v1731
      %2123 = vmatmul.mubr.f32.gmra.mrb[0].mxu0 %v1730
      %v2124 = vpop.f32.mrb[0].mxu0
      %v2125 = vadd.f32 0.0, %v2124
      %v2126 = vpop.f32.mrb[0].mxu0
      %2127 = vmatprep.mubr.f32.mxu0 %v1736
      %2128 = vmatmul.mubr.f32.gmra.mrb[0].mxu0 %v1735
      %v2129 = vpop.f32.mrb[0].mxu0
      %v2130 = vadd.f32 0.0, %v2129
      %v2131 = vpop.f32.mrb[0].mxu0
      %2132 = vmatprep.mubr.f32.mxu0 %v1741
      %2133 = vmatmul.mubr.f32.gmra.mrb[0].mxu0 %v1740
      %v2134 = vpop.f32.mrb[0].mxu0
      %v2135 = vadd.f32 0.0, %v2134
      %v2136 = vpop.f32.mrb[0].mxu0
      %2137 = vmatprep.mubr.f32.mxu0 %v1746
      %2138 = vmatmul.mubr.f32.gmra.mrb[0].mxu0 %v1745
      %v2139 = vpop.f32.mrb[0].mxu0
      %v2140 = vadd.f32 0.0, %v2139
      %v2141 = vpop.f32.mrb[0].mxu0
      %2142 = vdwg.mxu0
      %2143 = vmatprep.subr.mxu0 0.0
      %2144 = vmatpush1.msra.mxu0 %v1782
      %2145 = vmatprep.subr.mxu0 0.0
      %2146 = vmatpush1.msra.mxu0 %v1783
      %2147 = vmatprep.subr.mxu0 0.0
      %2148 = vmatpush1.msra.mxu0 %v1784
      %2149 = vmatprep.subr.mxu0 0.0
      %2150 = vmatpush1.msra.mxu0 %v1785
      %2151 = vmatprep.subr.mxu0 0.0
      %2152 = vmatpush1.msra.mxu0 %v1786
      %2153 = vmatprep.subr.mxu0 0.0
      %2154 = vmatpush1.msra.mxu0 %v1787
      %2155 = vmatprep.subr.mxu0 0.0
      %2156 = vmatpush1.msra.mxu0 %v1788
      %2157 = vmatprep.subr.mxu0 0.0
      %2158 = vmatpush1.msra.mxu0 %v1789
      %2159 = vmatprep.subr.mxu0 0.0
      %2160 = vmatpush1.msra.mxu0 %v1790
      %2161 = vmatprep.subr.mxu0 0.0
      %2162 = vmatpush1.msra.mxu0 %v1791
      %2163 = vmatprep.subr.mxu0 0.0
      %2164 = vmatpush1.msra.mxu0 %v1792
      %2165 = vmatprep.subr.mxu0 0.0
      %2166 = vmatpush1.msra.mxu0 %v1793
      %2167 = vmatprep.subr.mxu0 0.0
      %2168 = vmatpush1.msra.mxu0 %v1794
      %2169 = vmatprep.subr.mxu0 0.0
      %2170 = vmatpush1.msra.mxu0 %v1795
      %2171 = vmatprep.subr.mxu0 0.0
      %2172 = vmatpush1.msra.mxu0 %v1796
      %2173 = vmatprep.subr.mxu0 0.0
      %2174 = vmatpush1.msra.mxu0 %v1797
      %2175 = vmatprep.subr.mxu0 0.0
      %2176 = vmatpush1.msra.mxu0 %v1798
      %2177 = vmatprep.subr.mxu0 0.0
      %2178 = vmatpush1.msra.mxu0 %v1799
      %2179 = vmatprep.subr.mxu0 0.0
      %2180 = vmatpush1.msra.mxu0 %v1800
      %2181 = vmatprep.subr.mxu0 0.0
      %2182 = vmatpush1.msra.mxu0 %v1801
      %2183 = vmatprep.subr.mxu0 0.0
      %2184 = vmatpush1.msra.mxu0 %v1802
      %2185 = vmatprep.subr.mxu0 0.0
      %2186 = vmatpush1.msra.mxu0 %v1803
      %2187 = vmatprep.subr.mxu0 0.0
      %2188 = vmatpush1.msra.mxu0 %v1804
      %2189 = vmatprep.subr.mxu0 0.0
      %2190 = vmatpush1.msra.mxu0 %v1805
      %2191 = vmatprep.subr.mxu0 0.0
      %2192 = vmatpush1.msra.mxu0 %v1806
      %2193 = vmatprep.subr.mxu0 0.0
      %2194 = vmatpush1.msra.mxu0 %v1807
      %2195 = vmatprep.subr.mxu0 0.0
      %2196 = vmatpush1.msra.mxu0 %v1808
      %2197 = vmatprep.subr.mxu0 0.0
      %2198 = vmatpush1.msra.mxu0 %v1809
      %2199 = vmatprep.subr.mxu0 0.0
      %2200 = vmatpush1.msra.mxu0 %v1810
      %2201 = vmatprep.subr.mxu0 0.0
      %2202 = vmatpush1.msra.mxu0 %v1811
      %2203 = vmatprep.subr.mxu0 0.0
      %2204 = vmatpush1.msra.mxu0 %v1812
      %2205 = vmatprep.subr.mxu0 0.0
      %2206 = vmatpush1.msra.mxu0 %v1813
      %2207 = vmatprep.mubr.f32.mxu0 %v1593
      %2208 = vmatmul.mubr.f32.gmra.mrb[0].mxu0 %v1592
      %v2209 = vpop.f32.mrb[0].mxu0
      %v2210 = vadd.f32 %v1985, %v2209
      %v2211 = vpop.f32.mrb[0].mxu0
      %2212 = vmatprep.mubr.f32.mxu0 %v1598
      %2213 = vmatmul.mubr.f32.gmra.mrb[0].mxu0 %v1597
      %v2214 = vpop.f32.mrb[0].mxu0
      %v2215 = vadd.f32 %v1990, %v2214
      %v2216 = vpop.f32.mrb[0].mxu0
      %2217 = vmatprep.mubr.f32.mxu0 %v1603
      %2218 = vmatmul.mubr.f32.gmra.mrb[0].mxu0 %v1602
      %v2219 = vpop.f32.mrb[0].mxu0
      %v2220 = vadd.f32 %v1995, %v2219
      %v2221 = vpop.f32.mrb[0].mxu0
      %2222 = vmatprep.mubr.f32.mxu0 %v1608
      %2223 = vmatmul.mubr.f32.gmra.mrb[0].mxu0 %v1607
      %v2224 = vpop.f32.mrb[0].mxu0
      %v2225 = vadd.f32 %v2000, %v2224
      %v2226 = vpop.f32.mrb[0].mxu0
      %2227 = vmatprep.mubr.f32.mxu0 %v1613
      %2228 = vmatmul.mubr.f32.gmra.mrb[0].mxu0 %v1612
      %v2229 = vpop.f32.mrb[0].mxu0
      %v2230 = vadd.f32 %v2005, %v2229
      %v2231 = vpop.f32.mrb[0].mxu0
      %2232 = vmatprep.mubr.f32.mxu0 %v1618
      %2233 = vmatmul.mubr.f32.gmra.mrb[0].mxu0 %v1617
      %v2234 = vpop.f32.mrb[0].mxu0
      %v2235 = vadd.f32 %v2010, %v2234
      %v2236 = vpop.f32.mrb[0].mxu0
      %2237 = vmatprep.mubr.f32.mxu0 %v1623
      %2238 = vmatmul.mubr.f32.gmra.mrb[0].mxu0 %v1622
      %v2239 = vpop.f32.mrb[0].mxu0
      %v2240 = vadd.f32 %v2015, %v2239
      %v2241 = vpop.f32.mrb[0].mxu0
      %2242 = vmatprep.mubr.f32.mxu0 %v1628
      %2243 = vmatmul.mubr.f32.gmra.mrb[0].mxu0 %v1627
      %v2244 = vpop.f32.mrb[0].mxu0
      %v2245 = vadd.f32 %v2020, %v2244
      %v2246 = vpop.f32.mrb[0].mxu0
      %2247 = vmatprep.mubr.f32.mxu0 %v1633
      %2248 = vmatmul.mubr.f32.gmra.mrb[0].mxu0 %v1632
      %v2249 = vpop.f32.mrb[0].mxu0
      %v2250 = vadd.f32 %v2025, %v2249
      %v2251 = vpop.f32.mrb[0].mxu0
      %2252 = vmatprep.mubr.f32.mxu0 %v1638
      %2253 = vmatmul.mubr.f32.gmra.mrb[0].mxu0 %v1637
      %v2254 = vpop.f32.mrb[0].mxu0
      %v2255 = vadd.f32 %v2030, %v2254
      %v2256 = vpop.f32.mrb[0].mxu0
      %2257 = vmatprep.mubr.f32.mxu0 %v1643
      %2258 = vmatmul.mubr.f32.gmra.mrb[0].mxu0 %v1642
      %v2259 = vpop.f32.mrb[0].mxu0
      %v2260 = vadd.f32 %v2035, %v2259
      %v2261 = vpop.f32.mrb[0].mxu0
      %2262 = vmatprep.mubr.f32.mxu0 %v1648
      %2263 = vmatmul.mubr.f32.gmra.mrb[0].mxu0 %v1647
      %v2264 = vpop.f32.mrb[0].mxu0
      %v2265 = vadd.f32 %v2040, %v2264
      %v2266 = vpop.f32.mrb[0].mxu0
      %2267 = vmatprep.mubr.f32.mxu0 %v1653
      %2268 = vmatmul.mubr.f32.gmra.mrb[0].mxu0 %v1652
      %v2269 = vpop.f32.mrb[0].mxu0
      %v2270 = vadd.f32 %v2045, %v2269
      %v2271 = vpop.f32.mrb[0].mxu0
      %2272 = vmatprep.mubr.f32.mxu0 %v1658
      %2273 = vmatmul.mubr.f32.gmra.mrb[0].mxu0 %v1657
      %v2274 = vpop.f32.mrb[0].mxu0
      %v2275 = vadd.f32 %v2050, %v2274
      %v2276 = vpop.f32.mrb[0].mxu0
      %2277 = vmatprep.mubr.f32.mxu0 %v1663
      %2278 = vmatmul.mubr.f32.gmra.mrb[0].mxu0 %v1662
      %v2279 = vpop.f32.mrb[0].mxu0
      %v2280 = vadd.f32 %v2055, %v2279
      %v2281 = vpop.f32.mrb[0].mxu0
      %2282 = vmatprep.mubr.f32.mxu0 %v1668
      %2283 = vmatmul.mubr.f32.gmra.mrb[0].mxu0 %v1667
      %v2284 = vpop.f32.mrb[0].mxu0
      %v2285 = vadd.f32 %v2060, %v2284
      %v2286 = vpop.f32.mrb[0].mxu0
      %2287 = vmatprep.mubr.f32.mxu0 %v1673
      %2288 = vmatmul.mubr.f32.gmra.mrb[0].mxu0 %v1672
      %v2289 = vpop.f32.mrb[0].mxu0
      %v2290 = vadd.f32 %v2065, %v2289
      %v2291 = vpop.f32.mrb[0].mxu0
      %2292 = vmatprep.mubr.f32.mxu0 %v1678
      %2293 = vmatmul.mubr.f32.gmra.mrb[0].mxu0 %v1677
      %v2294 = vpop.f32.mrb[0].mxu0
      %v2295 = vadd.f32 %v2070, %v2294
      %v2296 = vpop.f32.mrb[0].mxu0
      %2297 = vmatprep.mubr.f32.mxu0 %v1683
      %2298 = vmatmul.mubr.f32.gmra.mrb[0].mxu0 %v1682
      %v2299 = vpop.f32.mrb[0].mxu0
      %v2300 = vadd.f32 %v2075, %v2299
      %v2301 = vpop.f32.mrb[0].mxu0
      %2302 = vmatprep.mubr.f32.mxu0 %v1688
      %2303 = vmatmul.mubr.f32.gmra.mrb[0].mxu0 %v1687
      %v2304 = vpop.f32.mrb[0].mxu0
      %v2305 = vadd.f32 %v2080, %v2304
      %v2306 = vpop.f32.mrb[0].mxu0
      %2307 = vmatprep.mubr.f32.mxu0 %v1693
      %2308 = vmatmul.mubr.f32.gmra.mrb[0].mxu0 %v1692
      %v2309 = vpop.f32.mrb[0].mxu0
      %v2310 = vadd.f32 %v2085, %v2309
      %v2311 = vpop.f32.mrb[0].mxu0
      %2312 = vmatprep.mubr.f32.mxu0 %v1698
      %2313 = vmatmul.mubr.f32.gmra.mrb[0].mxu0 %v1697
      %v2314 = vpop.f32.mrb[0].mxu0
      %v2315 = vadd.f32 %v2090, %v2314
      %v2316 = vpop.f32.mrb[0].mxu0
      %2317 = vmatprep.mubr.f32.mxu0 %v1703
      %2318 = vmatmul.mubr.f32.gmra.mrb[0].mxu0 %v1702
      %v2319 = vpop.f32.mrb[0].mxu0
      %v2320 = vadd.f32 %v2095, %v2319
      %v2321 = vpop.f32.mrb[0].mxu0
      %2322 = vmatprep.mubr.f32.mxu0 %v1708
      %2323 = vmatmul.mubr.f32.gmra.mrb[0].mxu0 %v1707
      %v2324 = vpop.f32.mrb[0].mxu0
      %v2325 = vadd.f32 %v2100, %v2324
      %v2326 = vpop.f32.mrb[0].mxu0
      %2327 = vmatprep.mubr.f32.mxu0 %v1713
      %2328 = vmatmul.mubr.f32.gmra.mrb[0].mxu0 %v1712
      %v2329 = vpop.f32.mrb[0].mxu0
      %v2330 = vadd.f32 %v2105, %v2329
      %v2331 = vpop.f32.mrb[0].mxu0
      %2332 = vmatprep.mubr.f32.mxu0 %v1718
      %2333 = vmatmul.mubr.f32.gmra.mrb[0].mxu0 %v1717
      %v2334 = vpop.f32.mrb[0].mxu0
      %v2335 = vadd.f32 %v2110, %v2334
      %v2336 = vpop.f32.mrb[0].mxu0
      %2337 = vmatprep.mubr.f32.mxu0 %v1723
      %2338 = vmatmul.mubr.f32.gmra.mrb[0].mxu0 %v1722
      %v2339 = vpop.f32.mrb[0].mxu0
      %v2340 = vadd.f32 %v2115, %v2339
      %v2341 = vpop.f32.mrb[0].mxu0
      %2342 = vmatprep.mubr.f32.mxu0 %v1728
      %2343 = vmatmul.mubr.f32.gmra.mrb[0].mxu0 %v1727
      %v2344 = vpop.f32.mrb[0].mxu0
      %v2345 = vadd.f32 %v2120, %v2344
      %v2346 = vpop.f32.mrb[0].mxu0
      %2347 = vmatprep.mubr.f32.mxu0 %v1733
      %2348 = vmatmul.mubr.f32.gmra.mrb[0].mxu0 %v1732
      %v2349 = vpop.f32.mrb[0].mxu0
      %v2350 = vadd.f32 %v2125, %v2349
      %v2351 = vpop.f32.mrb[0].mxu0
      %2352 = vmatprep.mubr.f32.mxu0 %v1738
      %2353 = vmatmul.mubr.f32.gmra.mrb[0].mxu0 %v1737
      %v2354 = vpop.f32.mrb[0].mxu0
      %v2355 = vadd.f32 %v2130, %v2354
      %v2356 = vpop.f32.mrb[0].mxu0
      %2357 = vmatprep.mubr.f32.mxu0 %v1743
      %2358 = vmatmul.mubr.f32.gmra.mrb[0].mxu0 %v1742
      %v2359 = vpop.f32.mrb[0].mxu0
      %v2360 = vadd.f32 %v2135, %v2359
      %v2361 = vpop.f32.mrb[0].mxu0
      %2362 = vmatprep.mubr.f32.mxu0 %v1748
      %2363 = vmatmul.mubr.f32.gmra.mrb[0].mxu0 %v1747
      %v2364 = vpop.f32.mrb[0].mxu0
      %v2365 = vadd.f32 %v2140, %v2364
      %v2366 = vpop.f32.mrb[0].mxu0
      %2367 = vdwg.mxu0
      %2368 = vmatprep.subr.mxu0 0.0
      %2369 = vmatpush1.msra.mxu0 %v1814
      %2370 = vmatprep.subr.mxu0 0.0
      %2371 = vmatpush1.msra.mxu0 %v1815
      %2372 = vmatprep.subr.mxu0 0.0
      %2373 = vmatpush1.msra.mxu0 %v1816
      %2374 = vmatprep.subr.mxu0 0.0
      %2375 = vmatpush1.msra.mxu0 %v1817
      %2376 = vmatprep.subr.mxu0 0.0
      %2377 = vmatpush1.msra.mxu0 %v1818
      %2378 = vmatprep.subr.mxu0 0.0
      %2379 = vmatpush1.msra.mxu0 %v1819
      %2380 = vmatprep.subr.mxu0 0.0
      %2381 = vmatpush1.msra.mxu0 %v1820
      %2382 = vmatprep.subr.mxu0 0.0
      %2383 = vmatpush1.msra.mxu0 %v1821
      %2384 = vmatprep.subr.mxu0 0.0
      %2385 = vmatpush1.msra.mxu0 0.0
      %2386 = vmatprep.subr.mxu0 0.0
      %2387 = vmatpush1.msra.mxu0 0.0
      %2388 = vmatprep.subr.mxu0 0.0
      %2389 = vmatpush1.msra.mxu0 0.0
      %2390 = vmatprep.subr.mxu0 0.0
      %2391 = vmatpush1.msra.mxu0 0.0
      %2392 = vmatprep.subr.mxu0 0.0
      %2393 = vmatpush1.msra.mxu0 0.0
      %2394 = vmatprep.subr.mxu0 0.0
      %2395 = vmatpush1.msra.mxu0 0.0
      %2396 = vmatprep.subr.mxu0 0.0
      %2397 = vmatpush1.msra.mxu0 0.0
      %2398 = vmatprep.subr.mxu0 0.0
      %2399 = vmatpush1.msra.mxu0 0.0
      %2400 = vmatprep.subr.mxu0 0.0
      %2401 = vmatpush1.msra.mxu0 0.0
      %2402 = vmatprep.subr.mxu0 0.0
      %2403 = vmatpush1.msra.mxu0 0.0
      %2404 = vmatprep.subr.mxu0 0.0
      %2405 = vmatpush1.msra.mxu0 0.0
      %2406 = vmatprep.subr.mxu0 0.0
      %2407 = vmatpush1.msra.mxu0 0.0
      %2408 = vmatprep.subr.mxu0 0.0
      %2409 = vmatpush1.msra.mxu0 0.0
      %2410 = vmatprep.subr.mxu0 0.0
      %2411 = vmatpush1.msra.mxu0 0.0
      %2412 = vmatprep.subr.mxu0 0.0
      %2413 = vmatpush1.msra.mxu0 0.0
      %2414 = vmatprep.subr.mxu0 0.0
      %2415 = vmatpush1.msra.mxu0 0.0
      %2416 = vmatprep.subr.mxu0 0.0
      %2417 = vmatpush1.msra.mxu0 0.0
      %2418 = vmatprep.subr.mxu0 0.0
      %2419 = vmatpush1.msra.mxu0 0.0
      %2420 = vmatprep.subr.mxu0 0.0
      %2421 = vmatpush1.msra.mxu0 0.0
      %2422 = vmatprep.subr.mxu0 0.0
      %2423 = vmatpush1.msra.mxu0 0.0
      %2424 = vmatprep.subr.mxu0 0.0
      %2425 = vmatpush1.msra.mxu0 0.0
      %2426 = vmatprep.subr.mxu0 0.0
      %2427 = vmatpush1.msra.mxu0 0.0
      %2428 = vmatprep.subr.mxu0 0.0
      %2429 = vmatpush1.msra.mxu0 0.0
      %2430 = vmatprep.subr.mxu0 0.0
      %2431 = vmatpush1.msra.mxu0 0.0
      %2432 = vmatprep.mubr.f32.mxu0 0.0
      %2433 = vmatmul.mubr.f32.gmra.mrb[0].mxu0 %v1823
      %v2434 = vpop.f32.mrb[0].mxu0
      %v2435 = vadd.f32 %v2210, %v2434
      %v2436 = vpop.f32.mrb[0].mxu0
      %2437 = vmatprep.mubr.f32.mxu0 0.0
      %2438 = vmatmul.mubr.f32.gmra.mrb[0].mxu0 %v1826
      %v2439 = vpop.f32.mrb[0].mxu0
      %v2440 = vadd.f32 %v2215, %v2439
      %v2441 = vpop.f32.mrb[0].mxu0
      %2442 = vmatprep.mubr.f32.mxu0 0.0
      %2443 = vmatmul.mubr.f32.gmra.mrb[0].mxu0 %v1829
      %v2444 = vpop.f32.mrb[0].mxu0
      %v2445 = vadd.f32 %v2220, %v2444
      %v2446 = vpop.f32.mrb[0].mxu0
      %2447 = vmatprep.mubr.f32.mxu0 0.0
      %2448 = vmatmul.mubr.f32.gmra.mrb[0].mxu0 %v1832
      %v2449 = vpop.f32.mrb[0].mxu0
      %v2450 = vadd.f32 %v2225, %v2449
      %v2451 = vpop.f32.mrb[0].mxu0
      %2452 = vmatprep.mubr.f32.mxu0 0.0
      %2453 = vmatmul.mubr.f32.gmra.mrb[0].mxu0 %v1835
      %v2454 = vpop.f32.mrb[0].mxu0
      %v2455 = vadd.f32 %v2230, %v2454
      %v2456 = vpop.f32.mrb[0].mxu0
      %2457 = vmatprep.mubr.f32.mxu0 0.0
      %2458 = vmatmul.mubr.f32.gmra.mrb[0].mxu0 %v1838
      %v2459 = vpop.f32.mrb[0].mxu0
      %v2460 = vadd.f32 %v2235, %v2459
      %v2461 = vpop.f32.mrb[0].mxu0
      %2462 = vmatprep.mubr.f32.mxu0 0.0
      %2463 = vmatmul.mubr.f32.gmra.mrb[0].mxu0 %v1841
      %v2464 = vpop.f32.mrb[0].mxu0
      %v2465 = vadd.f32 %v2240, %v2464
      %v2466 = vpop.f32.mrb[0].mxu0
      %2467 = vmatprep.mubr.f32.mxu0 0.0
      %2468 = vmatmul.mubr.f32.gmra.mrb[0].mxu0 %v1844
      %v2469 = vpop.f32.mrb[0].mxu0
      %v2470 = vadd.f32 %v2245, %v2469
      %v2471 = vpop.f32.mrb[0].mxu0
      %2472 = vmatprep.mubr.f32.mxu0 0.0
      %2473 = vmatmul.mubr.f32.gmra.mrb[0].mxu0 %v1847
      %v2474 = vpop.f32.mrb[0].mxu0
      %v2475 = vadd.f32 %v2250, %v2474
      %v2476 = vpop.f32.mrb[0].mxu0
      %2477 = vmatprep.mubr.f32.mxu0 0.0
      %2478 = vmatmul.mubr.f32.gmra.mrb[0].mxu0 %v1850
      %v2479 = vpop.f32.mrb[0].mxu0
      %v2480 = vadd.f32 %v2255, %v2479
      %v2481 = vpop.f32.mrb[0].mxu0
      %2482 = vmatprep.mubr.f32.mxu0 0.0
      %2483 = vmatmul.mubr.f32.gmra.mrb[0].mxu0 %v1853
      %v2484 = vpop.f32.mrb[0].mxu0
      %v2485 = vadd.f32 %v2260, %v2484
      %v2486 = vpop.f32.mrb[0].mxu0
      %2487 = vmatprep.mubr.f32.mxu0 0.0
      %2488 = vmatmul.mubr.f32.gmra.mrb[0].mxu0 %v1856
      %v2489 = vpop.f32.mrb[0].mxu0
      %v2490 = vadd.f32 %v2265, %v2489
      %v2491 = vpop.f32.mrb[0].mxu0
      %2492 = vmatprep.mubr.f32.mxu0 0.0
      %2493 = vmatmul.mubr.f32.gmra.mrb[0].mxu0 %v1859
      %v2494 = vpop.f32.mrb[0].mxu0
      %v2495 = vadd.f32 %v2270, %v2494
      %v2496 = vpop.f32.mrb[0].mxu0
      %2497 = vmatprep.mubr.f32.mxu0 0.0
      %2498 = vmatmul.mubr.f32.gmra.mrb[0].mxu0 %v1862
      %v2499 = vpop.f32.mrb[0].mxu0
      %v2500 = vadd.f32 %v2275, %v2499
      %v2501 = vpop.f32.mrb[0].mxu0
      %2502 = vmatprep.mubr.f32.mxu0 0.0
      %2503 = vmatmul.mubr.f32.gmra.mrb[0].mxu0 %v1865
      %v2504 = vpop.f32.mrb[0].mxu0
      %v2505 = vadd.f32 %v2280, %v2504
      %v2506 = vpop.f32.mrb[0].mxu0
      %2507 = vmatprep.mubr.f32.mxu0 0.0
      %2508 = vmatmul.mubr.f32.gmra.mrb[0].mxu0 %v1868
      %v2509 = vpop.f32.mrb[0].mxu0
      %v2510 = vadd.f32 %v2285, %v2509
      %v2511 = vpop.f32.mrb[0].mxu0
      %2512 = vmatprep.mubr.f32.mxu0 0.0
      %2513 = vmatmul.mubr.f32.gmra.mrb[0].mxu0 %v1871
      %v2514 = vpop.f32.mrb[0].mxu0
      %v2515 = vadd.f32 %v2290, %v2514
      %v2516 = vpop.f32.mrb[0].mxu0
      %2517 = vmatprep.mubr.f32.mxu0 0.0
      %2518 = vmatmul.mubr.f32.gmra.mrb[0].mxu0 %v1874
      %v2519 = vpop.f32.mrb[0].mxu0
      %v2520 = vadd.f32 %v2295, %v2519
      %v2521 = vpop.f32.mrb[0].mxu0
      %2522 = vmatprep.mubr.f32.mxu0 0.0
      %2523 = vmatmul.mubr.f32.gmra.mrb[0].mxu0 %v1877
      %v2524 = vpop.f32.mrb[0].mxu0
      %v2525 = vadd.f32 %v2300, %v2524
      %v2526 = vpop.f32.mrb[0].mxu0
      %2527 = vmatprep.mubr.f32.mxu0 0.0
      %2528 = vmatmul.mubr.f32.gmra.mrb[0].mxu0 %v1880
      %v2529 = vpop.f32.mrb[0].mxu0
      %v2530 = vadd.f32 %v2305, %v2529
      %v2531 = vpop.f32.mrb[0].mxu0
      %2532 = vmatprep.mubr.f32.mxu0 0.0
      %2533 = vmatmul.mubr.f32.gmra.mrb[0].mxu0 %v1883
      %v2534 = vpop.f32.mrb[0].mxu0
      %v2535 = vadd.f32 %v2310, %v2534
      %v2536 = vpop.f32.mrb[0].mxu0
      %2537 = vmatprep.mubr.f32.mxu0 0.0
      %2538 = vmatmul.mubr.f32.gmra.mrb[0].mxu0 %v1886
      %v2539 = vpop.f32.mrb[0].mxu0
      %v2540 = vadd.f32 %v2315, %v2539
      %v2541 = vpop.f32.mrb[0].mxu0
      %2542 = vmatprep.mubr.f32.mxu0 0.0
      %2543 = vmatmul.mubr.f32.gmra.mrb[0].mxu0 %v1889
      %v2544 = vpop.f32.mrb[0].mxu0
      %v2545 = vadd.f32 %v2320, %v2544
      %v2546 = vpop.f32.mrb[0].mxu0
      %2547 = vmatprep.mubr.f32.mxu0 0.0
      %2548 = vmatmul.mubr.f32.gmra.mrb[0].mxu0 %v1892
      %v2549 = vpop.f32.mrb[0].mxu0
      %v2550 = vadd.f32 %v2325, %v2549
      %v2551 = vpop.f32.mrb[0].mxu0
      %2552 = vmatprep.mubr.f32.mxu0 0.0
      %2553 = vmatmul.mubr.f32.gmra.mrb[0].mxu0 %v1895
      %v2554 = vpop.f32.mrb[0].mxu0
      %v2555 = vadd.f32 %v2330, %v2554
      %v2556 = vpop.f32.mrb[0].mxu0
      %2557 = vmatprep.mubr.f32.mxu0 0.0
      %2558 = vmatmul.mubr.f32.gmra.mrb[0].mxu0 %v1898
      %v2559 = vpop.f32.mrb[0].mxu0
      %v2560 = vadd.f32 %v2335, %v2559
      %v2561 = vpop.f32.mrb[0].mxu0
      %2562 = vmatprep.mubr.f32.mxu0 0.0
      %2563 = vmatmul.mubr.f32.gmra.mrb[0].mxu0 %v1901
      %v2564 = vpop.f32.mrb[0].mxu0
      %v2565 = vadd.f32 %v2340, %v2564
      %v2566 = vpop.f32.mrb[0].mxu0
      %2567 = vmatprep.mubr.f32.mxu0 0.0
      %2568 = vmatmul.mubr.f32.gmra.mrb[0].mxu0 %v1904
      %v2569 = vpop.f32.mrb[0].mxu0
      %v2570 = vadd.f32 %v2345, %v2569
      %v2571 = vpop.f32.mrb[0].mxu0
      %2572 = vmatprep.mubr.f32.mxu0 0.0
      %2573 = vmatmul.mubr.f32.gmra.mrb[0].mxu0 %v1907
      %v2574 = vpop.f32.mrb[0].mxu0
      %v2575 = vadd.f32 %v2350, %v2574
      %v2576 = vpop.f32.mrb[0].mxu0
      %2577 = vmatprep.mubr.f32.mxu0 0.0
      %2578 = vmatmul.mubr.f32.gmra.mrb[0].mxu0 %v1910
      %v2579 = vpop.f32.mrb[0].mxu0
      %v2580 = vadd.f32 %v2355, %v2579
      %v2581 = vpop.f32.mrb[0].mxu0
      %2582 = vmatprep.mubr.f32.mxu0 0.0
      %2583 = vmatmul.mubr.f32.gmra.mrb[0].mxu0 %v1913
      %v2584 = vpop.f32.mrb[0].mxu0
      %v2585 = vadd.f32 %v2360, %v2584
      %v2586 = vpop.f32.mrb[0].mxu0
      %2587 = vmatprep.mubr.f32.mxu0 0.0
      %2588 = vmatmul.mubr.f32.gmra.mrb[0].mxu0 %v1916
      %v2589 = vpop.f32.mrb[0].mxu0
      %v2590 = vadd.f32 %v2365, %v2589
      %v2591 = vpop.f32.mrb[0].mxu0
      %2592 = vdwg.mxu0
      %vm2593 = vcmask 261120
      %2594 = vst.msk [vmem:[%s262] sm:$0xff] %vm2593, %v2435
      %2595 = vst.msk [vmem:[%s262 + $0x8] sm:$0xff] %vm2593, %v2440
      %2596 = vst.msk [vmem:[%s262 + $0x10] sm:$0xff] %vm2593, %v2445
      %2597 = vst.msk [vmem:[%s262 + $0x18] sm:$0xff] %vm2593, %v2450
      %2598 = vst.msk [vmem:[%s262 + $0x20] sm:$0xff] %vm2593, %v2455
      %2599 = vst.msk [vmem:[%s262 + $0x28] sm:$0xff] %vm2593, %v2460
      %2600 = vst.msk [vmem:[%s262 + $0x30] sm:$0xff] %vm2593, %v2465
      %2601 = vst.msk [vmem:[%s262 + $0x38] sm:$0xff] %vm2593, %v2470
      %2602 = vst.msk [vmem:[%s262 + $0x40] sm:$0xff] %vm2593, %v2475
      %2603 = vst.msk [vmem:[%s262 + $0x48] sm:$0xff] %vm2593, %v2480
      %2604 = vst.msk [vmem:[%s262 + $0x50] sm:$0xff] %vm2593, %v2485
      %2605 = vst.msk [vmem:[%s262 + $0x58] sm:$0xff] %vm2593, %v2490
      %2606 = vst.msk [vmem:[%s262 + $0x60] sm:$0xff] %vm2593, %v2495
      %2607 = vst.msk [vmem:[%s262 + $0x68] sm:$0xff] %vm2593, %v2500
      %2608 = vst.msk [vmem:[%s262 + $0x70] sm:$0xff] %vm2593, %v2505
      %2609 = vst.msk [vmem:[%s262 + $0x78] sm:$0xff] %vm2593, %v2510
      %2610 = vst.msk [vmem:[%s262 + $0x80] sm:$0xff] %vm2593, %v2515
      %2611 = vst.msk [vmem:[%s262 + $0x88] sm:$0xff] %vm2593, %v2520
      %2612 = vst.msk [vmem:[%s262 + $0x90] sm:$0xff] %vm2593, %v2525
      %2613 = vst.msk [vmem:[%s262 + $0x98] sm:$0xff] %vm2593, %v2530
      %2614 = vst.msk [vmem:[%s262 + $0xa0] sm:$0xff] %vm2593, %v2535
      %2615 = vst.msk [vmem:[%s262 + $0xa8] sm:$0xff] %vm2593, %v2540
      %2616 = vst.msk [vmem:[%s262 + $0xb0] sm:$0xff] %vm2593, %v2545
      %2617 = vst.msk [vmem:[%s262 + $0xb8] sm:$0xff] %vm2593, %v2550
      %2618 = vst.msk [vmem:[%s262 + $0xc0] sm:$0xff] %vm2593, %v2555
      %2619 = vst.msk [vmem:[%s262 + $0xc8] sm:$0xff] %vm2593, %v2560
      %2620 = vst.msk [vmem:[%s262 + $0xd0] sm:$0xff] %vm2593, %v2565
      %2621 = vst.msk [vmem:[%s262 + $0xd8] sm:$0xff] %vm2593, %v2570
      %2622 = vst.msk [vmem:[%s262 + $0xe0] sm:$0xff] %vm2593, %v2575
      %2623 = vst.msk [vmem:[%s262 + $0xe8] sm:$0xff] %vm2593, %v2580
      %2624 = vst.msk [vmem:[%s262 + $0xf0] sm:$0xff] %vm2593, %v2585
      %2625 = vst.msk [vmem:[%s262 + $0xf8] sm:$0xff] %vm2593, %v2590
      %v2626 = vsel %vm2593, %v2435, 0.0
      %v2627 = vsel %vm2593, %v2440, 0.0
      %v2628 = vadd.f32 %v2626, %v2627
      %v2629 = vsel %vm2593, %v2445, 0.0
      %v2630 = vadd.f32 %v2628, %v2629
      %v2631 = vsel %vm2593, %v2450, 0.0
      %v2632 = vadd.f32 %v2630, %v2631
      %v2633 = vsel %vm2593, %v2455, 0.0
      %v2634 = vadd.f32 %v2632, %v2633
      %v2635 = vsel %vm2593, %v2460, 0.0
      %v2636 = vadd.f32 %v2634, %v2635
      %v2637 = vsel %vm2593, %v2465, 0.0
      %v2638 = vadd.f32 %v2636, %v2637
      %v2639 = vsel %vm2593, %v2470, 0.0
      %v2640 = vadd.f32 %v2638, %v2639
      %v2641 = vsel %vm2593, %v2475, 0.0
      %v2642 = vadd.f32 %v2640, %v2641
      %v2643 = vsel %vm2593, %v2480, 0.0
      %v2644 = vadd.f32 %v2642, %v2643
      %v2645 = vsel %vm2593, %v2485, 0.0
      %v2646 = vadd.f32 %v2644, %v2645
      %v2647 = vsel %vm2593, %v2490, 0.0
      %v2648 = vadd.f32 %v2646, %v2647
      %v2649 = vsel %vm2593, %v2495, 0.0
      %v2650 = vadd.f32 %v2648, %v2649
      %v2651 = vsel %vm2593, %v2500, 0.0
      %v2652 = vadd.f32 %v2650, %v2651
      %v2653 = vsel %vm2593, %v2505, 0.0
      %v2654 = vadd.f32 %v2652, %v2653
      %v2655 = vsel %vm2593, %v2510, 0.0
      %v2656 = vadd.f32 %v2654, %v2655
      %v2657 = vsel %vm2593, %v2515, 0.0
      %v2658 = vadd.f32 %v2656, %v2657
      %v2659 = vsel %vm2593, %v2520, 0.0
      %v2660 = vadd.f32 %v2658, %v2659
      %v2661 = vsel %vm2593, %v2525, 0.0
      %v2662 = vadd.f32 %v2660, %v2661
      %v2663 = vsel %vm2593, %v2530, 0.0
      %v2664 = vadd.f32 %v2662, %v2663
      %v2665 = vsel %vm2593, %v2535, 0.0
      %v2666 = vadd.f32 %v2664, %v2665
      %v2667 = vsel %vm2593, %v2540, 0.0
      %v2668 = vadd.f32 %v2666, %v2667
      %v2669 = vsel %vm2593, %v2545, 0.0
      %v2670 = vadd.f32 %v2668, %v2669
      %v2671 = vsel %vm2593, %v2550, 0.0
      %v2672 = vadd.f32 %v2670, %v2671
      %v2673 = vsel %vm2593, %v2555, 0.0
      %v2674 = vadd.f32 %v2672, %v2673
      %v2675 = vsel %vm2593, %v2560, 0.0
      %v2676 = vadd.f32 %v2674, %v2675
      %v2677 = vsel %vm2593, %v2565, 0.0
      %v2678 = vadd.f32 %v2676, %v2677
      %v2679 = vsel %vm2593, %v2570, 0.0
      %v2680 = vadd.f32 %v2678, %v2679
      %v2681 = vsel %vm2593, %v2575, 0.0
      %v2682 = vadd.f32 %v2680, %v2681
      %v2683 = vsel %vm2593, %v2580, 0.0
      %v2684 = vadd.f32 %v2682, %v2683
      %v2685 = vsel %vm2593, %v2585, 0.0
      %v2686 = vadd.f32 %v2684, %v2685
      %v2687 = vsel %vm2593, %v2590, 0.0
      %v2688 = vadd.f32 %v2686, %v2687
      %v2689 = vrot.slane %v2688, 4
      %v2690 = vadd.f32 %v2688, %v2689
      %v2691 = vrot.slane %v2690, 2
      %v2692 = vadd.f32 %v2690, %v2691
      %v2693 = vrot.slane %v2692, 1
      %v2694 = vadd.f32 %v2692, %v2693
      %vm2695 = vcmask 253952
      %2696 = vst.msk [vmem:[%s265] sm:$0x1] %vm2695, %v2694
      %v2697 = vmul.f32 %v2435, %v2435
      %v2698 = vmul.f32 %v2440, %v2440
      %v2699 = vmul.f32 %v2445, %v2445
      %v2700 = vmul.f32 %v2450, %v2450
      %v2701 = vmul.f32 %v2455, %v2455
      %v2702 = vmul.f32 %v2460, %v2460
      %v2703 = vmul.f32 %v2465, %v2465
      %v2704 = vmul.f32 %v2470, %v2470
      %v2705 = vmul.f32 %v2475, %v2475
      %v2706 = vmul.f32 %v2480, %v2480
      %v2707 = vmul.f32 %v2485, %v2485
      %v2708 = vmul.f32 %v2490, %v2490
      %v2709 = vmul.f32 %v2495, %v2495
      %v2710 = vmul.f32 %v2500, %v2500
      %v2711 = vmul.f32 %v2505, %v2505
      %v2712 = vmul.f32 %v2510, %v2510
      %v2713 = vmul.f32 %v2515, %v2515
      %v2714 = vmul.f32 %v2520, %v2520
      %v2715 = vmul.f32 %v2525, %v2525
      %v2716 = vmul.f32 %v2530, %v2530
      %v2717 = vmul.f32 %v2535, %v2535
      %v2718 = vmul.f32 %v2540, %v2540
      %v2719 = vmul.f32 %v2545, %v2545
      %v2720 = vmul.f32 %v2550, %v2550
      %v2721 = vmul.f32 %v2555, %v2555
      %v2722 = vmul.f32 %v2560, %v2560
      %v2723 = vmul.f32 %v2565, %v2565
      %v2724 = vmul.f32 %v2570, %v2570
      %v2725 = vmul.f32 %v2575, %v2575
      %v2726 = vmul.f32 %v2580, %v2580
      %v2727 = vmul.f32 %v2585, %v2585
      %v2728 = vmul.f32 %v2590, %v2590
      %v2729 = vsel %vm2593, %v2697, 0.0
      %v2730 = vsel %vm2593, %v2698, 0.0
      %v2731 = vadd.f32 %v2729, %v2730
      %v2732 = vsel %vm2593, %v2699, 0.0
      %v2733 = vadd.f32 %v2731, %v2732
      %v2734 = vsel %vm2593, %v2700, 0.0
      %v2735 = vadd.f32 %v2733, %v2734
      %v2736 = vsel %vm2593, %v2701, 0.0
      %v2737 = vadd.f32 %v2735, %v2736
      %v2738 = vsel %vm2593, %v2702, 0.0
      %v2739 = vadd.f32 %v2737, %v2738
      %v2740 = vsel %vm2593, %v2703, 0.0
      %v2741 = vadd.f32 %v2739, %v2740
      %v2742 = vsel %vm2593, %v2704, 0.0
      %v2743 = vadd.f32 %v2741, %v2742
      %v2744 = vsel %vm2593, %v2705, 0.0
      %v2745 = vadd.f32 %v2743, %v2744
      %v2746 = vsel %vm2593, %v2706, 0.0
      %v2747 = vadd.f32 %v2745, %v2746
      %v2748 = vsel %vm2593, %v2707, 0.0
      %v2749 = vadd.f32 %v2747, %v2748
      %v2750 = vsel %vm2593, %v2708, 0.0
      %v2751 = vadd.f32 %v2749, %v2750
      %v2752 = vsel %vm2593, %v2709, 0.0
      %v2753 = vadd.f32 %v2751, %v2752
      %v2754 = vsel %vm2593, %v2710, 0.0
      %v2755 = vadd.f32 %v2753, %v2754
      %v2756 = vsel %vm2593, %v2711, 0.0
      %v2757 = vadd.f32 %v2755, %v2756
      %v2758 = vsel %vm2593, %v2712, 0.0
      %v2759 = vadd.f32 %v2757, %v2758
      %v2760 = vsel %vm2593, %v2713, 0.0
      %v2761 = vadd.f32 %v2759, %v2760
      %v2762 = vsel %vm2593, %v2714, 0.0
      %v2763 = vadd.f32 %v2761, %v2762
      %v2764 = vsel %vm2593, %v2715, 0.0
      %v2765 = vadd.f32 %v2763, %v2764
      %v2766 = vsel %vm2593, %v2716, 0.0
      %v2767 = vadd.f32 %v2765, %v2766
      %v2768 = vsel %vm2593, %v2717, 0.0
      %v2769 = vadd.f32 %v2767, %v2768
      %v2770 = vsel %vm2593, %v2718, 0.0
      %v2771 = vadd.f32 %v2769, %v2770
      %v2772 = vsel %vm2593, %v2719, 0.0
      %v2773 = vadd.f32 %v2771, %v2772
      %v2774 = vsel %vm2593, %v2720, 0.0
      %v2775 = vadd.f32 %v2773, %v2774
      %v2776 = vsel %vm2593, %v2721, 0.0
      %v2777 = vadd.f32 %v2775, %v2776
      %v2778 = vsel %vm2593, %v2722, 0.0
      %v2779 = vadd.f32 %v2777, %v2778
      %v2780 = vsel %vm2593, %v2723, 0.0
      %v2781 = vadd.f32 %v2779, %v2780
      %v2782 = vsel %vm2593, %v2724, 0.0
      %v2783 = vadd.f32 %v2781, %v2782
      %v2784 = vsel %vm2593, %v2725, 0.0
      %v2785 = vadd.f32 %v2783, %v2784
      %v2786 = vsel %vm2593, %v2726, 0.0
      %v2787 = vadd.f32 %v2785, %v2786
      %v2788 = vsel %vm2593, %v2727, 0.0
      %v2789 = vadd.f32 %v2787, %v2788
      %v2790 = vsel %vm2593, %v2728, 0.0
      %v2791 = vadd.f32 %v2789, %v2790
      %v2792 = vrot.slane %v2791, 4
      %v2793 = vadd.f32 %v2791, %v2792
      %v2794 = vrot.slane %v2793, 2
      %v2795 = vadd.f32 %v2793, %v2794
      %v2796 = vrot.slane %v2795, 1
      %v2797 = vadd.f32 %v2795, %v2796
      %2798 = vst.msk [vmem:[%s268] sm:$0x1] %vm2695, %v2797
      %p2799 = scmp.lt.s32.totalorder %s18, 1
      %s2800 = scalar_select %p2799, %s18, 1
      %s2801 = smul.addr %s2800, 32
      %s2802 = smul.addr %s2801, 8
      %s2803 = scalar_lea.vmem %s4, %s2802
      %p2804 = scmp.lt.s32.totalorder %s18, 1
      %s2805 = scalar_select %p2804, %s18, 1
      %s2806 = scalar_lea.vmem %s5, %s2805
      %p2807 = scmp.lt.s32.totalorder %s18, 1
      %s2808 = scalar_select %p2807, %s18, 1
      %s2809 = scalar_lea.vmem %s6, %s2808
      // Predicated region
      $region37: #{adapter_forward.4} parent=35 // pred_check
        %p2810 = pneg %p125
      $region38: #{adapter_forward.4} parent=35 // pred_check_branch
        %2812 = sbr.rel (%p2810) target = $region40
      $region39: #{adapter_forward.4} parent=35 // pred_region
        _
      $region40: #{adapter_forward.4} parent=35 // pred_fallthru
        _
      // Predicated region
      $region41: #{adapter_forward.4} parent=35 // pred_check
        %p2813 = pneg %p151
      $region42: #{adapter_forward.4} parent=35 // pred_check_branch
        %2815 = sbr.rel (%p2813) target = $region44
      $region43: #{adapter_forward.4} parent=35 // pred_region
        _
      $region44: #{adapter_forward.4} parent=35 // pred_fallthru
        _
      // Predicated region
      $region45: #{adapter_forward.4} parent=35 // pred_check
        %p2816 = pneg %p177
      $region46: #{adapter_forward.4} parent=35 // pred_check_branch
        %2818 = sbr.rel (%p2816) target = $region48
      $region47: #{adapter_forward.4} parent=35 // pred_region
        _
      $region48: #{adapter_forward.4} parent=35 // pred_fallthru
        _
    $region36: #{adapter_forward.4} parent=5 // pred_fallthru
      _
    %p2819 = scmp.le.s32.totalorder 2, %s13
    // Predicated region
    $region49: #{adapter_forward.4} parent=5 // pred_check
      %p2820 = pneg %p2819
    $region50: #{adapter_forward.4} parent=5 // pred_check_branch
      %2822 = sbr.rel (%p2820) target = $region52
    $region51: #{adapter_forward.4} parent=5 // pred_region
      %s2823 = ssub.s32 %s13, 2
      // Predicated region
      $region53: #{adapter_forward.4} parent=51 // pred_check
        %p2824 = pneg %p131
      $region54: #{adapter_forward.4} parent=51 // pred_check_branch
        %2826 = sbr.rel (%p2824) target = $region56
      $region55: #{adapter_forward.4} parent=51 // pred_region
        %p2827 = scmp.lt.s32.totalorder %s19, 1
        %s2828 = scalar_select %p2827, %s19, 1
        %s2829 = smul.addr %s2828, 32
        %s2830 = smul.addr %s2829, 8
        %s2831 = scalar_lea.vmem %s4, %s2830
      $region56: #{adapter_forward.4} parent=51 // pred_fallthru
        _
      // Predicated region
      $region57: #{adapter_forward.4} parent=51 // pred_check
        %p2832 = pneg %p157
      $region58: #{adapter_forward.4} parent=51 // pred_check_branch
        %2834 = sbr.rel (%p2832) target = $region60
      $region59: #{adapter_forward.4} parent=51 // pred_region
        %p2835 = scmp.lt.s32.totalorder %s19, 1
        %s2836 = scalar_select %p2835, %s19, 1
        %s2837 = scalar_lea.vmem %s5, %s2836
      $region60: #{adapter_forward.4} parent=51 // pred_fallthru
        _
      // Predicated region
      $region61: #{adapter_forward.4} parent=51 // pred_check
        %p2838 = pneg %p183
      $region62: #{adapter_forward.4} parent=51 // pred_check_branch
        %2840 = sbr.rel (%p2838) target = $region64
      $region63: #{adapter_forward.4} parent=51 // pred_region
        %p2841 = scmp.lt.s32.totalorder %s19, 1
        %s2842 = scalar_select %p2841, %s19, 1
        %s2843 = scalar_lea.vmem %s6, %s2842
      $region64: #{adapter_forward.4} parent=51 // pred_fallthru
        _
    $region52: #{adapter_forward.4} parent=5 // pred_fallthru
      _
  $region6: #{adapter_forward.4} parent=0 // loop_footer
    %s17 = sadd.s32 1, %s13
  $region7: #{adapter_forward.4} parent=0 // loop_footer_branch
    %12 = sbr.rel target = $region3
  $region8: #{adapter_forward.4} parent=0 // loop_exit
    _

</llo_original>
